<compile_context>
chip_gen: v6e
topology: v6e:2x2x1
jax: 0.10.0
libtpu: 0.0.40
codegen_flags: <defaults>
</compile_context>

<pallas_src>
import functools

import numpy as np
import jax
import jax.numpy as jnp
from jax import lax
from jax.experimental import pallas as pl
from jax.experimental.pallas import tpu as pltpu

KERNEL_SIZE = 9
PAD = KERNEL_SIZE // 2


# -----------------------------------------------------------------------------
# Pallas kernel: one (job, label-tile) step.
#   mask*sal -> ONE separable ones-kernel box pass on the MXU -> fused combine
#   and reduce using the cnt-weight identity (see header comment).
# -----------------------------------------------------------------------------
def _coherence_kernel(mask_ref, sal_ref, out_ref, *, H, W, K):
    """mask_ref: (TL, Hp, Wp) bf16 0/1 label masks (zero padded in L and H/W)
       sal_ref : (Hp, Wp)     f32  saliency map for this job ("same" padded)
       out_ref : (1, 1)       f32  partial sum for this (job, label-tile)."""
    P = K // 2
    TL, Hp, Wp = mask_ref.shape

    # Masked saliency map; bf16 mask is exactly 0/1 -> upcast is exact.
    imp = mask_ref[...].astype(jnp.float32) * sal_ref[...][None, :, :]  # (TL,Hp,Wp)

    # Banded all-ones matrices for the separable KxK box filter, built from
    # iota (cheap VPU work, no extra operands/DMA).
    #   bw_t[w, j] = 1  iff  j <= w < j + K    (Wp, W)  -- W-direction window
    #   bh  [i, h] = 1  iff  i <= h < i + K    (H, Hp)  -- H-direction window
    wp_i = lax.broadcasted_iota(jnp.int32, (Wp, W), 0)
    w_j0 = lax.broadcasted_iota(jnp.int32, (Wp, W), 1)
    bw_t = ((wp_i >= w_j0) & (wp_i < w_j0 + K)).astype(jnp.float32)
    hp_i = lax.broadcasted_iota(jnp.int32, (H, Hp), 1)
    h_i0 = lax.broadcasted_iota(jnp.int32, (H, Hp), 0)
    bh = ((hp_i >= h_i0) & (hp_i < h_i0 + K)).astype(jnp.float32)
    # Hoisted once (JAX does not CSE broadcasts); reused by the batched H-pass.
    bh_b = jnp.broadcast_to(bh, (TL, H, Hp))

    hi = lax.Precision.HIGHEST  # full-f32 MXU passes

    # Single ones-kernel box pass of the masked image:
    #   W-pass on the MXU: fold TL*Hp into the matmul M dimension.
    rows = jnp.dot(imp.reshape(TL * Hp, Wp), bw_t,
                   preferred_element_type=jnp.float32,
                   precision=hi).reshape(TL, Hp, W)                     # (TL,Hp,W)
    #   H-pass on the MXU: batched matmul over the label tile.
    box_im = jnp.einsum("bih,bhw->biw", bh_b, rows,
                        preferred_element_type=jnp.float32,
                        precision=hi)                                   # (TL,H,W)

    # Center crop == unpadded masked image (reused for both terms).
    im = imp[:, P:P + H, P:P + W]                                       # (TL,H,W)

    # Per-pixel window-overlap count; replaces the conv3 (box of im^2) pass
    # exactly:  sum(box(im^2)) == sum(im^2 * cnt_h*cnt_w).
    hh = lax.broadcasted_iota(jnp.int32, (H, W), 0)
    ww = lax.broadcasted_iota(jnp.int32, (H, W), 1)
    cnt_h = jnp.minimum(hh + P, H - 1) - jnp.maximum(hh - P, 0) + 1
    cnt_w = jnp.minimum(ww + P, W - 1) - jnp.maximum(ww - P, 0) + 1
    wgt = float(K * K) + (cnt_h * cnt_w).astype(jnp.float32)            # (H,W)

    # total = sum(im^2*(K^2+cnt)) - 2*sum(im*box(im)), fused into one reduce.
    # Zero-padded label channels contribute exactly 0.
    out_ref[...] = jnp.sum(im * (im * wgt[None, :, :] - 2.0 * box_im))[None, None]


def _pick_channel_tile(H, W, K, budget_bytes=6 << 20, cap=32):
    """Largest label-tile (capped at `cap`) whose per-step working set
    (double-buffered bf16 mask block + the f32 temporaries the kernel keeps
    live) fits a conservative budget sized for v7x's 64 MiB VMEM."""
    P = K // 2
    Hp, Wp = H + 2 * P, W + 2 * P
    per_ch = (2 * 2 * Hp * Wp               # bf16 mask block, double-buffered
              + 4 * (Hp * Wp                # imp
                     + Hp * W               # W-pass rows intermediate
                     + H * Hp               # broadcast banded B_H
                     + 3 * H * W))          # im, box_im, fused-product temp
    return int(max(1, min(cap, budget_bytes // max(per_ch, 1))))


def _choose_label_tiling(max_l, H, W, K):
    """Split max_l labels into T tiles of TL each, minimizing zero padding
    while respecting the VMEM-derived per-step cap."""
    cap = _pick_channel_tile(H, W, K)
    num_tiles = -(-max_l // cap)            # ceil
    tl = -(-max_l // num_tiles)             # ceil -> smallest TL covering max_l
    return tl, num_tiles, tl * num_tiles


def _coherence_partials(mask_all, sal_all, *, K, TL, H, W):
    """mask_all: (J, L_pad, Hp, Wp) bf16; sal_all: (J, Hp, Wp) f32.
    Returns (J, T, 1, 1) f32 per-(job, label-tile) partial sums."""
    J, L_pad, Hp, Wp = mask_all.shape
    T = L_pad // TL
    kernel = functools.partial(_coherence_kernel, H=H, W=W, K=K)
    # TODO(synk): pipeline depth (pl.Buffered(3) on the mask spec) is a further
    # knob if mask DMA ever becomes exposed; left at the default depth of 2.
    return pl.pallas_call(
        kernel,
        out_shape=jax.ShapeDtypeStruct((J, T, 1, 1), jnp.float32),
        grid=(J, T),
        in_specs=[
            pl.BlockSpec((None, TL, Hp, Wp), lambda j, t: (j, t, 0, 0)),
            pl.BlockSpec((None, Hp, Wp), lambda j, t: (j, 0, 0)),
        ],
        out_specs=pl.BlockSpec((None, None, 1, 1), lambda j, t: (j, t, 0, 0)),
        compiler_params=pltpu.CompilerParams(
            dimension_semantics=("parallel", "parallel"),
            vmem_limit_bytes=32 * 1024 * 1024,
        ),
    )(mask_all, sal_all)


# -----------------------------------------------------------------------------
# Host-side mask pipeline (was numpy in the torch module as well).
# TODO(synk): scipy.binary_erosion / skimage.measure.label have no Pallas
# equivalent; simple numpy re-implementations with the library defaults
# (cross structuring element / 8-connectivity) are used here.
# -----------------------------------------------------------------------------
def _threshold_otsu_numpy(image, nbins=256):
    first_pixel = image.ravel()[0]
    if np.all(image == first_pixel):
        return first_pixel
    counts, bin_edges = np.histogram(image, bins=nbins, density=True)
    bin_centers = (bin_edges[1:] + bin_edges[:-1]) / 2
    with np.errstate(divide="ignore", invalid="ignore"):
        weight1 = np.cumsum(counts)
        weight2 = np.cumsum(counts[::-1])[::-1]
        mean1 = np.cumsum(counts * bin_centers) / weight1
        mean2 = (np.cumsum((counts * bin_centers)[::-1]) / weight2[::-1])[::-1]
        variance12 = weight1[:-1] * weight2[1:] * (mean1[:-1] - mean2[1:]) ** 2
    idx = np.argmax(variance12)
    return bin_centers[idx]


def _binary_erosion_np(binary):
    # scipy.ndimage.binary_erosion defaults: cross structuring element, border=0
    H, W = binary.shape
    p = np.zeros((H + 2, W + 2), dtype=bool)
    p[1:-1, 1:-1] = binary.astype(bool)
    out = (p[1:-1, 1:-1] & p[:-2, 1:-1] & p[2:, 1:-1]
           & p[1:-1, :-2] & p[1:-1, 2:])
    return out.astype(np.int32)


def _label_np(binary):
    # skimage.measure.label defaults for 2D: background=0, 8-connectivity
    H, W = binary.shape
    labels = np.zeros((H, W), dtype=np.int32)
    cur = 0
    for i in range(H):
        for j in range(W):
            if binary[i, j] and labels[i, j] == 0:
                cur += 1
                stack = [(i, j)]
                labels[i, j] = cur
                while stack:
                    y, x = stack.pop()
                    for dy in (-1, 0, 1):
                        for dx in (-1, 0, 1):
                            ny, nx = y + dy, x + dx
                            if (0 <= ny < H and 0 <= nx < W
                                    and binary[ny, nx] and labels[ny, nx] == 0):
                                labels[ny, nx] = cur
                                stack.append((ny, nx))
    return labels


def _build_label_stack(sal_map_2d):
    threshold = _threshold_otsu_numpy(sal_map_2d)
    binary_mask = (sal_map_2d > threshold).astype(np.int32)
    processed = _binary_erosion_np(binary_mask)
    labels = _label_np(processed)
    n = int(labels.max())
    stack = np.zeros((1, n, sal_map_2d.shape[0], sal_map_2d.shape[1]), np.float32)
    # NOTE: range(1, n) intentionally matches the original module, which leaves
    # the last connected component as all-zeros.
    for i in range(1, n):
        stack[0, i - 1] = (labels == i)
    return stack


# -----------------------------------------------------------------------------
# Full forward (mirrors SpatialCoherenceConv.forward)
# -----------------------------------------------------------------------------
def spatial_coherence_forward(sal_tensor_list, kernel_size=KERNEL_SIZE):
    K = kernel_size
    P = K // 2

    # Host-side mask pipeline; jobs are grouped by image shape so each group is
    # batched into a SINGLE pallas_call (amortized launch, pipelined DMA).
    groups = {}
    for sal in sal_tensor_list:                      # each sal: (B, H, W)
        sal_np = np.asarray(sal, dtype=np.float32)
        for b in range(sal_np.shape[0]):
            stack = _build_label_stack(sal_np[b])    # (1, Lb, H, W)
            groups.setdefault(sal_np[b].shape, []).append((stack[0], sal_np[b]))

    total = jnp.zeros((), jnp.float32)
    for (H, W), jobs in groups.items():
        max_l = max(max((s.shape[0] for s, _ in jobs), default=1), 1)
        TL, T, L_pad = _choose_label_tiling(max_l, H, W, K)
        J = len(jobs)
        Hp, Wp = H + 2 * P, W + 2 * P

        # Batched, spatially pre-padded ("same" zero padding) inputs.
        mask_all = np.zeros((J, L_pad, Hp, Wp), np.float32)
        sal_all = np.zeros((J, Hp, Wp), np.float32)
        for ji, (stack, sal_b) in enumerate(jobs):
            lb = stack.shape[0]
            if lb:
                mask_all[ji, :lb, P:P + H, P:P + W] = stack
            sal_all[ji, P:P + H, P:P + W] = sal_b

        partials = _coherence_partials(
            jnp.asarray(mask_all, dtype=jnp.bfloat16),  # 0/1 -> exact in bf16
            jnp.asarray(sal_all),
            K=K, TL=TL, H=H, W=W)
        total = total + jnp.sum(partials)
    return total


# -----------------------------------------------------------------------------
# Numpy reference of multi_convs (literal depthwise cross-correlation)
# -----------------------------------------------------------------------------
def _depthwise_conv_same(x, kern):
    C, H, W = x.shape
    K = kern.shape[-1]
    P = K // 2
    xp = np.pad(x, ((0, 0), (P, P), (P, P)))
    out = np.zeros_like(x)
    for di in range(K):
        for dj in range(K):
            out += kern[:, di:di + 1, dj:dj + 1] * xp[:, di:di + H, dj:dj + W]
    return out


def _multi_convs_ref(masked, K=KERNEL_SIZE):
    if masked.shape[1] < 1:
        return 0.0
    C = masked.shape[1]
    k1 = np.zeros((C, K, K), np.float32); k1[:, K // 2, K // 2] = 1.0
    k2 = np.full((C, K, K), -2.0, np.float32); k2[:, K // 2, K // 2] = K * K - 2.0
    k3 = np.ones((C, K, K), np.float32)
    im = masked[0]
    c1 = _depthwise_conv_same(im, k1)
    c2 = _depthwise_conv_same(im, k2)
    c3 = _depthwise_conv_same(im * im, k3)
    return float(np.sum(c1 * c2 + c3))


def _forward_ref(sal_tensor_list, kernel_size=KERNEL_SIZE):
    total = 0.0
    for sal in sal_tensor_list:
        sal_np = np.asarray(sal, dtype=np.float32)
        for b in range(sal_np.shape[0]):
            stack = _build_label_stack(sal_np[b])           # (1, Lb, H, W)
            masked = stack * sal_np[b:b + 1]                # (1, Lb, H, W)
            total += _multi_convs_ref(masked, kernel_size)
    return total


if __name__ == "__main__":
    key = jax.random.PRNGKey(0)
    k_a, k_b = jax.random.split(key)
    # saliency maps per class, each (batch=2, H=16, W=16)
    sal_tensor_list = [
        jax.random.uniform(k_a, (2, 16, 16), dtype=jnp.float32),
        jax.random.uniform(k_b, (2, 16, 16), dtype=jnp.float32),
    ]

    out = spatial_coherence_forward(sal_tensor_list)
    out = jax.block_until_ready(out)

    ref = _forward_ref(sal_tensor_list)
    np.testing.assert_allclose(float(out), ref, rtol=1e-4, atol=1e-2)

    print("KERNEL_OK")
</pallas_src>

<mosaic_0001>
module attributes {stable_mosaic.version = 11 : i64} {
  func.func @_coherence_kernel(%arg0: i32, %arg1: i32, %arg2: memref<1x7x24x24xbf16, #tpu.memory_space<vmem>>, %arg3: memref<1x24x24xf32, #tpu.memory_space<vmem>>, %arg4: memref<1x1x1x1xf32, #tpu.memory_space<vmem>>) attributes {dimension_semantics = [#tpu.dimension_semantics<parallel>, #tpu.dimension_semantics<parallel>], iteration_bounds = array<i64: 4, 1>, scalar_prefetch = 0 : i64, scratch_operands = 0 : i64, tpu.core_type = #tpu.core_type<tc>, window_params = [{transform_indices = @transform_0, window_bounds = array<i64: 1, 7, 24, 24>}, {transform_indices = @transform_1, window_bounds = array<i64: 1, 24, 24>}, {transform_indices = @transform_2, window_bounds = array<i64: 1, 1, 1, 1>}]} {
    %c0 = arith.constant 0 : index
    %c0_0 = arith.constant 0 : index
    %c0_1 = arith.constant 0 : index
    %c0_2 = arith.constant 0 : index
    %0 = vector.load %arg2[%c0, %c0_0, %c0_1, %c0_2] : memref<1x7x24x24xbf16, #tpu.memory_space<vmem>>, vector<1x7x24x24xbf16>
    %1 = vector.shape_cast %0 : vector<1x7x24x24xbf16> to vector<7x24x24xbf16>
    %2 = arith.extf %1 : vector<7x24x24xbf16> to vector<7x24x24xf32>
    %c0_3 = arith.constant 0 : index
    %c0_4 = arith.constant 0 : index
    %c0_5 = arith.constant 0 : index
    %3 = vector.load %arg3[%c0_3, %c0_4, %c0_5] : memref<1x24x24xf32, #tpu.memory_space<vmem>>, vector<1x24x24xf32>
    %4 = vector.shape_cast %3 : vector<1x24x24xf32> to vector<24x24xf32>
    %5 = vector.shape_cast %4 : vector<24x24xf32> to vector<1x24x24xf32>
    %6 = vector.broadcast %5 : vector<1x24x24xf32> to vector<7x24x24xf32>
    %7 = arith.mulf %2, %6 : vector<7x24x24xf32>
    %8 = tpu.iota {dimensions = array<i32: 0>} : vector<24x16xi32>
    %9 = tpu.iota {dimensions = array<i32: 1>} : vector<24x16xi32>
    %10 = arith.cmpi sge, %8, %9 : vector<24x16xi32>
    %c9_i32 = arith.constant 9 : i32
    %11 = vector.broadcast %c9_i32 : i32 to vector<24x16xi32>
    %12 = arith.addi %9, %11 : vector<24x16xi32>
    %13 = arith.cmpi slt, %8, %12 : vector<24x16xi32>
    %14 = arith.andi %10, %13 : vector<24x16xi1>
    %15 = arith.extui %14 : vector<24x16xi1> to vector<24x16xi32>
    %16 = arith.sitofp %15 : vector<24x16xi32> to vector<24x16xf32>
    %17 = tpu.iota {dimensions = array<i32: 1>} : vector<16x24xi32>
    %18 = tpu.iota {dimensions = array<i32: 0>} : vector<16x24xi32>
    %19 = arith.cmpi sge, %17, %18 : vector<16x24xi32>
    %c9_i32_6 = arith.constant 9 : i32
    %20 = vector.broadcast %c9_i32_6 : i32 to vector<16x24xi32>
    %21 = arith.addi %18, %20 : vector<16x24xi32>
    %22 = arith.cmpi slt, %17, %21 : vector<16x24xi32>
    %23 = arith.andi %19, %22 : vector<16x24xi1>
    %24 = arith.extui %23 : vector<16x24xi1> to vector<16x24xi32>
    %25 = arith.sitofp %24 : vector<16x24xi32> to vector<16x24xf32>
    %26 = vector.shape_cast %25 : vector<16x24xf32> to vector<1x16x24xf32>
    %27 = vector.broadcast %26 : vector<1x16x24xf32> to vector<7x16x24xf32>
    %28 = vector.shape_cast %7 : vector<7x24x24xf32> to vector<168x24xf32>
    %cst = arith.constant dense<0.000000e+00> : vector<168x16xf32>
    %29 = tpu.matmul %28, %16, %cst {dimension_numbers = #tpu.dot_dimension_numbers<[1], [0], [0], [1], [0, 0, 1, 1], [], []>, precision = #tpu.contract_precision<fp32>} : vector<168x24xf32>, vector<24x16xf32>, vector<168x16xf32> -> vector<168x16xf32>
    %30 = vector.shape_cast %29 : vector<168x16xf32> to vector<7x24x16xf32>
    "tpu.trace_start"() <{level = 10 : i32, message = "bih,bhw->biw"}> : () -> ()
    %cst_7 = arith.constant dense<0.000000e+00> : vector<7x16x16xf32>
    %31 = tpu.matmul %27, %30, %cst_7 {dimension_numbers = #tpu.dot_dimension_numbers<[2], [1], [1], [2], [0, 0, 0, 1, 1, 2], [0], [0]>, precision = #tpu.contract_precision<fp32>} : vector<7x16x24xf32>, vector<7x24x16xf32>, vector<7x16x16xf32> -> vector<7x16x16xf32>
    "tpu.trace_stop"() : () -> ()
    %32 = vector.extract_strided_slice %7 {offsets = [0, 4, 4], sizes = [7, 16, 16], strides = [1, 1, 1]} : vector<7x24x24xf32> to vector<7x16x16xf32>
    %33 = tpu.iota {dimensions = array<i32: 0>} : vector<16x16xi32>
    %34 = tpu.iota {dimensions = array<i32: 1>} : vector<16x16xi32>
    %c4_i32 = arith.constant 4 : i32
    %35 = vector.broadcast %c4_i32 : i32 to vector<16x16xi32>
    %36 = arith.addi %33, %35 : vector<16x16xi32>
    %c15_i32 = arith.constant 15 : i32
    %37 = vector.broadcast %c15_i32 : i32 to vector<16x16xi32>
    %38 = arith.minsi %36, %37 : vector<16x16xi32>
    %c4_i32_8 = arith.constant 4 : i32
    %39 = vector.broadcast %c4_i32_8 : i32 to vector<16x16xi32>
    %40 = arith.subi %33, %39 : vector<16x16xi32>
    %c0_i32 = arith.constant 0 : i32
    %41 = vector.broadcast %c0_i32 : i32 to vector<16x16xi32>
    %42 = arith.maxsi %40, %41 : vector<16x16xi32>
    %43 = arith.subi %38, %42 : vector<16x16xi32>
    %c1_i32 = arith.constant 1 : i32
    %44 = vector.broadcast %c1_i32 : i32 to vector<16x16xi32>
    %45 = arith.addi %43, %44 : vector<16x16xi32>
    %c4_i32_9 = arith.constant 4 : i32
    %46 = vector.broadcast %c4_i32_9 : i32 to vector<16x16xi32>
    %47 = arith.addi %34, %46 : vector<16x16xi32>
    %c15_i32_10 = arith.constant 15 : i32
    %48 = vector.broadcast %c15_i32_10 : i32 to vector<16x16xi32>
    %49 = arith.minsi %47, %48 : vector<16x16xi32>
    %c4_i32_11 = arith.constant 4 : i32
    %50 = vector.broadcast %c4_i32_11 : i32 to vector<16x16xi32>
    %51 = arith.subi %34, %50 : vector<16x16xi32>
    %c0_i32_12 = arith.constant 0 : i32
    %52 = vector.broadcast %c0_i32_12 : i32 to vector<16x16xi32>
    %53 = arith.maxsi %51, %52 : vector<16x16xi32>
    %54 = arith.subi %49, %53 : vector<16x16xi32>
    %c1_i32_13 = arith.constant 1 : i32
    %55 = vector.broadcast %c1_i32_13 : i32 to vector<16x16xi32>
    %56 = arith.addi %54, %55 : vector<16x16xi32>
    %57 = arith.muli %45, %56 : vector<16x16xi32>
    %58 = arith.sitofp %57 : vector<16x16xi32> to vector<16x16xf32>
    %cst_14 = arith.constant 8.100000e+01 : f32
    %59 = vector.broadcast %cst_14 : f32 to vector<16x16xf32>
    %60 = arith.addf %59, %58 : vector<16x16xf32>
    %61 = vector.shape_cast %60 : vector<16x16xf32> to vector<1x16x16xf32>
    %62 = vector.broadcast %61 : vector<1x16x16xf32> to vector<7x16x16xf32>
    %63 = arith.mulf %32, %62 : vector<7x16x16xf32>
    %cst_15 = arith.constant 2.000000e+00 : f32
    %64 = vector.broadcast %cst_15 : f32 to vector<7x16x16xf32>
    %65 = arith.mulf %64, %31 : vector<7x16x16xf32>
    %66 = arith.subf %63, %65 : vector<7x16x16xf32>
    %67 = arith.mulf %32, %66 : vector<7x16x16xf32>
    %68 = vector.shape_cast %67 : vector<7x16x16xf32> to vector<1x7x16x16xf32>
    %cst_16 = arith.constant dense<0.000000e+00> : vector<1xf32>
    %69 = vector.multi_reduction <add>, %68, %cst_16 [1, 2, 3] : vector<1x7x16x16xf32> to vector<1xf32>
    %70 = vector.shape_cast %69 : vector<1xf32> to vector<1x1x1x1xf32>
    %71 = vector.extract %70[0, 0, 0, 0] : f32 from vector<1x1x1x1xf32>
    %72 = vector.broadcast %71 : f32 to vector<1x1xf32>
    %c0_17 = arith.constant 0 : index
    %c0_18 = arith.constant 0 : index
    %c0_19 = arith.constant 0 : index
    %c0_20 = arith.constant 0 : index
    %73 = vector.load %arg4[%c0_17, %c0_18, %c0_19, %c0_20] : memref<1x1x1x1xf32, #tpu.memory_space<vmem>>, vector<1x1x1x1xf32>
    %74 = vector.shape_cast %73 : vector<1x1x1x1xf32> to vector<1x1xf32>
    %75 = vector.shape_cast %72 : vector<1x1xf32> to vector<1x1x1x1xf32>
    tpu.vector_store %arg4[%c0_17, %c0_18, %c0_19, %c0_20], %75 {strides = array<i32>} : memref<1x1x1x1xf32, #tpu.memory_space<vmem>>, vector<1x1x1x1xf32>,
    return
  }
  func.func @transform_0(%arg0: i32, %arg1: i32) -> (i32, i32, i32, i32) {
    %c0_i32 = arith.constant 0 : i32
    %c0_i32_0 = arith.constant 0 : i32
    %c0_i32_1 = arith.constant 0 : i32
    return %arg0, %arg1, %c0_i32, %c0_i32_0 : i32, i32, i32, i32
  }
  func.func @transform_1(%arg0: i32, %arg1: i32) -> (i32, i32, i32) {
    %c0_i32 = arith.constant 0 : i32
    %c0_i32_0 = arith.constant 0 : i32
    %c0_i32_1 = arith.constant 0 : i32
    return %arg0, %c0_i32, %c0_i32_0 : i32, i32, i32
  }
  func.func @transform_2(%arg0: i32, %arg1: i32) -> (i32, i32, i32, i32) {
    %c0_i32 = arith.constant 0 : i32
    %c0_i32_0 = arith.constant 0 : i32
    %c0_i32_1 = arith.constant 0 : i32
    return %arg0, %arg1, %c0_i32, %c0_i32_0 : i32, i32, i32, i32
  }
}

</mosaic_0001>

<llo_original>
// kernel: tpu_custom_call.1
$region0: #{tpu_custom_call.1}
  #allocation0 [shape = 'u32[]', space=smem, size = 0x4, offset = 0x4, fixed_abs, tag = 'smem constant byte address 0x4 - core index']
  #allocation1 [shape = 'u32[144,128]{1,0:T(1,128)}', space=vmem, size = 0x12000, scoped, tag = 'internal scratch']
  %s0 = inlined_call_operand.hbm [shape: bf16[4,7,24,24], index: 0, kind: input, shape index: {}]
  %s1 = inlined_call_operand.hbm [shape: f32[4,24,24], index: 1, kind: input, shape index: {}]
  %s2 = inlined_call_operand.vmem [shape: f32[4,1,1,1], index: 2, kind: output, shape index: {}]
  %s3 = sld [smem:[#allocation0]]
  $region49: #{tpu_custom_call.1} parent=0
    _
  %s5 = ssub.s32 1, %s3
  %s6 = scalar_select 0, %s5, %s3
  $region1: #{tpu_custom_call.1} parent=0
    #allocation2 [shape = 'u8[86016]{0}', space=vmem, size = 0x15000, scoped, tag = 'input window, operand 0']
    #allocation3 [shape = 's32[2]{0}', space=sflag, size = 0x8, scoped, tag = 'scoped memory for tpu_custom_call.1']
    #allocation4 [shape = 'u8[24576]{0}', space=vmem, size = 0x6000, scoped, tag = 'input window, operand 1']
    #allocation5 [shape = 's32[2]{0}', space=sflag, size = 0x8, scoped, tag = 'scoped memory for tpu_custom_call.1']
    %7 = vsyncpa [#allocation3], 0
    %s8 = scalar_lea.sflag [#allocation3], 1
    %9 = vsyncpa %s8, 0
    %10 = vsyncpa [#allocation5], 0
    %s11 = scalar_lea.sflag [#allocation5], 1
    %12 = vsyncpa %s11, 0
    loop: start=0, step=1, limit=6
    $region2: #{tpu_custom_call.1} parent=1 // loop_pre_header
      _
    $region3: #{tpu_custom_call.1} parent=1 // loop_header
      %s14 = sphi 0, %s18
      %p15 = scmp.ge.s32.totalorder %s14, 6
      %s21 = sphi 0, %s33
      %s22 = sphi 0, %s29
      %s23 = sphi 0, %s21
      %s24 = sphi 0, %s22
      %s25 = sphi 0, %s23
      %s26 = sphi 0, %s24
      %s38 = sphi 0, %s40
      %s41 = sphi 0, %s38
      %s42 = sphi 0, %s41
      %s58 = sphi 0, %s42
      %s64 = sphi 0, %s66
      %s67 = sphi 0, %s64
      %s68 = sphi 0, %s67
      %s84 = sphi 0, %s68
      %s92 = sphi 0, %s94
      %s95 = sphi 0, %s92
      %s96 = sphi 0, %s95
      %s112 = sphi 0, %s96
    $region4: #{tpu_custom_call.1} parent=1 // loop_header_branch
      %17 = sbr.rel (%p15) target = $region8
    $region5: #{tpu_custom_call.1} parent=1 // loop_body
      %s19 = ssub.s32 %s14, 1
      %s20 = ssub.s32 %s14, 2
      %s27 = sadd.s32 1, %s22
      %p28 = scmp.ge.s32.totalorder %s27, 1
      %s29 = scalar_select %p28, 0, %s27
      %s30 = sadd.s32 1, %s21
      %s31 = scalar_select %p28, %s30, %s21
      %p32 = scmp.ge.s32.totalorder %s31, 4
      %s33 = scalar_select %p32, 0, %s31
      %s34 = ssub.s32 %s21, %s33
      %s35 = ssub.s32 %s22, %s29
      %s36 = sor.u32 %s34, %s35
      %p37 = scmp.eq.s32.totalorder %s36, 0
      %s39 = sadd.s32 %s38, 1
      %s40 = scalar_select %p37, %s38, %s39
      %p43 = pneg %p37
      %p44 = scmp.eq.s32.totalorder %s14, 3
      %p45 = por %p43, %p44
      %p46 = scmp.ne.s32.totalorder %s38, %s41
      %p47 = scmp.eq.s32.totalorder %s14, 0
      %p48 = por %p46, %p47
      %p49 = scmp.ne.s32.totalorder %s38, %s41
      %p50 = scmp.eq.s32.totalorder %s19, 3
      %p51 = por %p49, %p50
      %p52 = scmp.ne.s32.totalorder %s41, %s42
      %p53 = scmp.eq.s32.totalorder %s19, 0
      %p54 = por %p52, %p53
      %p55 = scmp.ne.s32.totalorder %s41, %s42
      %p56 = scmp.eq.s32.totalorder %s20, 3
      %p57 = por %p55, %p56
      %p59 = scmp.ne.s32.totalorder %s42, %s58
      %p60 = scmp.eq.s32.totalorder %s20, 0
      %p61 = por %p59, %p60
      %s62 = ssub.s32 %s21, %s33
      %p63 = scmp.eq.s32.totalorder %s62, 0
      %s65 = sadd.s32 %s64, 1
      %s66 = scalar_select %p63, %s64, %s65
      %p69 = pneg %p63
      %p70 = scmp.eq.s32.totalorder %s14, 3
      %p71 = por %p69, %p70
      %p72 = scmp.ne.s32.totalorder %s64, %s67
      %p73 = scmp.eq.s32.totalorder %s14, 0
      %p74 = por %p72, %p73
      %p75 = scmp.ne.s32.totalorder %s64, %s67
      %p76 = scmp.eq.s32.totalorder %s19, 3
      %p77 = por %p75, %p76
      %p78 = scmp.ne.s32.totalorder %s67, %s68
      %p79 = scmp.eq.s32.totalorder %s19, 0
      %p80 = por %p78, %p79
      %p81 = scmp.ne.s32.totalorder %s67, %s68
      %p82 = scmp.eq.s32.totalorder %s20, 3
      %p83 = por %p81, %p82
      %p85 = scmp.ne.s32.totalorder %s68, %s84
      %p86 = scmp.eq.s32.totalorder %s20, 0
      %p87 = por %p85, %p86
      %s88 = ssub.s32 %s21, %s33
      %s89 = ssub.s32 %s22, %s29
      %s90 = sor.u32 %s88, %s89
      %p91 = scmp.eq.s32.totalorder %s90, 0
      %s93 = sadd.s32 %s92, 1
      %s94 = scalar_select %p91, %s92, %s93
      %p97 = pneg %p91
      %p98 = scmp.eq.s32.totalorder %s14, 3
      %p99 = por %p97, %p98
      %p100 = scmp.ne.s32.totalorder %s92, %s95
      %p101 = scmp.eq.s32.totalorder %s14, 0
      %p102 = por %p100, %p101
      %p103 = scmp.ne.s32.totalorder %s92, %s95
      %p104 = scmp.eq.s32.totalorder %s19, 3
      %p105 = por %p103, %p104
      %p106 = scmp.ne.s32.totalorder %s95, %s96
      %p107 = scmp.eq.s32.totalorder %s19, 0
      %p108 = por %p106, %p107
      %p109 = scmp.ne.s32.totalorder %s95, %s96
      %p110 = scmp.eq.s32.totalorder %s20, 3
      %p111 = por %p109, %p110
      %p113 = scmp.ne.s32.totalorder %s96, %s112
      %p114 = scmp.eq.s32.totalorder %s20, 0
      %p115 = por %p113, %p114
      %p116 = scmp.le.s32.totalorder 1, %s14
      %p117 = scmp.lt.s32.totalorder %s14, 5
      %p118 = pnand %p116, %p117
      %p119 = pneg %p118
      // Predicated region
      $region9: #{tpu_custom_call.1} parent=5 // pred_check
        _
      $region10: #{tpu_custom_call.1} parent=5 // pred_check_branch
        %121 = sbr.rel (%p118) target = $region12
      $region11: #{tpu_custom_call.1} parent=5 // pred_region
        %s122 = ssub.s32 %s14, 1
      $region12: #{tpu_custom_call.1} parent=5 // pred_fallthru
        _
      %p123 = scmp.lt.s32.totalorder %s14, 4
      // Predicated region
      $region13: #{tpu_custom_call.1} parent=5 // pred_check
        %p124 = pneg %p123
      $region14: #{tpu_custom_call.1} parent=5 // pred_check_branch
        %126 = sbr.rel (%p124) target = $region16
      $region15: #{tpu_custom_call.1} parent=5 // pred_region
        // Predicated region
        $region17: #{tpu_custom_call.1} parent=15 // pred_check
          %p127 = pneg %p48
        $region18: #{tpu_custom_call.1} parent=15 // pred_check_branch
          %129 = sbr.rel (%p127) target = $region20
        $region19: #{tpu_custom_call.1} parent=15 // pred_region
          %s130 = sand.u32 %s38, 1
          %s131 = scalar_lea.sflag [#allocation3], %s130
          %s132 = sand.u32 %s38, 1
          %s133 = smul.addr %s132, 84
          %s134 = scalar_lea.vmem [#allocation2], %s133
          %s135 = smul.u32 7, %s22
          %s137 = ssub.s32 1344, 1344
          %138 = vsyncadd %s131, %s137
          %s139 = smul.addr %s135, 3
          %s140 = smul.addr %s21, 21
          %s141 = sadd.s32 %s139, %s140
          %s142 = smul.addr %s141, 64
          %s143 = scalar_lea.hbm %s0, %s142
          %s144 = sshll.u32 %s134, 4
          %s145 = int_to_ptr.vmem [resolvable:$true] %s144
          %150 = dma.hbm_to_vmem [thread:$0]  %s143, 1344, %s145, %s131, 64, 64, 4
        $region20: #{tpu_custom_call.1} parent=15 // pred_fallthru
          _
        // Predicated region
        $region21: #{tpu_custom_call.1} parent=15 // pred_check
          %p151 = pneg %p74
        $region22: #{tpu_custom_call.1} parent=15 // pred_check_branch
          %153 = sbr.rel (%p151) target = $region24
        $region23: #{tpu_custom_call.1} parent=15 // pred_region
          %s154 = sand.u32 %s64, 1
          %s155 = scalar_lea.sflag [#allocation5], %s154
          %s156 = sand.u32 %s64, 1
          %s157 = smul.addr %s156, 24
          %s158 = scalar_lea.vmem [#allocation4], %s157
          %s160 = ssub.s32 384, 384
          %161 = vsyncadd %s155, %s160
          %s162 = smul.addr %s21, 3
          %s163 = smul.addr %s162, 128
          %s164 = scalar_lea.hbm %s1, %s163
          %s165 = sshll.u32 %s158, 4
          %s166 = int_to_ptr.vmem [resolvable:$true] %s165
          %171 = dma.hbm_to_vmem [thread:$0]  %s164, 384, %s166, %s155, 128, 128, 8
        $region24: #{tpu_custom_call.1} parent=15 // pred_fallthru
          _
      $region16: #{tpu_custom_call.1} parent=5 // pred_fallthru
        _
      %p172 = scmp.le.s32.totalorder 1, %s14
      %p173 = scmp.lt.s32.totalorder %s14, 5
      %p174 = pnand %p172, %p173
      %p175 = pneg %p174
      // Predicated region
      $region25: #{tpu_custom_call.1} parent=5 // pred_check
        _
      $region26: #{tpu_custom_call.1} parent=5 // pred_check_branch
        %177 = sbr.rel (%p174) target = $region28
      $region27: #{tpu_custom_call.1} parent=5 // pred_region
        %s178 = ssub.s32 %s14, 1
        %s179 = sand.u32 %s41, 1
        %s180 = scalar_lea.sflag [#allocation3], %s179
        %s181 = sand.u32 %s41, 1
        %s182 = smul.addr %s181, 84
        %s183 = scalar_lea.vmem [#allocation2], %s182
        // Predicated region
        $region29: #{tpu_custom_call.1} parent=27 // pred_check
          %p184 = pneg %p54
        $region30: #{tpu_custom_call.1} parent=27 // pred_check_branch
          %186 = sbr.rel (%p184) target = $region32
        $region31: #{tpu_custom_call.1} parent=27 // pred_region
          %187 = dma.done %s180, 1344
        $region32: #{tpu_custom_call.1} parent=27 // pred_fallthru
          _
        %s188 = sand.u32 %s67, 1
        %s189 = scalar_lea.sflag [#allocation5], %s188
        %s190 = sand.u32 %s67, 1
        %s191 = smul.addr %s190, 24
        %s192 = scalar_lea.vmem [#allocation4], %s191
        // Predicated region
        $region33: #{tpu_custom_call.1} parent=27 // pred_check
          %p193 = pneg %p80
        $region34: #{tpu_custom_call.1} parent=27 // pred_check_branch
          %195 = sbr.rel (%p193) target = $region36
        $region35: #{tpu_custom_call.1} parent=27 // pred_region
          %196 = dma.done %s189, 384
        $region36: #{tpu_custom_call.1} parent=27 // pred_fallthru
          _
        %s197 = sand.u32 %s41, 1
        %s198 = scalar_lea.sflag [#allocation3], %s197
        %s199 = sand.u32 %s41, 1
        %s200 = smul.addr %s199, 84
        %s201 = scalar_lea.vmem [#allocation2], %s200
        %p202 = pneg %p54
        %p203 = pneg %p51
        %s204 = sand.u32 %s67, 1
        %s205 = scalar_lea.sflag [#allocation5], %s204
        %s206 = sand.u32 %s67, 1
        %s207 = smul.addr %s206, 24
        %s208 = scalar_lea.vmem [#allocation4], %s207
        %p209 = pneg %p80
        %p210 = pneg %p77
        %p211 = pneg %p108
        %p212 = pneg %p105
        %p213 = scmp.lt.s32.totalorder %s23, 3
        %s214 = scalar_select %p213, %s23, 3
        %p215 = scmp.lt.s32.totalorder %s24, 0
        %s216 = scalar_select %p215, %s24, 0
        %s217 = sadd.s32 %s216, %s214
        %s218 = scalar_lea.vmem %s2, %s217
        %s219 = smul.u32 7, %s24
        %p220 = scmp.lt.s32.totalorder %s23, 3
        %s221 = scalar_select %p220, %s23, 3
        %p222 = scmp.lt.s32.totalorder %s24, 0
        %s223 = scalar_select %p222, %s24, 0
        %s224 = sadd.s32 %s223, %s221
        %s225 = scalar_lea.vmem %s2, %s224
        %v226 = vld [vmem:[%s183] sm:$0xf]
        %v227 = vld [vmem:[%s183 + $0x4] sm:$0xf]
        %v228 = vld [vmem:[%s183 + $0x8] sm:$0xf]
        %v229 = vld [vmem:[%s183 + $0xc] sm:$0xf]
        %v230 = vld [vmem:[%s183 + $0x10] sm:$0xf]
        %v231 = vld [vmem:[%s183 + $0x14] sm:$0xf]
        %v232 = vld [vmem:[%s183 + $0x18] sm:$0xf]
        %v233 = vld [vmem:[%s183 + $0x1c] sm:$0xf]
        %v234 = vld [vmem:[%s183 + $0x20] sm:$0xf]
        %v235 = vld [vmem:[%s183 + $0x24] sm:$0xf]
        %v236 = vld [vmem:[%s183 + $0x28] sm:$0xf]
        %v237 = vld [vmem:[%s183 + $0x2c] sm:$0xf]
        %v238 = vld [vmem:[%s183 + $0x30] sm:$0xf]
        %v239 = vld [vmem:[%s183 + $0x34] sm:$0xf]
        %v240 = vld [vmem:[%s183 + $0x38] sm:$0xf]
        %v241 = vld [vmem:[%s183 + $0x3c] sm:$0xf]
        %v242 = vld [vmem:[%s183 + $0x40] sm:$0xf]
        %v243 = vld [vmem:[%s183 + $0x44] sm:$0xf]
        %v244 = vld [vmem:[%s183 + $0x48] sm:$0xf]
        %v245 = vld [vmem:[%s183 + $0x4c] sm:$0xf]
        %v246 = vld [vmem:[%s183 + $0x50] sm:$0xf]
        %v247 = vunpack.c.l.bf16 %v226
        %v248 = vunpack.c.l.bf16 %v227
        %v249 = vunpack.c.l.bf16 %v228
        %v250 = vunpack.c.l.bf16 %v229
        %v251 = vunpack.c.l.bf16 %v230
        %v252 = vunpack.c.l.bf16 %v231
        %v253 = vunpack.c.l.bf16 %v232
        %v254 = vunpack.c.l.bf16 %v233
        %v255 = vunpack.c.l.bf16 %v234
        %v256 = vunpack.c.l.bf16 %v235
        %v257 = vunpack.c.l.bf16 %v236
        %v258 = vunpack.c.l.bf16 %v237
        %v259 = vunpack.c.l.bf16 %v238
        %v260 = vunpack.c.l.bf16 %v239
        %v261 = vunpack.c.l.bf16 %v240
        %v262 = vunpack.c.l.bf16 %v241
        %v263 = vunpack.c.l.bf16 %v242
        %v264 = vunpack.c.l.bf16 %v243
        %v265 = vunpack.c.l.bf16 %v244
        %v266 = vunpack.c.l.bf16 %v245
        %v267 = vunpack.c.l.bf16 %v246
        %v268 = vld [vmem:[%s192] sm:$0xff]
        %v269 = vld [vmem:[%s192 + $0x8] sm:$0xff]
        %v270 = vld [vmem:[%s192 + $0x10] sm:$0xff]
        %v271 = vmul.f32 %v247, %v268
        %v272 = vmul.f32 %v248, %v269
        %v273 = vmul.f32 %v249, %v270
        %v274 = vmul.f32 %v250, %v268
        %v275 = vmul.f32 %v251, %v269
        %v276 = vmul.f32 %v252, %v270
        %v277 = vmul.f32 %v253, %v268
        %v278 = vmul.f32 %v254, %v269
        %v279 = vmul.f32 %v255, %v270
        %v280 = vmul.f32 %v256, %v268
        %v281 = vmul.f32 %v257, %v269
        %v282 = vmul.f32 %v258, %v270
        %v283 = vmul.f32 %v259, %v268
        %v284 = vmul.f32 %v260, %v269
        %v285 = vmul.f32 %v261, %v270
        %v286 = vmul.f32 %v262, %v268
        %v287 = vmul.f32 %v263, %v269
        %v288 = vmul.f32 %v264, %v270
        %v289 = vmul.f32 %v265, %v268
        %v290 = vmul.f32 %v266, %v269
        %v291 = vmul.f32 %v267, %v270
        %v292 = vlaneseq
        %v293 = vshrl.u32 %v292, 7
        %v294 = vadd.s32 %v293, 8
        %v295 = vadd.s32 %v293, 16
        %v296 = vlaneseq
        %v297 = vand.u32 %v296, 127
        %vm298 = vcmp.ge.s32.totalorder %v293, %v297
        %vm299 = vcmp.ge.s32.totalorder %v294, %v297
        %vm300 = vcmp.ge.s32.totalorder %v295, %v297
        %v301 = vadd.s32 %v297, 9
        %vm302 = vcmp.lt.s32.totalorder %v293, %v301
        %vm303 = vcmp.lt.s32.totalorder %v294, %v301
        %vm304 = vcmp.lt.s32.totalorder %v295, %v301
        %vm305 = vmand %vm298, %vm302
        %vm306 = vmand %vm299, %vm303
        %vm307 = vmand %vm300, %vm304
        %v308 = vsel %vm305, 1, 0
        %v309 = vsel %vm306, 1, 0
        %v310 = vsel %vm307, 1, 0
        %v311 = vcvt.s32.f32 %v308
        %v312 = vcvt.s32.f32 %v309
        %v313 = vcvt.s32.f32 %v310
        %vm314 = vcmp.ge.s32.totalorder %v297, %v293
        %vm315 = vcmp.ge.s32.totalorder %v297, %v294
        %v316 = vadd.s32 %v293, 9
        %v317 = vadd.s32 %v294, 9
        %vm318 = vcmp.lt.s32.totalorder %v297, %v316
        %vm319 = vcmp.lt.s32.totalorder %v297, %v317
        %vm320 = vmand %vm314, %vm318
        %vm321 = vmand %vm315, %vm319
        %v322 = vsel %vm320, 1, 0
        %v323 = vsel %vm321, 1, 0
        %v324 = vcvt.s32.f32 %v322
        %v325 = vcvt.s32.f32 %v323
        %vm326 = vcmask 195584
        %v328 = vsel %vm326, %v271, 0
        %v331 = vsel %vm326, %v272, 0
        %v334 = vsel %vm326, %v273, 0
        %v337 = vsel %vm326, %v274, 0
        %v340 = vsel %vm326, %v275, 0
        %v343 = vsel %vm326, %v276, 0
        %v346 = vsel %vm326, %v277, 0
        %v349 = vsel %vm326, %v278, 0
        %v352 = vsel %vm326, %v279, 0
        %v355 = vsel %vm326, %v280, 0
        %v358 = vsel %vm326, %v281, 0
        %v361 = vsel %vm326, %v282, 0
        %v364 = vsel %vm326, %v283, 0
        %v367 = vsel %vm326, %v284, 0
        %v370 = vsel %vm326, %v285, 0
        %v373 = vsel %vm326, %v286, 0
        %v376 = vsel %vm326, %v287, 0
        %v379 = vsel %vm326, %v288, 0
        %v382 = vsel %vm326, %v289, 0
        %v385 = vsel %vm326, %v290, 0
        %v388 = vsel %vm326, %v291, 0
        %390 = vmatprep.subr.mxu0 0.0
        %391 = vmatpush1.msra.mxu0 0.0
        %392 = vmatprep.subr.mxu0 0.0
        %393 = vmatpush1.msra.mxu0 0.0
        %394 = vmatprep.subr.mxu0 0.0
        %395 = vmatpush1.msra.mxu0 0.0
        %396 = vmatprep.subr.mxu0 0.0
        %397 = vmatpush1.msra.mxu0 0.0
        %398 = vmatprep.subr.mxu0 0.0
        %399 = vmatpush1.msra.mxu0 0.0
        %400 = vmatprep.subr.mxu0 0.0
        %401 = vmatpush1.msra.mxu0 0.0
        %402 = vmatprep.subr.mxu0 0.0
        %403 = vmatpush1.msra.mxu0 0.0
        %404 = vmatprep.subr.mxu0 0.0
        %405 = vmatpush1.msra.mxu0 0.0
        %406 = vmatprep.subr.mxu0 0.0
        %407 = vmatpush1.msra.mxu0 0.0
        %408 = vmatprep.subr.mxu0 0.0
        %409 = vmatpush1.msra.mxu0 0.0
        %410 = vmatprep.subr.mxu0 0.0
        %411 = vmatpush1.msra.mxu0 0.0
        %412 = vmatprep.subr.mxu0 0.0
        %413 = vmatpush1.msra.mxu0 0.0
        %414 = vmatprep.subr.mxu0 0.0
        %415 = vmatpush1.msra.mxu0 0.0
        %416 = vmatprep.subr.mxu0 0.0
        %v417 = vand.u32 %v313, 4294901760
        %418 = vmatpush1.msra.mxu0 %v417
        %419 = vmatprep.subr.mxu0 0.0
        %v420 = vand.u32 %v312, 4294901760
        %421 = vmatpush1.msra.mxu0 %v420
        %422 = vmatprep.subr.mxu0 0.0
        %v423 = vand.u32 %v311, 4294901760
        %424 = vmatpush1.msra.mxu0 %v423
        %425 = vmatprep.subr.mxu0 0.0
        %426 = vmatpush2.msra.mxu0 0.0
        %427 = vmatprep.subr.mxu0 0.0
        %428 = vmatpush2.msra.mxu0 0.0
        %429 = vmatprep.subr.mxu0 0.0
        %430 = vmatpush2.msra.mxu0 0.0
        %431 = vmatprep.subr.mxu0 0.0
        %432 = vmatpush2.msra.mxu0 0.0
        %433 = vmatprep.subr.mxu0 0.0
        %434 = vmatpush2.msra.mxu0 0.0
        %435 = vmatprep.subr.mxu0 0.0
        %436 = vmatpush2.msra.mxu0 0.0
        %437 = vmatprep.subr.mxu0 0.0
        %438 = vmatpush2.msra.mxu0 0.0
        %439 = vmatprep.subr.mxu0 0.0
        %440 = vmatpush2.msra.mxu0 0.0
        %441 = vmatprep.subr.mxu0 0.0
        %442 = vmatpush2.msra.mxu0 0.0
        %443 = vmatprep.subr.mxu0 0.0
        %444 = vmatpush2.msra.mxu0 0.0
        %445 = vmatprep.subr.mxu0 0.0
        %446 = vmatpush2.msra.mxu0 0.0
        %447 = vmatprep.subr.mxu0 0.0
        %448 = vmatpush2.msra.mxu0 0.0
        %449 = vmatprep.subr.mxu0 0.0
        %450 = vmatpush2.msra.mxu0 0.0
        %451 = vmatprep.subr.mxu0 0.0
        %452 = vmatpush2.msra.mxu0 0.0
        %453 = vmatprep.subr.mxu0 0.0
        %454 = vmatpush2.msra.mxu0 0.0
        %455 = vmatprep.subr.mxu0 0.0
        %456 = vmatpush2.msra.mxu0 0.0
        %457 = vmatprep.mubr.f32.mxu0 0.0
        %v458 = vand.u32 %v328, 4294901760
        %v459 = vsub.f32 %v328, %v458
        %v460 = vand.u32 %v459, 4294901760
        %v461 = vsub.f32 %v459, %v460
        %v462 = vand.u32 %v461, 4294901760
        %463 = vmatmul.mubr.f32.gmra.mxu0 %v462
        %v464 = vpop.f32.mrf.mxu0
        %v465 = vadd.f32 0.0, %v464
        %v466 = vpop.f32.mrf.mxu0
        %467 = vmatprep.mubr.f32.mxu0 0.0
        %v468 = vand.u32 %v331, 4294901760
        %v469 = vsub.f32 %v331, %v468
        %v470 = vand.u32 %v469, 4294901760
        %v471 = vsub.f32 %v469, %v470
        %v472 = vand.u32 %v471, 4294901760
        %473 = vmatmul.mubr.f32.gmra.mxu0 %v472
        %v474 = vpop.f32.mrf.mxu0
        %v475 = vadd.f32 0.0, %v474
        %v476 = vpop.f32.mrf.mxu0
        %477 = vmatprep.mubr.f32.mxu0 0.0
        %v478 = vand.u32 %v334, 4294901760
        %v479 = vsub.f32 %v334, %v478
        %v480 = vand.u32 %v479, 4294901760
        %v481 = vsub.f32 %v479, %v480
        %v482 = vand.u32 %v481, 4294901760
        %483 = vmatmul.mubr.f32.gmra.mxu0 %v482
        %v484 = vpop.f32.mrf.mxu0
        %v485 = vadd.f32 0.0, %v484
        %v486 = vpop.f32.mrf.mxu0
        %487 = vmatprep.mubr.f32.mxu0 0.0
        %v488 = vand.u32 %v337, 4294901760
        %v489 = vsub.f32 %v337, %v488
        %v490 = vand.u32 %v489, 4294901760
        %v491 = vsub.f32 %v489, %v490
        %v492 = vand.u32 %v491, 4294901760
        %493 = vmatmul.mubr.f32.gmra.mxu0 %v492
        %v494 = vpop.f32.mrf.mxu0
        %v495 = vadd.f32 0.0, %v494
        %v496 = vpop.f32.mrf.mxu0
        %497 = vmatprep.mubr.f32.mxu0 0.0
        %v498 = vand.u32 %v340, 4294901760
        %v499 = vsub.f32 %v340, %v498
        %v500 = vand.u32 %v499, 4294901760
        %v501 = vsub.f32 %v499, %v500
        %v502 = vand.u32 %v501, 4294901760
        %503 = vmatmul.mubr.f32.gmra.mxu0 %v502
        %v504 = vpop.f32.mrf.mxu0
        %v505 = vadd.f32 0.0, %v504
        %v506 = vpop.f32.mrf.mxu0
        %507 = vmatprep.mubr.f32.mxu0 0.0
        %v508 = vand.u32 %v343, 4294901760
        %v509 = vsub.f32 %v343, %v508
        %v510 = vand.u32 %v509, 4294901760
        %v511 = vsub.f32 %v509, %v510
        %v512 = vand.u32 %v511, 4294901760
        %513 = vmatmul.mubr.f32.gmra.mxu0 %v512
        %v514 = vpop.f32.mrf.mxu0
        %v515 = vadd.f32 0.0, %v514
        %v516 = vpop.f32.mrf.mxu0
        %517 = vmatprep.mubr.f32.mxu0 0.0
        %v518 = vand.u32 %v346, 4294901760
        %v519 = vsub.f32 %v346, %v518
        %v520 = vand.u32 %v519, 4294901760
        %v521 = vsub.f32 %v519, %v520
        %v522 = vand.u32 %v521, 4294901760
        %523 = vmatmul.mubr.f32.gmra.mxu0 %v522
        %v524 = vpop.f32.mrf.mxu0
        %v525 = vadd.f32 0.0, %v524
        %v526 = vpop.f32.mrf.mxu0
        %527 = vmatprep.mubr.f32.mxu0 0.0
        %v528 = vand.u32 %v349, 4294901760
        %v529 = vsub.f32 %v349, %v528
        %v530 = vand.u32 %v529, 4294901760
        %v531 = vsub.f32 %v529, %v530
        %v532 = vand.u32 %v531, 4294901760
        %533 = vmatmul.mubr.f32.gmra.mxu0 %v532
        %v534 = vpop.f32.mrf.mxu0
        %v535 = vadd.f32 0.0, %v534
        %v536 = vpop.f32.mrf.mxu0
        %537 = vmatprep.mubr.f32.mxu0 0.0
        %v538 = vand.u32 %v352, 4294901760
        %v539 = vsub.f32 %v352, %v538
        %v540 = vand.u32 %v539, 4294901760
        %v541 = vsub.f32 %v539, %v540
        %v542 = vand.u32 %v541, 4294901760
        %543 = vmatmul.mubr.f32.gmra.mxu0 %v542
        %v544 = vpop.f32.mrf.mxu0
        %v545 = vadd.f32 0.0, %v544
        %v546 = vpop.f32.mrf.mxu0
        %547 = vmatprep.mubr.f32.mxu0 0.0
        %v548 = vand.u32 %v355, 4294901760
        %v549 = vsub.f32 %v355, %v548
        %v550 = vand.u32 %v549, 4294901760
        %v551 = vsub.f32 %v549, %v550
        %v552 = vand.u32 %v551, 4294901760
        %553 = vmatmul.mubr.f32.gmra.mxu0 %v552
        %v554 = vpop.f32.mrf.mxu0
        %v555 = vadd.f32 0.0, %v554
        %v556 = vpop.f32.mrf.mxu0
        %557 = vmatprep.mubr.f32.mxu0 0.0
        %v558 = vand.u32 %v358, 4294901760
        %v559 = vsub.f32 %v358, %v558
        %v560 = vand.u32 %v559, 4294901760
        %v561 = vsub.f32 %v559, %v560
        %v562 = vand.u32 %v561, 4294901760
        %563 = vmatmul.mubr.f32.gmra.mxu0 %v562
        %v564 = vpop.f32.mrf.mxu0
        %v565 = vadd.f32 0.0, %v564
        %v566 = vpop.f32.mrf.mxu0
        %567 = vmatprep.mubr.f32.mxu0 0.0
        %v568 = vand.u32 %v361, 4294901760
        %v569 = vsub.f32 %v361, %v568
        %v570 = vand.u32 %v569, 4294901760
        %v571 = vsub.f32 %v569, %v570
        %v572 = vand.u32 %v571, 4294901760
        %573 = vmatmul.mubr.f32.gmra.mxu0 %v572
        %v574 = vpop.f32.mrf.mxu0
        %v575 = vadd.f32 0.0, %v574
        %v576 = vpop.f32.mrf.mxu0
        %577 = vmatprep.mubr.f32.mxu0 0.0
        %v578 = vand.u32 %v364, 4294901760
        %v579 = vsub.f32 %v364, %v578
        %v580 = vand.u32 %v579, 4294901760
        %v581 = vsub.f32 %v579, %v580
        %v582 = vand.u32 %v581, 4294901760
        %583 = vmatmul.mubr.f32.gmra.mxu0 %v582
        %v584 = vpop.f32.mrf.mxu0
        %v585 = vadd.f32 0.0, %v584
        %v586 = vpop.f32.mrf.mxu0
        %587 = vmatprep.mubr.f32.mxu0 0.0
        %v588 = vand.u32 %v367, 4294901760
        %v589 = vsub.f32 %v367, %v588
        %v590 = vand.u32 %v589, 4294901760
        %v591 = vsub.f32 %v589, %v590
        %v592 = vand.u32 %v591, 4294901760
        %593 = vmatmul.mubr.f32.gmra.mxu0 %v592
        %v594 = vpop.f32.mrf.mxu0
        %v595 = vadd.f32 0.0, %v594
        %v596 = vpop.f32.mrf.mxu0
        %597 = vmatprep.mubr.f32.mxu0 0.0
        %v598 = vand.u32 %v370, 4294901760
        %v599 = vsub.f32 %v370, %v598
        %v600 = vand.u32 %v599, 4294901760
        %v601 = vsub.f32 %v599, %v600
        %v602 = vand.u32 %v601, 4294901760
        %603 = vmatmul.mubr.f32.gmra.mxu0 %v602
        %v604 = vpop.f32.mrf.mxu0
        %v605 = vadd.f32 0.0, %v604
        %v606 = vpop.f32.mrf.mxu0
        %607 = vmatprep.mubr.f32.mxu0 0.0
        %v608 = vand.u32 %v373, 4294901760
        %v609 = vsub.f32 %v373, %v608
        %v610 = vand.u32 %v609, 4294901760
        %v611 = vsub.f32 %v609, %v610
        %v612 = vand.u32 %v611, 4294901760
        %613 = vmatmul.mubr.f32.gmra.mxu0 %v612
        %v614 = vpop.f32.mrf.mxu0
        %v615 = vadd.f32 0.0, %v614
        %v616 = vpop.f32.mrf.mxu0
        %617 = vmatprep.mubr.f32.mxu0 0.0
        %v618 = vand.u32 %v376, 4294901760
        %v619 = vsub.f32 %v376, %v618
        %v620 = vand.u32 %v619, 4294901760
        %v621 = vsub.f32 %v619, %v620
        %v622 = vand.u32 %v621, 4294901760
        %623 = vmatmul.mubr.f32.gmra.mxu0 %v622
        %v624 = vpop.f32.mrf.mxu0
        %v625 = vadd.f32 0.0, %v624
        %v626 = vpop.f32.mrf.mxu0
        %627 = vmatprep.mubr.f32.mxu0 0.0
        %v628 = vand.u32 %v379, 4294901760
        %v629 = vsub.f32 %v379, %v628
        %v630 = vand.u32 %v629, 4294901760
        %v631 = vsub.f32 %v629, %v630
        %v632 = vand.u32 %v631, 4294901760
        %633 = vmatmul.mubr.f32.gmra.mxu0 %v632
        %v634 = vpop.f32.mrf.mxu0
        %v635 = vadd.f32 0.0, %v634
        %v636 = vpop.f32.mrf.mxu0
        %637 = vmatprep.mubr.f32.mxu0 0.0
        %v638 = vand.u32 %v382, 4294901760
        %v639 = vsub.f32 %v382, %v638
        %v640 = vand.u32 %v639, 4294901760
        %v641 = vsub.f32 %v639, %v640
        %v642 = vand.u32 %v641, 4294901760
        %643 = vmatmul.mubr.f32.gmra.mxu0 %v642
        %v644 = vpop.f32.mrf.mxu0
        %v645 = vadd.f32 0.0, %v644
        %v646 = vpop.f32.mrf.mxu0
        %647 = vmatprep.mubr.f32.mxu0 0.0
        %v648 = vand.u32 %v385, 4294901760
        %v649 = vsub.f32 %v385, %v648
        %v650 = vand.u32 %v649, 4294901760
        %v651 = vsub.f32 %v649, %v650
        %v652 = vand.u32 %v651, 4294901760
        %653 = vmatmul.mubr.f32.gmra.mxu0 %v652
        %v654 = vpop.f32.mrf.mxu0
        %v655 = vadd.f32 0.0, %v654
        %v656 = vpop.f32.mrf.mxu0
        %657 = vmatprep.mubr.f32.mxu0 0.0
        %v658 = vand.u32 %v388, 4294901760
        %v659 = vsub.f32 %v388, %v658
        %v660 = vand.u32 %v659, 4294901760
        %v661 = vsub.f32 %v659, %v660
        %v662 = vand.u32 %v661, 4294901760
        %663 = vmatmul.mubr.f32.gmra.mxu0 %v662
        %v664 = vpop.f32.mrf.mxu0
        %v665 = vadd.f32 0.0, %v664
        %v666 = vpop.f32.mrf.mxu0
        %667 = vdwg.mxu0
        %668 = vmatprep.subr.mxu0 0.0
        %669 = vmatpush1.msra.mxu0 0.0
        %670 = vmatprep.subr.mxu0 0.0
        %671 = vmatpush1.msra.mxu0 0.0
        %672 = vmatprep.subr.mxu0 0.0
        %673 = vmatpush1.msra.mxu0 0.0
        %674 = vmatprep.subr.mxu0 0.0
        %675 = vmatpush1.msra.mxu0 0.0
        %676 = vmatprep.subr.mxu0 0.0
        %677 = vmatpush1.msra.mxu0 0.0
        %678 = vmatprep.subr.mxu0 0.0
        %679 = vmatpush1.msra.mxu0 0.0
        %680 = vmatprep.subr.mxu0 0.0
        %681 = vmatpush1.msra.mxu0 0.0
        %682 = vmatprep.subr.mxu0 0.0
        %683 = vmatpush1.msra.mxu0 0.0
        %684 = vmatprep.subr.mxu0 0.0
        %685 = vmatpush1.msra.mxu0 0.0
        %686 = vmatprep.subr.mxu0 0.0
        %687 = vmatpush1.msra.mxu0 0.0
        %688 = vmatprep.subr.mxu0 0.0
        %689 = vmatpush1.msra.mxu0 0.0
        %690 = vmatprep.subr.mxu0 0.0
        %691 = vmatpush1.msra.mxu0 0.0
        %692 = vmatprep.subr.mxu0 0.0
        %693 = vmatpush1.msra.mxu0 0.0
        %694 = vmatprep.subr.mxu0 0.0
        %v695 = vand.u32 %v313, 4294901760
        %v696 = vsub.f32 %v313, %v695
        %v697 = vand.u32 %v696, 4294901760
        %v698 = vsub.f32 %v696, %v697
        %v699 = vand.u32 %v698, 4294901760
        %700 = vmatpush1.msra.mxu0 %v699
        %701 = vmatprep.subr.mxu0 0.0
        %v702 = vand.u32 %v312, 4294901760
        %v703 = vsub.f32 %v312, %v702
        %v704 = vand.u32 %v703, 4294901760
        %v705 = vsub.f32 %v703, %v704
        %v706 = vand.u32 %v705, 4294901760
        %707 = vmatpush1.msra.mxu0 %v706
        %708 = vmatprep.subr.mxu0 0.0
        %v709 = vand.u32 %v311, 4294901760
        %v710 = vsub.f32 %v311, %v709
        %v711 = vand.u32 %v710, 4294901760
        %v712 = vsub.f32 %v710, %v711
        %v713 = vand.u32 %v712, 4294901760
        %714 = vmatpush1.msra.mxu0 %v713
        %715 = vmatprep.subr.mxu0 0.0
        %716 = vmatpush2.msra.mxu0 0.0
        %717 = vmatprep.subr.mxu0 0.0
        %718 = vmatpush2.msra.mxu0 0.0
        %719 = vmatprep.subr.mxu0 0.0
        %720 = vmatpush2.msra.mxu0 0.0
        %721 = vmatprep.subr.mxu0 0.0
        %722 = vmatpush2.msra.mxu0 0.0
        %723 = vmatprep.subr.mxu0 0.0
        %724 = vmatpush2.msra.mxu0 0.0
        %725 = vmatprep.subr.mxu0 0.0
        %726 = vmatpush2.msra.mxu0 0.0
        %727 = vmatprep.subr.mxu0 0.0
        %728 = vmatpush2.msra.mxu0 0.0
        %729 = vmatprep.subr.mxu0 0.0
        %730 = vmatpush2.msra.mxu0 0.0
        %731 = vmatprep.subr.mxu0 0.0
        %732 = vmatpush2.msra.mxu0 0.0
        %733 = vmatprep.subr.mxu0 0.0
        %734 = vmatpush2.msra.mxu0 0.0
        %735 = vmatprep.subr.mxu0 0.0
        %736 = vmatpush2.msra.mxu0 0.0
        %737 = vmatprep.subr.mxu0 0.0
        %738 = vmatpush2.msra.mxu0 0.0
        %739 = vmatprep.subr.mxu0 0.0
        %740 = vmatpush2.msra.mxu0 0.0
        %741 = vmatprep.subr.mxu0 0.0
        %742 = vmatpush2.msra.mxu0 0.0
        %743 = vmatprep.subr.mxu0 0.0
        %744 = vmatpush2.msra.mxu0 0.0
        %745 = vmatprep.subr.mxu0 0.0
        %746 = vmatpush2.msra.mxu0 0.0
        %747 = vmatprep.mubr.f32.mxu0 0.0
        %v748 = vand.u32 %v328, 4294901760
        %749 = vmatmul.mubr.f32.gmra.mxu0 %v748
        %v750 = vpop.f32.mrf.mxu0
        %v751 = vadd.f32 %v465, %v750
        %v752 = vpop.f32.mrf.mxu0
        %753 = vmatprep.mubr.f32.mxu0 0.0
        %v754 = vand.u32 %v331, 4294901760
        %755 = vmatmul.mubr.f32.gmra.mxu0 %v754
        %v756 = vpop.f32.mrf.mxu0
        %v757 = vadd.f32 %v475, %v756
        %v758 = vpop.f32.mrf.mxu0
        %759 = vmatprep.mubr.f32.mxu0 0.0
        %v760 = vand.u32 %v334, 4294901760
        %761 = vmatmul.mubr.f32.gmra.mxu0 %v760
        %v762 = vpop.f32.mrf.mxu0
        %v763 = vadd.f32 %v485, %v762
        %v764 = vpop.f32.mrf.mxu0
        %765 = vmatprep.mubr.f32.mxu0 0.0
        %v766 = vand.u32 %v337, 4294901760
        %767 = vmatmul.mubr.f32.gmra.mxu0 %v766
        %v768 = vpop.f32.mrf.mxu0
        %v769 = vadd.f32 %v495, %v768
        %v770 = vpop.f32.mrf.mxu0
        %771 = vmatprep.mubr.f32.mxu0 0.0
        %v772 = vand.u32 %v340, 4294901760
        %773 = vmatmul.mubr.f32.gmra.mxu0 %v772
        %v774 = vpop.f32.mrf.mxu0
        %v775 = vadd.f32 %v505, %v774
        %v776 = vpop.f32.mrf.mxu0
        %777 = vmatprep.mubr.f32.mxu0 0.0
        %v778 = vand.u32 %v343, 4294901760
        %779 = vmatmul.mubr.f32.gmra.mxu0 %v778
        %v780 = vpop.f32.mrf.mxu0
        %v781 = vadd.f32 %v515, %v780
        %v782 = vpop.f32.mrf.mxu0
        %783 = vmatprep.mubr.f32.mxu0 0.0
        %v784 = vand.u32 %v346, 4294901760
        %785 = vmatmul.mubr.f32.gmra.mxu0 %v784
        %v786 = vpop.f32.mrf.mxu0
        %v787 = vadd.f32 %v525, %v786
        %v788 = vpop.f32.mrf.mxu0
        %789 = vmatprep.mubr.f32.mxu0 0.0
        %v790 = vand.u32 %v349, 4294901760
        %791 = vmatmul.mubr.f32.gmra.mxu0 %v790
        %v792 = vpop.f32.mrf.mxu0
        %v793 = vadd.f32 %v535, %v792
        %v794 = vpop.f32.mrf.mxu0
        %795 = vmatprep.mubr.f32.mxu0 0.0
        %v796 = vand.u32 %v352, 4294901760
        %797 = vmatmul.mubr.f32.gmra.mxu0 %v796
        %v798 = vpop.f32.mrf.mxu0
        %v799 = vadd.f32 %v545, %v798
        %v800 = vpop.f32.mrf.mxu0
        %801 = vmatprep.mubr.f32.mxu0 0.0
        %v802 = vand.u32 %v355, 4294901760
        %803 = vmatmul.mubr.f32.gmra.mxu0 %v802
        %v804 = vpop.f32.mrf.mxu0
        %v805 = vadd.f32 %v555, %v804
        %v806 = vpop.f32.mrf.mxu0
        %807 = vmatprep.mubr.f32.mxu0 0.0
        %v808 = vand.u32 %v358, 4294901760
        %809 = vmatmul.mubr.f32.gmra.mxu0 %v808
        %v810 = vpop.f32.mrf.mxu0
        %v811 = vadd.f32 %v565, %v810
        %v812 = vpop.f32.mrf.mxu0
        %813 = vmatprep.mubr.f32.mxu0 0.0
        %v814 = vand.u32 %v361, 4294901760
        %815 = vmatmul.mubr.f32.gmra.mxu0 %v814
        %v816 = vpop.f32.mrf.mxu0
        %v817 = vadd.f32 %v575, %v816
        %v818 = vpop.f32.mrf.mxu0
        %819 = vmatprep.mubr.f32.mxu0 0.0
        %v820 = vand.u32 %v364, 4294901760
        %821 = vmatmul.mubr.f32.gmra.mxu0 %v820
        %v822 = vpop.f32.mrf.mxu0
        %v823 = vadd.f32 %v585, %v822
        %v824 = vpop.f32.mrf.mxu0
        %825 = vmatprep.mubr.f32.mxu0 0.0
        %v826 = vand.u32 %v367, 4294901760
        %827 = vmatmul.mubr.f32.gmra.mxu0 %v826
        %v828 = vpop.f32.mrf.mxu0
        %v829 = vadd.f32 %v595, %v828
        %v830 = vpop.f32.mrf.mxu0
        %831 = vmatprep.mubr.f32.mxu0 0.0
        %v832 = vand.u32 %v370, 4294901760
        %833 = vmatmul.mubr.f32.gmra.mxu0 %v832
        %v834 = vpop.f32.mrf.mxu0
        %v835 = vadd.f32 %v605, %v834
        %v836 = vpop.f32.mrf.mxu0
        %837 = vmatprep.mubr.f32.mxu0 0.0
        %v838 = vand.u32 %v373, 4294901760
        %839 = vmatmul.mubr.f32.gmra.mxu0 %v838
        %v840 = vpop.f32.mrf.mxu0
        %v841 = vadd.f32 %v615, %v840
        %v842 = vpop.f32.mrf.mxu0
        %843 = vmatprep.mubr.f32.mxu0 0.0
        %v844 = vand.u32 %v376, 4294901760
        %845 = vmatmul.mubr.f32.gmra.mxu0 %v844
        %v846 = vpop.f32.mrf.mxu0
        %v847 = vadd.f32 %v625, %v846
        %v848 = vpop.f32.mrf.mxu0
        %849 = vmatprep.mubr.f32.mxu0 0.0
        %v850 = vand.u32 %v379, 4294901760
        %851 = vmatmul.mubr.f32.gmra.mxu0 %v850
        %v852 = vpop.f32.mrf.mxu0
        %v853 = vadd.f32 %v635, %v852
        %v854 = vpop.f32.mrf.mxu0
        %855 = vmatprep.mubr.f32.mxu0 0.0
        %v856 = vand.u32 %v382, 4294901760
        %857 = vmatmul.mubr.f32.gmra.mxu0 %v856
        %v858 = vpop.f32.mrf.mxu0
        %v859 = vadd.f32 %v645, %v858
        %v860 = vpop.f32.mrf.mxu0
        %861 = vmatprep.mubr.f32.mxu0 0.0
        %v862 = vand.u32 %v385, 4294901760
        %863 = vmatmul.mubr.f32.gmra.mxu0 %v862
        %v864 = vpop.f32.mrf.mxu0
        %v865 = vadd.f32 %v655, %v864
        %v866 = vpop.f32.mrf.mxu0
        %867 = vmatprep.mubr.f32.mxu0 0.0
        %v868 = vand.u32 %v388, 4294901760
        %869 = vmatmul.mubr.f32.gmra.mxu0 %v868
        %v870 = vpop.f32.mrf.mxu0
        %v871 = vadd.f32 %v665, %v870
        %v872 = vpop.f32.mrf.mxu0
        %873 = vdwg.mxu0
        %874 = vmatprep.subr.mxu0 0.0
        %875 = vmatpush1.msra.mxu0 0.0
        %876 = vmatprep.subr.mxu0 0.0
        %877 = vmatpush1.msra.mxu0 0.0
        %878 = vmatprep.subr.mxu0 0.0
        %879 = vmatpush1.msra.mxu0 0.0
        %880 = vmatprep.subr.mxu0 0.0
        %881 = vmatpush1.msra.mxu0 0.0
        %882 = vmatprep.subr.mxu0 0.0
        %883 = vmatpush1.msra.mxu0 0.0
        %884 = vmatprep.subr.mxu0 0.0
        %885 = vmatpush1.msra.mxu0 0.0
        %886 = vmatprep.subr.mxu0 0.0
        %887 = vmatpush1.msra.mxu0 0.0
        %888 = vmatprep.subr.mxu0 0.0
        %889 = vmatpush1.msra.mxu0 0.0
        %890 = vmatprep.subr.mxu0 0.0
        %891 = vmatpush1.msra.mxu0 0.0
        %892 = vmatprep.subr.mxu0 0.0
        %893 = vmatpush1.msra.mxu0 0.0
        %894 = vmatprep.subr.mxu0 0.0
        %895 = vmatpush1.msra.mxu0 0.0
        %896 = vmatprep.subr.mxu0 0.0
        %897 = vmatpush1.msra.mxu0 0.0
        %898 = vmatprep.subr.mxu0 0.0
        %899 = vmatpush1.msra.mxu0 0.0
        %900 = vmatprep.subr.mxu0 0.0
        %v901 = vand.u32 %v313, 4294901760
        %v902 = vsub.f32 %v313, %v901
        %903 = vmatpush1.msra.mxu0 %v902
        %904 = vmatprep.subr.mxu0 0.0
        %v905 = vand.u32 %v312, 4294901760
        %v906 = vsub.f32 %v312, %v905
        %907 = vmatpush1.msra.mxu0 %v906
        %908 = vmatprep.subr.mxu0 0.0
        %v909 = vand.u32 %v311, 4294901760
        %v910 = vsub.f32 %v311, %v909
        %911 = vmatpush1.msra.mxu0 %v910
        %912 = vmatprep.subr.mxu0 0.0
        %913 = vmatpush2.msra.mxu0 0.0
        %914 = vmatprep.subr.mxu0 0.0
        %915 = vmatpush2.msra.mxu0 0.0
        %916 = vmatprep.subr.mxu0 0.0
        %917 = vmatpush2.msra.mxu0 0.0
        %918 = vmatprep.subr.mxu0 0.0
        %919 = vmatpush2.msra.mxu0 0.0
        %920 = vmatprep.subr.mxu0 0.0
        %921 = vmatpush2.msra.mxu0 0.0
        %922 = vmatprep.subr.mxu0 0.0
        %923 = vmatpush2.msra.mxu0 0.0
        %924 = vmatprep.subr.mxu0 0.0
        %925 = vmatpush2.msra.mxu0 0.0
        %926 = vmatprep.subr.mxu0 0.0
        %927 = vmatpush2.msra.mxu0 0.0
        %928 = vmatprep.subr.mxu0 0.0
        %929 = vmatpush2.msra.mxu0 0.0
        %930 = vmatprep.subr.mxu0 0.0
        %931 = vmatpush2.msra.mxu0 0.0
        %932 = vmatprep.subr.mxu0 0.0
        %933 = vmatpush2.msra.mxu0 0.0
        %934 = vmatprep.subr.mxu0 0.0
        %935 = vmatpush2.msra.mxu0 0.0
        %936 = vmatprep.subr.mxu0 0.0
        %937 = vmatpush2.msra.mxu0 0.0
        %938 = vmatprep.subr.mxu0 0.0
        %939 = vmatpush2.msra.mxu0 0.0
        %940 = vmatprep.subr.mxu0 0.0
        %941 = vmatpush2.msra.mxu0 0.0
        %942 = vmatprep.subr.mxu0 0.0
        %943 = vmatpush2.msra.mxu0 0.0
        %944 = vmatprep.mubr.f32.mxu0 0.0
        %v945 = vand.u32 %v328, 4294901760
        %v946 = vsub.f32 %v328, %v945
        %947 = vmatmul.mubr.f32.gmra.mxu0 %v946
        %v948 = vpop.f32.mrf.mxu0
        %v949 = vadd.f32 %v751, %v948
        %v950 = vpop.f32.mrf.mxu0
        %951 = vmatprep.mubr.f32.mxu0 0.0
        %v952 = vand.u32 %v331, 4294901760
        %v953 = vsub.f32 %v331, %v952
        %954 = vmatmul.mubr.f32.gmra.mxu0 %v953
        %v955 = vpop.f32.mrf.mxu0
        %v956 = vadd.f32 %v757, %v955
        %v957 = vpop.f32.mrf.mxu0
        %958 = vmatprep.mubr.f32.mxu0 0.0
        %v959 = vand.u32 %v334, 4294901760
        %v960 = vsub.f32 %v334, %v959
        %961 = vmatmul.mubr.f32.gmra.mxu0 %v960
        %v962 = vpop.f32.mrf.mxu0
        %v963 = vadd.f32 %v763, %v962
        %v964 = vpop.f32.mrf.mxu0
        %965 = vmatprep.mubr.f32.mxu0 0.0
        %v966 = vand.u32 %v337, 4294901760
        %v967 = vsub.f32 %v337, %v966
        %968 = vmatmul.mubr.f32.gmra.mxu0 %v967
        %v969 = vpop.f32.mrf.mxu0
        %v970 = vadd.f32 %v769, %v969
        %v971 = vpop.f32.mrf.mxu0
        %972 = vmatprep.mubr.f32.mxu0 0.0
        %v973 = vand.u32 %v340, 4294901760
        %v974 = vsub.f32 %v340, %v973
        %975 = vmatmul.mubr.f32.gmra.mxu0 %v974
        %v976 = vpop.f32.mrf.mxu0
        %v977 = vadd.f32 %v775, %v976
        %v978 = vpop.f32.mrf.mxu0
        %979 = vmatprep.mubr.f32.mxu0 0.0
        %v980 = vand.u32 %v343, 4294901760
        %v981 = vsub.f32 %v343, %v980
        %982 = vmatmul.mubr.f32.gmra.mxu0 %v981
        %v983 = vpop.f32.mrf.mxu0
        %v984 = vadd.f32 %v781, %v983
        %v985 = vpop.f32.mrf.mxu0
        %986 = vmatprep.mubr.f32.mxu0 0.0
        %v987 = vand.u32 %v346, 4294901760
        %v988 = vsub.f32 %v346, %v987
        %989 = vmatmul.mubr.f32.gmra.mxu0 %v988
        %v990 = vpop.f32.mrf.mxu0
        %v991 = vadd.f32 %v787, %v990
        %v992 = vpop.f32.mrf.mxu0
        %993 = vmatprep.mubr.f32.mxu0 0.0
        %v994 = vand.u32 %v349, 4294901760
        %v995 = vsub.f32 %v349, %v994
        %996 = vmatmul.mubr.f32.gmra.mxu0 %v995
        %v997 = vpop.f32.mrf.mxu0
        %v998 = vadd.f32 %v793, %v997
        %v999 = vpop.f32.mrf.mxu0
        %1000 = vmatprep.mubr.f32.mxu0 0.0
        %v1001 = vand.u32 %v352, 4294901760
        %v1002 = vsub.f32 %v352, %v1001
        %1003 = vmatmul.mubr.f32.gmra.mxu0 %v1002
        %v1004 = vpop.f32.mrf.mxu0
        %v1005 = vadd.f32 %v799, %v1004
        %v1006 = vpop.f32.mrf.mxu0
        %1007 = vmatprep.mubr.f32.mxu0 0.0
        %v1008 = vand.u32 %v355, 4294901760
        %v1009 = vsub.f32 %v355, %v1008
        %1010 = vmatmul.mubr.f32.gmra.mxu0 %v1009
        %v1011 = vpop.f32.mrf.mxu0
        %v1012 = vadd.f32 %v805, %v1011
        %v1013 = vpop.f32.mrf.mxu0
        %1014 = vmatprep.mubr.f32.mxu0 0.0
        %v1015 = vand.u32 %v358, 4294901760
        %v1016 = vsub.f32 %v358, %v1015
        %1017 = vmatmul.mubr.f32.gmra.mxu0 %v1016
        %v1018 = vpop.f32.mrf.mxu0
        %v1019 = vadd.f32 %v811, %v1018
        %v1020 = vpop.f32.mrf.mxu0
        %1021 = vmatprep.mubr.f32.mxu0 0.0
        %v1022 = vand.u32 %v361, 4294901760
        %v1023 = vsub.f32 %v361, %v1022
        %1024 = vmatmul.mubr.f32.gmra.mxu0 %v1023
        %v1025 = vpop.f32.mrf.mxu0
        %v1026 = vadd.f32 %v817, %v1025
        %v1027 = vpop.f32.mrf.mxu0
        %1028 = vmatprep.mubr.f32.mxu0 0.0
        %v1029 = vand.u32 %v364, 4294901760
        %v1030 = vsub.f32 %v364, %v1029
        %1031 = vmatmul.mubr.f32.gmra.mxu0 %v1030
        %v1032 = vpop.f32.mrf.mxu0
        %v1033 = vadd.f32 %v823, %v1032
        %v1034 = vpop.f32.mrf.mxu0
        %1035 = vmatprep.mubr.f32.mxu0 0.0
        %v1036 = vand.u32 %v367, 4294901760
        %v1037 = vsub.f32 %v367, %v1036
        %1038 = vmatmul.mubr.f32.gmra.mxu0 %v1037
        %v1039 = vpop.f32.mrf.mxu0
        %v1040 = vadd.f32 %v829, %v1039
        %v1041 = vpop.f32.mrf.mxu0
        %1042 = vmatprep.mubr.f32.mxu0 0.0
        %v1043 = vand.u32 %v370, 4294901760
        %v1044 = vsub.f32 %v370, %v1043
        %1045 = vmatmul.mubr.f32.gmra.mxu0 %v1044
        %v1046 = vpop.f32.mrf.mxu0
        %v1047 = vadd.f32 %v835, %v1046
        %v1048 = vpop.f32.mrf.mxu0
        %1049 = vmatprep.mubr.f32.mxu0 0.0
        %v1050 = vand.u32 %v373, 4294901760
        %v1051 = vsub.f32 %v373, %v1050
        %1052 = vmatmul.mubr.f32.gmra.mxu0 %v1051
        %v1053 = vpop.f32.mrf.mxu0
        %v1054 = vadd.f32 %v841, %v1053
        %v1055 = vpop.f32.mrf.mxu0
        %1056 = vmatprep.mubr.f32.mxu0 0.0
        %v1057 = vand.u32 %v376, 4294901760
        %v1058 = vsub.f32 %v376, %v1057
        %1059 = vmatmul.mubr.f32.gmra.mxu0 %v1058
        %v1060 = vpop.f32.mrf.mxu0
        %v1061 = vadd.f32 %v847, %v1060
        %v1062 = vpop.f32.mrf.mxu0
        %1063 = vmatprep.mubr.f32.mxu0 0.0
        %v1064 = vand.u32 %v379, 4294901760
        %v1065 = vsub.f32 %v379, %v1064
        %1066 = vmatmul.mubr.f32.gmra.mxu0 %v1065
        %v1067 = vpop.f32.mrf.mxu0
        %v1068 = vadd.f32 %v853, %v1067
        %v1069 = vpop.f32.mrf.mxu0
        %1070 = vmatprep.mubr.f32.mxu0 0.0
        %v1071 = vand.u32 %v382, 4294901760
        %v1072 = vsub.f32 %v382, %v1071
        %1073 = vmatmul.mubr.f32.gmra.mxu0 %v1072
        %v1074 = vpop.f32.mrf.mxu0
        %v1075 = vadd.f32 %v859, %v1074
        %v1076 = vpop.f32.mrf.mxu0
        %1077 = vmatprep.mubr.f32.mxu0 0.0
        %v1078 = vand.u32 %v385, 4294901760
        %v1079 = vsub.f32 %v385, %v1078
        %1080 = vmatmul.mubr.f32.gmra.mxu0 %v1079
        %v1081 = vpop.f32.mrf.mxu0
        %v1082 = vadd.f32 %v865, %v1081
        %v1083 = vpop.f32.mrf.mxu0
        %1084 = vmatprep.mubr.f32.mxu0 0.0
        %v1085 = vand.u32 %v388, 4294901760
        %v1086 = vsub.f32 %v388, %v1085
        %1087 = vmatmul.mubr.f32.gmra.mxu0 %v1086
        %v1088 = vpop.f32.mrf.mxu0
        %v1089 = vadd.f32 %v871, %v1088
        %v1090 = vpop.f32.mrf.mxu0
        %1091 = vdwg.mxu0
        %1092 = vmatprep.subr.mxu0 0.0
        %1093 = vmatpush1.msra.mxu0 0.0
        %1094 = vmatprep.subr.mxu0 0.0
        %1095 = vmatpush1.msra.mxu0 0.0
        %1096 = vmatprep.subr.mxu0 0.0
        %1097 = vmatpush1.msra.mxu0 0.0
        %1098 = vmatprep.subr.mxu0 0.0
        %1099 = vmatpush1.msra.mxu0 0.0
        %1100 = vmatprep.subr.mxu0 0.0
        %1101 = vmatpush1.msra.mxu0 0.0
        %1102 = vmatprep.subr.mxu0 0.0
        %1103 = vmatpush1.msra.mxu0 0.0
        %1104 = vmatprep.subr.mxu0 0.0
        %1105 = vmatpush1.msra.mxu0 0.0
        %1106 = vmatprep.subr.mxu0 0.0
        %1107 = vmatpush1.msra.mxu0 0.0
        %1108 = vmatprep.subr.mxu0 0.0
        %1109 = vmatpush1.msra.mxu0 0.0
        %1110 = vmatprep.subr.mxu0 0.0
        %1111 = vmatpush1.msra.mxu0 0.0
        %1112 = vmatprep.subr.mxu0 0.0
        %1113 = vmatpush1.msra.mxu0 0.0
        %1114 = vmatprep.subr.mxu0 0.0
        %1115 = vmatpush1.msra.mxu0 0.0
        %1116 = vmatprep.subr.mxu0 0.0
        %1117 = vmatpush1.msra.mxu0 0.0
        %1118 = vmatprep.subr.mxu0 0.0
        %v1119 = vand.u32 %v313, 4294901760
        %1120 = vmatpush1.msra.mxu0 %v1119
        %1121 = vmatprep.subr.mxu0 0.0
        %v1122 = vand.u32 %v312, 4294901760
        %1123 = vmatpush1.msra.mxu0 %v1122
        %1124 = vmatprep.subr.mxu0 0.0
        %v1125 = vand.u32 %v311, 4294901760
        %1126 = vmatpush1.msra.mxu0 %v1125
        %1127 = vmatprep.subr.mxu0 0.0
        %1128 = vmatpush2.msra.mxu0 0.0
        %1129 = vmatprep.subr.mxu0 0.0
        %1130 = vmatpush2.msra.mxu0 0.0
        %1131 = vmatprep.subr.mxu0 0.0
        %1132 = vmatpush2.msra.mxu0 0.0
        %1133 = vmatprep.subr.mxu0 0.0
        %1134 = vmatpush2.msra.mxu0 0.0
        %1135 = vmatprep.subr.mxu0 0.0
        %1136 = vmatpush2.msra.mxu0 0.0
        %1137 = vmatprep.subr.mxu0 0.0
        %1138 = vmatpush2.msra.mxu0 0.0
        %1139 = vmatprep.subr.mxu0 0.0
        %1140 = vmatpush2.msra.mxu0 0.0
        %1141 = vmatprep.subr.mxu0 0.0
        %1142 = vmatpush2.msra.mxu0 0.0
        %1143 = vmatprep.subr.mxu0 0.0
        %1144 = vmatpush2.msra.mxu0 0.0
        %1145 = vmatprep.subr.mxu0 0.0
        %1146 = vmatpush2.msra.mxu0 0.0
        %1147 = vmatprep.subr.mxu0 0.0
        %1148 = vmatpush2.msra.mxu0 0.0
        %1149 = vmatprep.subr.mxu0 0.0
        %1150 = vmatpush2.msra.mxu0 0.0
        %1151 = vmatprep.subr.mxu0 0.0
        %1152 = vmatpush2.msra.mxu0 0.0
        %1153 = vmatprep.subr.mxu0 0.0
        %1154 = vmatpush2.msra.mxu0 0.0
        %1155 = vmatprep.subr.mxu0 0.0
        %1156 = vmatpush2.msra.mxu0 0.0
        %1157 = vmatprep.subr.mxu0 0.0
        %1158 = vmatpush2.msra.mxu0 0.0
        %1159 = vmatprep.mubr.f32.mxu0 0.0
        %v1160 = vand.u32 %v328, 4294901760
        %v1161 = vsub.f32 %v328, %v1160
        %v1162 = vand.u32 %v1161, 4294901760
        %1163 = vmatmul.mubr.f32.gmra.mxu0 %v1162
        %v1164 = vpop.f32.mrf.mxu0
        %v1165 = vadd.f32 %v949, %v1164
        %v1166 = vpop.f32.mrf.mxu0
        %1167 = vmatprep.mubr.f32.mxu0 0.0
        %v1168 = vand.u32 %v331, 4294901760
        %v1169 = vsub.f32 %v331, %v1168
        %v1170 = vand.u32 %v1169, 4294901760
        %1171 = vmatmul.mubr.f32.gmra.mxu0 %v1170
        %v1172 = vpop.f32.mrf.mxu0
        %v1173 = vadd.f32 %v956, %v1172
        %v1174 = vpop.f32.mrf.mxu0
        %1175 = vmatprep.mubr.f32.mxu0 0.0
        %v1176 = vand.u32 %v334, 4294901760
        %v1177 = vsub.f32 %v334, %v1176
        %v1178 = vand.u32 %v1177, 4294901760
        %1179 = vmatmul.mubr.f32.gmra.mxu0 %v1178
        %v1180 = vpop.f32.mrf.mxu0
        %v1181 = vadd.f32 %v963, %v1180
        %v1182 = vpop.f32.mrf.mxu0
        %1183 = vmatprep.mubr.f32.mxu0 0.0
        %v1184 = vand.u32 %v337, 4294901760
        %v1185 = vsub.f32 %v337, %v1184
        %v1186 = vand.u32 %v1185, 4294901760
        %1187 = vmatmul.mubr.f32.gmra.mxu0 %v1186
        %v1188 = vpop.f32.mrf.mxu0
        %v1189 = vadd.f32 %v970, %v1188
        %v1190 = vpop.f32.mrf.mxu0
        %1191 = vmatprep.mubr.f32.mxu0 0.0
        %v1192 = vand.u32 %v340, 4294901760
        %v1193 = vsub.f32 %v340, %v1192
        %v1194 = vand.u32 %v1193, 4294901760
        %1195 = vmatmul.mubr.f32.gmra.mxu0 %v1194
        %v1196 = vpop.f32.mrf.mxu0
        %v1197 = vadd.f32 %v977, %v1196
        %v1198 = vpop.f32.mrf.mxu0
        %1199 = vmatprep.mubr.f32.mxu0 0.0
        %v1200 = vand.u32 %v343, 4294901760
        %v1201 = vsub.f32 %v343, %v1200
        %v1202 = vand.u32 %v1201, 4294901760
        %1203 = vmatmul.mubr.f32.gmra.mxu0 %v1202
        %v1204 = vpop.f32.mrf.mxu0
        %v1205 = vadd.f32 %v984, %v1204
        %v1206 = vpop.f32.mrf.mxu0
        %1207 = vmatprep.mubr.f32.mxu0 0.0
        %v1208 = vand.u32 %v346, 4294901760
        %v1209 = vsub.f32 %v346, %v1208
        %v1210 = vand.u32 %v1209, 4294901760
        %1211 = vmatmul.mubr.f32.gmra.mxu0 %v1210
        %v1212 = vpop.f32.mrf.mxu0
        %v1213 = vadd.f32 %v991, %v1212
        %v1214 = vpop.f32.mrf.mxu0
        %1215 = vmatprep.mubr.f32.mxu0 0.0
        %v1216 = vand.u32 %v349, 4294901760
        %v1217 = vsub.f32 %v349, %v1216
        %v1218 = vand.u32 %v1217, 4294901760
        %1219 = vmatmul.mubr.f32.gmra.mxu0 %v1218
        %v1220 = vpop.f32.mrf.mxu0
        %v1221 = vadd.f32 %v998, %v1220
        %v1222 = vpop.f32.mrf.mxu0
        %1223 = vmatprep.mubr.f32.mxu0 0.0
        %v1224 = vand.u32 %v352, 4294901760
        %v1225 = vsub.f32 %v352, %v1224
        %v1226 = vand.u32 %v1225, 4294901760
        %1227 = vmatmul.mubr.f32.gmra.mxu0 %v1226
        %v1228 = vpop.f32.mrf.mxu0
        %v1229 = vadd.f32 %v1005, %v1228
        %v1230 = vpop.f32.mrf.mxu0
        %1231 = vmatprep.mubr.f32.mxu0 0.0
        %v1232 = vand.u32 %v355, 4294901760
        %v1233 = vsub.f32 %v355, %v1232
        %v1234 = vand.u32 %v1233, 4294901760
        %1235 = vmatmul.mubr.f32.gmra.mxu0 %v1234
        %v1236 = vpop.f32.mrf.mxu0
        %v1237 = vadd.f32 %v1012, %v1236
        %v1238 = vpop.f32.mrf.mxu0
        %1239 = vmatprep.mubr.f32.mxu0 0.0
        %v1240 = vand.u32 %v358, 4294901760
        %v1241 = vsub.f32 %v358, %v1240
        %v1242 = vand.u32 %v1241, 4294901760
        %1243 = vmatmul.mubr.f32.gmra.mxu0 %v1242
        %v1244 = vpop.f32.mrf.mxu0
        %v1245 = vadd.f32 %v1019, %v1244
        %v1246 = vpop.f32.mrf.mxu0
        %1247 = vmatprep.mubr.f32.mxu0 0.0
        %v1248 = vand.u32 %v361, 4294901760
        %v1249 = vsub.f32 %v361, %v1248
        %v1250 = vand.u32 %v1249, 4294901760
        %1251 = vmatmul.mubr.f32.gmra.mxu0 %v1250
        %v1252 = vpop.f32.mrf.mxu0
        %v1253 = vadd.f32 %v1026, %v1252
        %v1254 = vpop.f32.mrf.mxu0
        %1255 = vmatprep.mubr.f32.mxu0 0.0
        %v1256 = vand.u32 %v364, 4294901760
        %v1257 = vsub.f32 %v364, %v1256
        %v1258 = vand.u32 %v1257, 4294901760
        %1259 = vmatmul.mubr.f32.gmra.mxu0 %v1258
        %v1260 = vpop.f32.mrf.mxu0
        %v1261 = vadd.f32 %v1033, %v1260
        %v1262 = vpop.f32.mrf.mxu0
        %1263 = vmatprep.mubr.f32.mxu0 0.0
        %v1264 = vand.u32 %v367, 4294901760
        %v1265 = vsub.f32 %v367, %v1264
        %v1266 = vand.u32 %v1265, 4294901760
        %1267 = vmatmul.mubr.f32.gmra.mxu0 %v1266
        %v1268 = vpop.f32.mrf.mxu0
        %v1269 = vadd.f32 %v1040, %v1268
        %v1270 = vpop.f32.mrf.mxu0
        %1271 = vmatprep.mubr.f32.mxu0 0.0
        %v1272 = vand.u32 %v370, 4294901760
        %v1273 = vsub.f32 %v370, %v1272
        %v1274 = vand.u32 %v1273, 4294901760
        %1275 = vmatmul.mubr.f32.gmra.mxu0 %v1274
        %v1276 = vpop.f32.mrf.mxu0
        %v1277 = vadd.f32 %v1047, %v1276
        %v1278 = vpop.f32.mrf.mxu0
        %1279 = vmatprep.mubr.f32.mxu0 0.0
        %v1280 = vand.u32 %v373, 4294901760
        %v1281 = vsub.f32 %v373, %v1280
        %v1282 = vand.u32 %v1281, 4294901760
        %1283 = vmatmul.mubr.f32.gmra.mxu0 %v1282
        %v1284 = vpop.f32.mrf.mxu0
        %v1285 = vadd.f32 %v1054, %v1284
        %v1286 = vpop.f32.mrf.mxu0
        %1287 = vmatprep.mubr.f32.mxu0 0.0
        %v1288 = vand.u32 %v376, 4294901760
        %v1289 = vsub.f32 %v376, %v1288
        %v1290 = vand.u32 %v1289, 4294901760
        %1291 = vmatmul.mubr.f32.gmra.mxu0 %v1290
        %v1292 = vpop.f32.mrf.mxu0
        %v1293 = vadd.f32 %v1061, %v1292
        %v1294 = vpop.f32.mrf.mxu0
        %1295 = vmatprep.mubr.f32.mxu0 0.0
        %v1296 = vand.u32 %v379, 4294901760
        %v1297 = vsub.f32 %v379, %v1296
        %v1298 = vand.u32 %v1297, 4294901760
        %1299 = vmatmul.mubr.f32.gmra.mxu0 %v1298
        %v1300 = vpop.f32.mrf.mxu0
        %v1301 = vadd.f32 %v1068, %v1300
        %v1302 = vpop.f32.mrf.mxu0
        %1303 = vmatprep.mubr.f32.mxu0 0.0
        %v1304 = vand.u32 %v382, 4294901760
        %v1305 = vsub.f32 %v382, %v1304
        %v1306 = vand.u32 %v1305, 4294901760
        %1307 = vmatmul.mubr.f32.gmra.mxu0 %v1306
        %v1308 = vpop.f32.mrf.mxu0
        %v1309 = vadd.f32 %v1075, %v1308
        %v1310 = vpop.f32.mrf.mxu0
        %1311 = vmatprep.mubr.f32.mxu0 0.0
        %v1312 = vand.u32 %v385, 4294901760
        %v1313 = vsub.f32 %v385, %v1312
        %v1314 = vand.u32 %v1313, 4294901760
        %1315 = vmatmul.mubr.f32.gmra.mxu0 %v1314
        %v1316 = vpop.f32.mrf.mxu0
        %v1317 = vadd.f32 %v1082, %v1316
        %v1318 = vpop.f32.mrf.mxu0
        %1319 = vmatprep.mubr.f32.mxu0 0.0
        %v1320 = vand.u32 %v388, 4294901760
        %v1321 = vsub.f32 %v388, %v1320
        %v1322 = vand.u32 %v1321, 4294901760
        %1323 = vmatmul.mubr.f32.gmra.mxu0 %v1322
        %v1324 = vpop.f32.mrf.mxu0
        %v1325 = vadd.f32 %v1089, %v1324
        %v1326 = vpop.f32.mrf.mxu0
        %1327 = vdwg.mxu0
        %1328 = vmatprep.subr.mxu0 0.0
        %1329 = vmatpush1.msra.mxu0 0.0
        %1330 = vmatprep.subr.mxu0 0.0
        %1331 = vmatpush1.msra.mxu0 0.0
        %1332 = vmatprep.subr.mxu0 0.0
        %1333 = vmatpush1.msra.mxu0 0.0
        %1334 = vmatprep.subr.mxu0 0.0
        %1335 = vmatpush1.msra.mxu0 0.0
        %1336 = vmatprep.subr.mxu0 0.0
        %1337 = vmatpush1.msra.mxu0 0.0
        %1338 = vmatprep.subr.mxu0 0.0
        %1339 = vmatpush1.msra.mxu0 0.0
        %1340 = vmatprep.subr.mxu0 0.0
        %1341 = vmatpush1.msra.mxu0 0.0
        %1342 = vmatprep.subr.mxu0 0.0
        %1343 = vmatpush1.msra.mxu0 0.0
        %1344 = vmatprep.subr.mxu0 0.0
        %1345 = vmatpush1.msra.mxu0 0.0
        %1346 = vmatprep.subr.mxu0 0.0
        %1347 = vmatpush1.msra.mxu0 0.0
        %1348 = vmatprep.subr.mxu0 0.0
        %1349 = vmatpush1.msra.mxu0 0.0
        %1350 = vmatprep.subr.mxu0 0.0
        %1351 = vmatpush1.msra.mxu0 0.0
        %1352 = vmatprep.subr.mxu0 0.0
        %1353 = vmatpush1.msra.mxu0 0.0
        %1354 = vmatprep.subr.mxu0 0.0
        %v1355 = vand.u32 %v313, 4294901760
        %v1356 = vsub.f32 %v313, %v1355
        %v1357 = vand.u32 %v1356, 4294901760
        %1358 = vmatpush1.msra.mxu0 %v1357
        %1359 = vmatprep.subr.mxu0 0.0
        %v1360 = vand.u32 %v312, 4294901760
        %v1361 = vsub.f32 %v312, %v1360
        %v1362 = vand.u32 %v1361, 4294901760
        %1363 = vmatpush1.msra.mxu0 %v1362
        %1364 = vmatprep.subr.mxu0 0.0
        %v1365 = vand.u32 %v311, 4294901760
        %v1366 = vsub.f32 %v311, %v1365
        %v1367 = vand.u32 %v1366, 4294901760
        %1368 = vmatpush1.msra.mxu0 %v1367
        %1369 = vmatprep.subr.mxu0 0.0
        %1370 = vmatpush2.msra.mxu0 0.0
        %1371 = vmatprep.subr.mxu0 0.0
        %1372 = vmatpush2.msra.mxu0 0.0
        %1373 = vmatprep.subr.mxu0 0.0
        %1374 = vmatpush2.msra.mxu0 0.0
        %1375 = vmatprep.subr.mxu0 0.0
        %1376 = vmatpush2.msra.mxu0 0.0
        %1377 = vmatprep.subr.mxu0 0.0
        %1378 = vmatpush2.msra.mxu0 0.0
        %1379 = vmatprep.subr.mxu0 0.0
        %1380 = vmatpush2.msra.mxu0 0.0
        %1381 = vmatprep.subr.mxu0 0.0
        %1382 = vmatpush2.msra.mxu0 0.0
        %1383 = vmatprep.subr.mxu0 0.0
        %1384 = vmatpush2.msra.mxu0 0.0
        %1385 = vmatprep.subr.mxu0 0.0
        %1386 = vmatpush2.msra.mxu0 0.0
        %1387 = vmatprep.subr.mxu0 0.0
        %1388 = vmatpush2.msra.mxu0 0.0
        %1389 = vmatprep.subr.mxu0 0.0
        %1390 = vmatpush2.msra.mxu0 0.0
        %1391 = vmatprep.subr.mxu0 0.0
        %1392 = vmatpush2.msra.mxu0 0.0
        %1393 = vmatprep.subr.mxu0 0.0
        %1394 = vmatpush2.msra.mxu0 0.0
        %1395 = vmatprep.subr.mxu0 0.0
        %1396 = vmatpush2.msra.mxu0 0.0
        %1397 = vmatprep.subr.mxu0 0.0
        %1398 = vmatpush2.msra.mxu0 0.0
        %1399 = vmatprep.subr.mxu0 0.0
        %1400 = vmatpush2.msra.mxu0 0.0
        %1401 = vmatprep.mubr.f32.mxu0 0.0
        %v1402 = vand.u32 %v328, 4294901760
        %1403 = vmatmul.mubr.f32.gmra.mxu0 %v1402
        %v1404 = vpop.f32.mrf.mxu0
        %v1405 = vadd.f32 %v1165, %v1404
        %v1406 = vpop.f32.mrf.mxu0
        %1407 = vmatprep.mubr.f32.mxu0 0.0
        %v1408 = vand.u32 %v331, 4294901760
        %1409 = vmatmul.mubr.f32.gmra.mxu0 %v1408
        %v1410 = vpop.f32.mrf.mxu0
        %v1411 = vadd.f32 %v1173, %v1410
        %v1412 = vpop.f32.mrf.mxu0
        %1413 = vmatprep.mubr.f32.mxu0 0.0
        %v1414 = vand.u32 %v334, 4294901760
        %1415 = vmatmul.mubr.f32.gmra.mxu0 %v1414
        %v1416 = vpop.f32.mrf.mxu0
        %v1417 = vadd.f32 %v1181, %v1416
        %v1418 = vpop.f32.mrf.mxu0
        %1419 = vmatprep.mubr.f32.mxu0 0.0
        %v1420 = vand.u32 %v337, 4294901760
        %1421 = vmatmul.mubr.f32.gmra.mxu0 %v1420
        %v1422 = vpop.f32.mrf.mxu0
        %v1423 = vadd.f32 %v1189, %v1422
        %v1424 = vpop.f32.mrf.mxu0
        %1425 = vmatprep.mubr.f32.mxu0 0.0
        %v1426 = vand.u32 %v340, 4294901760
        %1427 = vmatmul.mubr.f32.gmra.mxu0 %v1426
        %v1428 = vpop.f32.mrf.mxu0
        %v1429 = vadd.f32 %v1197, %v1428
        %v1430 = vpop.f32.mrf.mxu0
        %1431 = vmatprep.mubr.f32.mxu0 0.0
        %v1432 = vand.u32 %v343, 4294901760
        %1433 = vmatmul.mubr.f32.gmra.mxu0 %v1432
        %v1434 = vpop.f32.mrf.mxu0
        %v1435 = vadd.f32 %v1205, %v1434
        %v1436 = vpop.f32.mrf.mxu0
        %1437 = vmatprep.mubr.f32.mxu0 0.0
        %v1438 = vand.u32 %v346, 4294901760
        %1439 = vmatmul.mubr.f32.gmra.mxu0 %v1438
        %v1440 = vpop.f32.mrf.mxu0
        %v1441 = vadd.f32 %v1213, %v1440
        %v1442 = vpop.f32.mrf.mxu0
        %1443 = vmatprep.mubr.f32.mxu0 0.0
        %v1444 = vand.u32 %v349, 4294901760
        %1445 = vmatmul.mubr.f32.gmra.mxu0 %v1444
        %v1446 = vpop.f32.mrf.mxu0
        %v1447 = vadd.f32 %v1221, %v1446
        %v1448 = vpop.f32.mrf.mxu0
        %1449 = vmatprep.mubr.f32.mxu0 0.0
        %v1450 = vand.u32 %v352, 4294901760
        %1451 = vmatmul.mubr.f32.gmra.mxu0 %v1450
        %v1452 = vpop.f32.mrf.mxu0
        %v1453 = vadd.f32 %v1229, %v1452
        %v1454 = vpop.f32.mrf.mxu0
        %1455 = vmatprep.mubr.f32.mxu0 0.0
        %v1456 = vand.u32 %v355, 4294901760
        %1457 = vmatmul.mubr.f32.gmra.mxu0 %v1456
        %v1458 = vpop.f32.mrf.mxu0
        %v1459 = vadd.f32 %v1237, %v1458
        %v1460 = vpop.f32.mrf.mxu0
        %1461 = vmatprep.mubr.f32.mxu0 0.0
        %v1462 = vand.u32 %v358, 4294901760
        %1463 = vmatmul.mubr.f32.gmra.mxu0 %v1462
        %v1464 = vpop.f32.mrf.mxu0
        %v1465 = vadd.f32 %v1245, %v1464
        %v1466 = vpop.f32.mrf.mxu0
        %1467 = vmatprep.mubr.f32.mxu0 0.0
        %v1468 = vand.u32 %v361, 4294901760
        %1469 = vmatmul.mubr.f32.gmra.mxu0 %v1468
        %v1470 = vpop.f32.mrf.mxu0
        %v1471 = vadd.f32 %v1253, %v1470
        %v1472 = vpop.f32.mrf.mxu0
        %1473 = vmatprep.mubr.f32.mxu0 0.0
        %v1474 = vand.u32 %v364, 4294901760
        %1475 = vmatmul.mubr.f32.gmra.mxu0 %v1474
        %v1476 = vpop.f32.mrf.mxu0
        %v1477 = vadd.f32 %v1261, %v1476
        %v1478 = vpop.f32.mrf.mxu0
        %1479 = vmatprep.mubr.f32.mxu0 0.0
        %v1480 = vand.u32 %v367, 4294901760
        %1481 = vmatmul.mubr.f32.gmra.mxu0 %v1480
        %v1482 = vpop.f32.mrf.mxu0
        %v1483 = vadd.f32 %v1269, %v1482
        %v1484 = vpop.f32.mrf.mxu0
        %1485 = vmatprep.mubr.f32.mxu0 0.0
        %v1486 = vand.u32 %v370, 4294901760
        %1487 = vmatmul.mubr.f32.gmra.mxu0 %v1486
        %v1488 = vpop.f32.mrf.mxu0
        %v1489 = vadd.f32 %v1277, %v1488
        %v1490 = vpop.f32.mrf.mxu0
        %1491 = vmatprep.mubr.f32.mxu0 0.0
        %v1492 = vand.u32 %v373, 4294901760
        %1493 = vmatmul.mubr.f32.gmra.mxu0 %v1492
        %v1494 = vpop.f32.mrf.mxu0
        %v1495 = vadd.f32 %v1285, %v1494
        %v1496 = vpop.f32.mrf.mxu0
        %1497 = vmatprep.mubr.f32.mxu0 0.0
        %v1498 = vand.u32 %v376, 4294901760
        %1499 = vmatmul.mubr.f32.gmra.mxu0 %v1498
        %v1500 = vpop.f32.mrf.mxu0
        %v1501 = vadd.f32 %v1293, %v1500
        %v1502 = vpop.f32.mrf.mxu0
        %1503 = vmatprep.mubr.f32.mxu0 0.0
        %v1504 = vand.u32 %v379, 4294901760
        %1505 = vmatmul.mubr.f32.gmra.mxu0 %v1504
        %v1506 = vpop.f32.mrf.mxu0
        %v1507 = vadd.f32 %v1301, %v1506
        %v1508 = vpop.f32.mrf.mxu0
        %1509 = vmatprep.mubr.f32.mxu0 0.0
        %v1510 = vand.u32 %v382, 4294901760
        %1511 = vmatmul.mubr.f32.gmra.mxu0 %v1510
        %v1512 = vpop.f32.mrf.mxu0
        %v1513 = vadd.f32 %v1309, %v1512
        %v1514 = vpop.f32.mrf.mxu0
        %1515 = vmatprep.mubr.f32.mxu0 0.0
        %v1516 = vand.u32 %v385, 4294901760
        %1517 = vmatmul.mubr.f32.gmra.mxu0 %v1516
        %v1518 = vpop.f32.mrf.mxu0
        %v1519 = vadd.f32 %v1317, %v1518
        %v1520 = vpop.f32.mrf.mxu0
        %1521 = vmatprep.mubr.f32.mxu0 0.0
        %v1522 = vand.u32 %v388, 4294901760
        %1523 = vmatmul.mubr.f32.gmra.mxu0 %v1522
        %v1524 = vpop.f32.mrf.mxu0
        %v1525 = vadd.f32 %v1325, %v1524
        %v1526 = vpop.f32.mrf.mxu0
        %1527 = vdwg.mxu0
        %1528 = vmatprep.subr.mxu0 0.0
        %1529 = vmatpush1.msra.mxu0 0.0
        %1530 = vmatprep.subr.mxu0 0.0
        %1531 = vmatpush1.msra.mxu0 0.0
        %1532 = vmatprep.subr.mxu0 0.0
        %1533 = vmatpush1.msra.mxu0 0.0
        %1534 = vmatprep.subr.mxu0 0.0
        %1535 = vmatpush1.msra.mxu0 0.0
        %1536 = vmatprep.subr.mxu0 0.0
        %1537 = vmatpush1.msra.mxu0 0.0
        %1538 = vmatprep.subr.mxu0 0.0
        %1539 = vmatpush1.msra.mxu0 0.0
        %1540 = vmatprep.subr.mxu0 0.0
        %1541 = vmatpush1.msra.mxu0 0.0
        %1542 = vmatprep.subr.mxu0 0.0
        %1543 = vmatpush1.msra.mxu0 0.0
        %1544 = vmatprep.subr.mxu0 0.0
        %1545 = vmatpush1.msra.mxu0 0.0
        %1546 = vmatprep.subr.mxu0 0.0
        %1547 = vmatpush1.msra.mxu0 0.0
        %1548 = vmatprep.subr.mxu0 0.0
        %1549 = vmatpush1.msra.mxu0 0.0
        %1550 = vmatprep.subr.mxu0 0.0
        %1551 = vmatpush1.msra.mxu0 0.0
        %1552 = vmatprep.subr.mxu0 0.0
        %1553 = vmatpush1.msra.mxu0 0.0
        %1554 = vmatprep.subr.mxu0 0.0
        %v1555 = vand.u32 %v313, 4294901760
        %1556 = vmatpush1.msra.mxu0 %v1555
        %1557 = vmatprep.subr.mxu0 0.0
        %v1558 = vand.u32 %v312, 4294901760
        %1559 = vmatpush1.msra.mxu0 %v1558
        %1560 = vmatprep.subr.mxu0 0.0
        %v1561 = vand.u32 %v311, 4294901760
        %1562 = vmatpush1.msra.mxu0 %v1561
        %1563 = vmatprep.subr.mxu0 0.0
        %1564 = vmatpush2.msra.mxu0 0.0
        %1565 = vmatprep.subr.mxu0 0.0
        %1566 = vmatpush2.msra.mxu0 0.0
        %1567 = vmatprep.subr.mxu0 0.0
        %1568 = vmatpush2.msra.mxu0 0.0
        %1569 = vmatprep.subr.mxu0 0.0
        %1570 = vmatpush2.msra.mxu0 0.0
        %1571 = vmatprep.subr.mxu0 0.0
        %1572 = vmatpush2.msra.mxu0 0.0
        %1573 = vmatprep.subr.mxu0 0.0
        %1574 = vmatpush2.msra.mxu0 0.0
        %1575 = vmatprep.subr.mxu0 0.0
        %1576 = vmatpush2.msra.mxu0 0.0
        %1577 = vmatprep.subr.mxu0 0.0
        %1578 = vmatpush2.msra.mxu0 0.0
        %1579 = vmatprep.subr.mxu0 0.0
        %1580 = vmatpush2.msra.mxu0 0.0
        %1581 = vmatprep.subr.mxu0 0.0
        %1582 = vmatpush2.msra.mxu0 0.0
        %1583 = vmatprep.subr.mxu0 0.0
        %1584 = vmatpush2.msra.mxu0 0.0
        %1585 = vmatprep.subr.mxu0 0.0
        %1586 = vmatpush2.msra.mxu0 0.0
        %1587 = vmatprep.subr.mxu0 0.0
        %1588 = vmatpush2.msra.mxu0 0.0
        %1589 = vmatprep.subr.mxu0 0.0
        %1590 = vmatpush2.msra.mxu0 0.0
        %1591 = vmatprep.subr.mxu0 0.0
        %1592 = vmatpush2.msra.mxu0 0.0
        %1593 = vmatprep.subr.mxu0 0.0
        %1594 = vmatpush2.msra.mxu0 0.0
        %1595 = vmatprep.mubr.f32.mxu0 0.0
        %v1596 = vand.u32 %v328, 4294901760
        %1597 = vmatmul.mubr.f32.gmra.mxu0 %v1596
        %v1598 = vpop.f32.mrf.mxu0
        %v1599 = vadd.f32 %v1405, %v1598
        %v1600 = vpop.f32.mrf.mxu0
        %1601 = vmatprep.mubr.f32.mxu0 0.0
        %v1602 = vand.u32 %v331, 4294901760
        %1603 = vmatmul.mubr.f32.gmra.mxu0 %v1602
        %v1604 = vpop.f32.mrf.mxu0
        %v1605 = vadd.f32 %v1411, %v1604
        %v1606 = vpop.f32.mrf.mxu0
        %1607 = vmatprep.mubr.f32.mxu0 0.0
        %v1608 = vand.u32 %v334, 4294901760
        %1609 = vmatmul.mubr.f32.gmra.mxu0 %v1608
        %v1610 = vpop.f32.mrf.mxu0
        %v1611 = vadd.f32 %v1417, %v1610
        %v1612 = vpop.f32.mrf.mxu0
        %1613 = vmatprep.mubr.f32.mxu0 0.0
        %v1614 = vand.u32 %v337, 4294901760
        %1615 = vmatmul.mubr.f32.gmra.mxu0 %v1614
        %v1616 = vpop.f32.mrf.mxu0
        %v1617 = vadd.f32 %v1423, %v1616
        %v1618 = vpop.f32.mrf.mxu0
        %1619 = vmatprep.mubr.f32.mxu0 0.0
        %v1620 = vand.u32 %v340, 4294901760
        %1621 = vmatmul.mubr.f32.gmra.mxu0 %v1620
        %v1622 = vpop.f32.mrf.mxu0
        %v1623 = vadd.f32 %v1429, %v1622
        %v1624 = vpop.f32.mrf.mxu0
        %1625 = vmatprep.mubr.f32.mxu0 0.0
        %v1626 = vand.u32 %v343, 4294901760
        %1627 = vmatmul.mubr.f32.gmra.mxu0 %v1626
        %v1628 = vpop.f32.mrf.mxu0
        %v1629 = vadd.f32 %v1435, %v1628
        %v1630 = vpop.f32.mrf.mxu0
        %1631 = vmatprep.mubr.f32.mxu0 0.0
        %v1632 = vand.u32 %v346, 4294901760
        %1633 = vmatmul.mubr.f32.gmra.mxu0 %v1632
        %v1634 = vpop.f32.mrf.mxu0
        %v1635 = vadd.f32 %v1441, %v1634
        %v1636 = vpop.f32.mrf.mxu0
        %1637 = vmatprep.mubr.f32.mxu0 0.0
        %v1638 = vand.u32 %v349, 4294901760
        %1639 = vmatmul.mubr.f32.gmra.mxu0 %v1638
        %v1640 = vpop.f32.mrf.mxu0
        %v1641 = vadd.f32 %v1447, %v1640
        %v1642 = vpop.f32.mrf.mxu0
        %1643 = vmatprep.mubr.f32.mxu0 0.0
        %v1644 = vand.u32 %v352, 4294901760
        %1645 = vmatmul.mubr.f32.gmra.mxu0 %v1644
        %v1646 = vpop.f32.mrf.mxu0
        %v1647 = vadd.f32 %v1453, %v1646
        %v1648 = vpop.f32.mrf.mxu0
        %1649 = vmatprep.mubr.f32.mxu0 0.0
        %v1650 = vand.u32 %v355, 4294901760
        %1651 = vmatmul.mubr.f32.gmra.mxu0 %v1650
        %v1652 = vpop.f32.mrf.mxu0
        %v1653 = vadd.f32 %v1459, %v1652
        %v1654 = vpop.f32.mrf.mxu0
        %1655 = vmatprep.mubr.f32.mxu0 0.0
        %v1656 = vand.u32 %v358, 4294901760
        %1657 = vmatmul.mubr.f32.gmra.mxu0 %v1656
        %v1658 = vpop.f32.mrf.mxu0
        %v1659 = vadd.f32 %v1465, %v1658
        %v1660 = vpop.f32.mrf.mxu0
        %1661 = vmatprep.mubr.f32.mxu0 0.0
        %v1662 = vand.u32 %v361, 4294901760
        %1663 = vmatmul.mubr.f32.gmra.mxu0 %v1662
        %v1664 = vpop.f32.mrf.mxu0
        %v1665 = vadd.f32 %v1471, %v1664
        %v1666 = vpop.f32.mrf.mxu0
        %1667 = vmatprep.mubr.f32.mxu0 0.0
        %v1668 = vand.u32 %v364, 4294901760
        %1669 = vmatmul.mubr.f32.gmra.mxu0 %v1668
        %v1670 = vpop.f32.mrf.mxu0
        %v1671 = vadd.f32 %v1477, %v1670
        %v1672 = vpop.f32.mrf.mxu0
        %1673 = vmatprep.mubr.f32.mxu0 0.0
        %v1674 = vand.u32 %v367, 4294901760
        %1675 = vmatmul.mubr.f32.gmra.mxu0 %v1674
        %v1676 = vpop.f32.mrf.mxu0
        %v1677 = vadd.f32 %v1483, %v1676
        %v1678 = vpop.f32.mrf.mxu0
        %1679 = vmatprep.mubr.f32.mxu0 0.0
        %v1680 = vand.u32 %v370, 4294901760
        %1681 = vmatmul.mubr.f32.gmra.mxu0 %v1680
        %v1682 = vpop.f32.mrf.mxu0
        %v1683 = vadd.f32 %v1489, %v1682
        %v1684 = vpop.f32.mrf.mxu0
        %1685 = vmatprep.mubr.f32.mxu0 0.0
        %v1686 = vand.u32 %v373, 4294901760
        %1687 = vmatmul.mubr.f32.gmra.mxu0 %v1686
        %v1688 = vpop.f32.mrf.mxu0
        %v1689 = vadd.f32 %v1495, %v1688
        %v1690 = vpop.f32.mrf.mxu0
        %1691 = vmatprep.mubr.f32.mxu0 0.0
        %v1692 = vand.u32 %v376, 4294901760
        %1693 = vmatmul.mubr.f32.gmra.mxu0 %v1692
        %v1694 = vpop.f32.mrf.mxu0
        %v1695 = vadd.f32 %v1501, %v1694
        %v1696 = vpop.f32.mrf.mxu0
        %1697 = vmatprep.mubr.f32.mxu0 0.0
        %v1698 = vand.u32 %v379, 4294901760
        %1699 = vmatmul.mubr.f32.gmra.mxu0 %v1698
        %v1700 = vpop.f32.mrf.mxu0
        %v1701 = vadd.f32 %v1507, %v1700
        %v1702 = vpop.f32.mrf.mxu0
        %1703 = vmatprep.mubr.f32.mxu0 0.0
        %v1704 = vand.u32 %v382, 4294901760
        %1705 = vmatmul.mubr.f32.gmra.mxu0 %v1704
        %v1706 = vpop.f32.mrf.mxu0
        %v1707 = vadd.f32 %v1513, %v1706
        %v1708 = vpop.f32.mrf.mxu0
        %1709 = vmatprep.mubr.f32.mxu0 0.0
        %v1710 = vand.u32 %v385, 4294901760
        %1711 = vmatmul.mubr.f32.gmra.mxu0 %v1710
        %v1712 = vpop.f32.mrf.mxu0
        %v1713 = vadd.f32 %v1519, %v1712
        %v1714 = vpop.f32.mrf.mxu0
        %1715 = vmatprep.mubr.f32.mxu0 0.0
        %v1716 = vand.u32 %v388, 4294901760
        %1717 = vmatmul.mubr.f32.gmra.mxu0 %v1716
        %v1718 = vpop.f32.mrf.mxu0
        %v1719 = vadd.f32 %v1525, %v1718
        %v1720 = vpop.f32.mrf.mxu0
        %1721 = vdwg.mxu0
        %v1723 = vsel %vm326, %v324, 0
        %v1726 = vsel %vm326, %v325, 0
        %1728 = vmatprep.subr.mxu0 0.0
        %1729 = vmatpush1.msra.mxu0 0.0
        %1730 = vmatprep.subr.mxu0 0.0
        %1731 = vmatpush1.msra.mxu0 0.0
        %1732 = vmatprep.subr.mxu0 0.0
        %1733 = vmatpush1.msra.mxu0 0.0
        %1734 = vmatprep.subr.mxu0 0.0
        %1735 = vmatpush1.msra.mxu0 0.0
        %1736 = vmatprep.subr.mxu0 0.0
        %1737 = vmatpush1.msra.mxu0 0.0
        %1738 = vmatprep.subr.mxu0 0.0
        %1739 = vmatpush1.msra.mxu0 0.0
        %1740 = vmatprep.subr.mxu0 0.0
        %1741 = vmatpush1.msra.mxu0 0.0
        %1742 = vmatprep.subr.mxu0 0.0
        %1743 = vmatpush1.msra.mxu0 0.0
        %1744 = vmatprep.subr.mxu0 0.0
        %1745 = vmatpush1.msra.mxu0 0.0
        %1746 = vmatprep.subr.mxu0 0.0
        %1747 = vmatpush1.msra.mxu0 0.0
        %1748 = vmatprep.subr.mxu0 0.0
        %1749 = vmatpush1.msra.mxu0 0.0
        %1750 = vmatprep.subr.mxu0 0.0
        %1751 = vmatpush1.msra.mxu0 0.0
        %1752 = vmatprep.subr.mxu0 0.0
        %1753 = vmatpush1.msra.mxu0 0.0
        %1754 = vmatprep.subr.mxu0 0.0
        %v1755 = vand.u32 %v1611, 4294901760
        %1756 = vmatpush1.msra.mxu0 %v1755
        %1757 = vmatprep.subr.mxu0 0.0
        %v1758 = vand.u32 %v1605, 4294901760
        %1759 = vmatpush1.msra.mxu0 %v1758
        %1760 = vmatprep.subr.mxu0 0.0
        %v1761 = vand.u32 %v1599, 4294901760
        %1762 = vmatpush1.msra.mxu0 %v1761
        %1763 = vmatprep.subr.mxu0 0.0
        %1764 = vmatpush2.msra.mxu0 0.0
        %1765 = vmatprep.subr.mxu0 0.0
        %1766 = vmatpush2.msra.mxu0 0.0
        %1767 = vmatprep.subr.mxu0 0.0
        %1768 = vmatpush2.msra.mxu0 0.0
        %1769 = vmatprep.subr.mxu0 0.0
        %1770 = vmatpush2.msra.mxu0 0.0
        %1771 = vmatprep.subr.mxu0 0.0
        %1772 = vmatpush2.msra.mxu0 0.0
        %1773 = vmatprep.subr.mxu0 0.0
        %1774 = vmatpush2.msra.mxu0 0.0
        %1775 = vmatprep.subr.mxu0 0.0
        %1776 = vmatpush2.msra.mxu0 0.0
        %1777 = vmatprep.subr.mxu0 0.0
        %1778 = vmatpush2.msra.mxu0 0.0
        %1779 = vmatprep.subr.mxu0 0.0
        %1780 = vmatpush2.msra.mxu0 0.0
        %1781 = vmatprep.subr.mxu0 0.0
        %1782 = vmatpush2.msra.mxu0 0.0
        %1783 = vmatprep.subr.mxu0 0.0
        %1784 = vmatpush2.msra.mxu0 0.0
        %1785 = vmatprep.subr.mxu0 0.0
        %1786 = vmatpush2.msra.mxu0 0.0
        %1787 = vmatprep.subr.mxu0 0.0
        %1788 = vmatpush2.msra.mxu0 0.0
        %1789 = vmatprep.subr.mxu0 0.0
        %1790 = vmatpush2.msra.mxu0 0.0
        %1791 = vmatprep.subr.mxu0 0.0
        %1792 = vmatpush2.msra.mxu0 0.0
        %1793 = vmatprep.subr.mxu0 0.0
        %1794 = vmatpush2.msra.mxu0 0.0
        %1795 = vmatprep.mubr.f32.mxu0 0.0
        %v1796 = vand.u32 %v1723, 4294901760
        %v1797 = vsub.f32 %v1723, %v1796
        %v1798 = vand.u32 %v1797, 4294901760
        %v1799 = vsub.f32 %v1797, %v1798
        %v1800 = vand.u32 %v1799, 4294901760
        %1801 = vmatmul.mubr.f32.gmra.mxu0 %v1800
        %v1802 = vpop.f32.mrf.mxu0
        %v1803 = vadd.f32 0.0, %v1802
        %v1804 = vpop.f32.mrf.mxu0
        %1805 = vmatprep.mubr.f32.mxu0 0.0
        %v1806 = vand.u32 %v1726, 4294901760
        %v1807 = vsub.f32 %v1726, %v1806
        %v1808 = vand.u32 %v1807, 4294901760
        %v1809 = vsub.f32 %v1807, %v1808
        %v1810 = vand.u32 %v1809, 4294901760
        %1811 = vmatmul.mubr.f32.gmra.mxu0 %v1810
        %v1812 = vpop.f32.mrf.mxu0
        %v1813 = vadd.f32 0.0, %v1812
        %v1814 = vpop.f32.mrf.mxu0
        %1815 = vdwg.mxu0
        %1816 = vmatprep.subr.mxu0 0.0
        %1817 = vmatpush1.msra.mxu0 0.0
        %1818 = vmatprep.subr.mxu0 0.0
        %1819 = vmatpush1.msra.mxu0 0.0
        %1820 = vmatprep.subr.mxu0 0.0
        %1821 = vmatpush1.msra.mxu0 0.0
        %1822 = vmatprep.subr.mxu0 0.0
        %1823 = vmatpush1.msra.mxu0 0.0
        %1824 = vmatprep.subr.mxu0 0.0
        %1825 = vmatpush1.msra.mxu0 0.0
        %1826 = vmatprep.subr.mxu0 0.0
        %1827 = vmatpush1.msra.mxu0 0.0
        %1828 = vmatprep.subr.mxu0 0.0
        %1829 = vmatpush1.msra.mxu0 0.0
        %1830 = vmatprep.subr.mxu0 0.0
        %1831 = vmatpush1.msra.mxu0 0.0
        %1832 = vmatprep.subr.mxu0 0.0
        %1833 = vmatpush1.msra.mxu0 0.0
        %1834 = vmatprep.subr.mxu0 0.0
        %1835 = vmatpush1.msra.mxu0 0.0
        %1836 = vmatprep.subr.mxu0 0.0
        %1837 = vmatpush1.msra.mxu0 0.0
        %1838 = vmatprep.subr.mxu0 0.0
        %1839 = vmatpush1.msra.mxu0 0.0
        %1840 = vmatprep.subr.mxu0 0.0
        %1841 = vmatpush1.msra.mxu0 0.0
        %1842 = vmatprep.subr.mxu0 0.0
        %v1843 = vand.u32 %v1611, 4294901760
        %v1844 = vsub.f32 %v1611, %v1843
        %v1845 = vand.u32 %v1844, 4294901760
        %v1846 = vsub.f32 %v1844, %v1845
        %v1847 = vand.u32 %v1846, 4294901760
        %1848 = vmatpush1.msra.mxu0 %v1847
        %1849 = vmatprep.subr.mxu0 0.0
        %v1850 = vand.u32 %v1605, 4294901760
        %v1851 = vsub.f32 %v1605, %v1850
        %v1852 = vand.u32 %v1851, 4294901760
        %v1853 = vsub.f32 %v1851, %v1852
        %v1854 = vand.u32 %v1853, 4294901760
        %1855 = vmatpush1.msra.mxu0 %v1854
        %1856 = vmatprep.subr.mxu0 0.0
        %v1857 = vand.u32 %v1599, 4294901760
        %v1858 = vsub.f32 %v1599, %v1857
        %v1859 = vand.u32 %v1858, 4294901760
        %v1860 = vsub.f32 %v1858, %v1859
        %v1861 = vand.u32 %v1860, 4294901760
        %1862 = vmatpush1.msra.mxu0 %v1861
        %1863 = vmatprep.subr.mxu0 0.0
        %1864 = vmatpush2.msra.mxu0 0.0
        %1865 = vmatprep.subr.mxu0 0.0
        %1866 = vmatpush2.msra.mxu0 0.0
        %1867 = vmatprep.subr.mxu0 0.0
        %1868 = vmatpush2.msra.mxu0 0.0
        %1869 = vmatprep.subr.mxu0 0.0
        %1870 = vmatpush2.msra.mxu0 0.0
        %1871 = vmatprep.subr.mxu0 0.0
        %1872 = vmatpush2.msra.mxu0 0.0
        %1873 = vmatprep.subr.mxu0 0.0
        %1874 = vmatpush2.msra.mxu0 0.0
        %1875 = vmatprep.subr.mxu0 0.0
        %1876 = vmatpush2.msra.mxu0 0.0
        %1877 = vmatprep.subr.mxu0 0.0
        %1878 = vmatpush2.msra.mxu0 0.0
        %1879 = vmatprep.subr.mxu0 0.0
        %1880 = vmatpush2.msra.mxu0 0.0
        %1881 = vmatprep.subr.mxu0 0.0
        %1882 = vmatpush2.msra.mxu0 0.0
        %1883 = vmatprep.subr.mxu0 0.0
        %1884 = vmatpush2.msra.mxu0 0.0
        %1885 = vmatprep.subr.mxu0 0.0
        %1886 = vmatpush2.msra.mxu0 0.0
        %1887 = vmatprep.subr.mxu0 0.0
        %1888 = vmatpush2.msra.mxu0 0.0
        %1889 = vmatprep.subr.mxu0 0.0
        %1890 = vmatpush2.msra.mxu0 0.0
        %1891 = vmatprep.subr.mxu0 0.0
        %1892 = vmatpush2.msra.mxu0 0.0
        %1893 = vmatprep.subr.mxu0 0.0
        %1894 = vmatpush2.msra.mxu0 0.0
        %1895 = vmatprep.mubr.f32.mxu0 0.0
        %v1896 = vand.u32 %v1723, 4294901760
        %1897 = vmatmul.mubr.f32.gmra.mxu0 %v1896
        %v1898 = vpop.f32.mrf.mxu0
        %v1899 = vadd.f32 %v1803, %v1898
        %v1900 = vpop.f32.mrf.mxu0
        %1901 = vmatprep.mubr.f32.mxu0 0.0
        %v1902 = vand.u32 %v1726, 4294901760
        %1903 = vmatmul.mubr.f32.gmra.mxu0 %v1902
        %v1904 = vpop.f32.mrf.mxu0
        %v1905 = vadd.f32 %v1813, %v1904
        %v1906 = vpop.f32.mrf.mxu0
        %1907 = vdwg.mxu0
        %1908 = vmatprep.subr.mxu0 0.0
        %1909 = vmatpush1.msra.mxu0 0.0
        %1910 = vmatprep.subr.mxu0 0.0
        %1911 = vmatpush1.msra.mxu0 0.0
        %1912 = vmatprep.subr.mxu0 0.0
        %1913 = vmatpush1.msra.mxu0 0.0
        %1914 = vmatprep.subr.mxu0 0.0
        %1915 = vmatpush1.msra.mxu0 0.0
        %1916 = vmatprep.subr.mxu0 0.0
        %1917 = vmatpush1.msra.mxu0 0.0
        %1918 = vmatprep.subr.mxu0 0.0
        %1919 = vmatpush1.msra.mxu0 0.0
        %1920 = vmatprep.subr.mxu0 0.0
        %1921 = vmatpush1.msra.mxu0 0.0
        %1922 = vmatprep.subr.mxu0 0.0
        %1923 = vmatpush1.msra.mxu0 0.0
        %1924 = vmatprep.subr.mxu0 0.0
        %1925 = vmatpush1.msra.mxu0 0.0
        %1926 = vmatprep.subr.mxu0 0.0
        %1927 = vmatpush1.msra.mxu0 0.0
        %1928 = vmatprep.subr.mxu0 0.0
        %1929 = vmatpush1.msra.mxu0 0.0
        %1930 = vmatprep.subr.mxu0 0.0
        %1931 = vmatpush1.msra.mxu0 0.0
        %1932 = vmatprep.subr.mxu0 0.0
        %1933 = vmatpush1.msra.mxu0 0.0
        %1934 = vmatprep.subr.mxu0 0.0
        %v1935 = vand.u32 %v1611, 4294901760
        %v1936 = vsub.f32 %v1611, %v1935
        %1937 = vmatpush1.msra.mxu0 %v1936
        %1938 = vmatprep.subr.mxu0 0.0
        %v1939 = vand.u32 %v1605, 4294901760
        %v1940 = vsub.f32 %v1605, %v1939
        %1941 = vmatpush1.msra.mxu0 %v1940
        %1942 = vmatprep.subr.mxu0 0.0
        %v1943 = vand.u32 %v1599, 4294901760
        %v1944 = vsub.f32 %v1599, %v1943
        %1945 = vmatpush1.msra.mxu0 %v1944
        %1946 = vmatprep.subr.mxu0 0.0
        %1947 = vmatpush2.msra.mxu0 0.0
        %1948 = vmatprep.subr.mxu0 0.0
        %1949 = vmatpush2.msra.mxu0 0.0
        %1950 = vmatprep.subr.mxu0 0.0
        %1951 = vmatpush2.msra.mxu0 0.0
        %1952 = vmatprep.subr.mxu0 0.0
        %1953 = vmatpush2.msra.mxu0 0.0
        %1954 = vmatprep.subr.mxu0 0.0
        %1955 = vmatpush2.msra.mxu0 0.0
        %1956 = vmatprep.subr.mxu0 0.0
        %1957 = vmatpush2.msra.mxu0 0.0
        %1958 = vmatprep.subr.mxu0 0.0
        %1959 = vmatpush2.msra.mxu0 0.0
        %1960 = vmatprep.subr.mxu0 0.0
        %1961 = vmatpush2.msra.mxu0 0.0
        %1962 = vmatprep.subr.mxu0 0.0
        %1963 = vmatpush2.msra.mxu0 0.0
        %1964 = vmatprep.subr.mxu0 0.0
        %1965 = vmatpush2.msra.mxu0 0.0
        %1966 = vmatprep.subr.mxu0 0.0
        %1967 = vmatpush2.msra.mxu0 0.0
        %1968 = vmatprep.subr.mxu0 0.0
        %1969 = vmatpush2.msra.mxu0 0.0
        %1970 = vmatprep.subr.mxu0 0.0
        %1971 = vmatpush2.msra.mxu0 0.0
        %1972 = vmatprep.subr.mxu0 0.0
        %1973 = vmatpush2.msra.mxu0 0.0
        %1974 = vmatprep.subr.mxu0 0.0
        %1975 = vmatpush2.msra.mxu0 0.0
        %1976 = vmatprep.subr.mxu0 0.0
        %1977 = vmatpush2.msra.mxu0 0.0
        %1978 = vmatprep.mubr.f32.mxu0 0.0
        %v1979 = vand.u32 %v1723, 4294901760
        %v1980 = vsub.f32 %v1723, %v1979
        %1981 = vmatmul.mubr.f32.gmra.mxu0 %v1980
        %v1982 = vpop.f32.mrf.mxu0
        %v1983 = vadd.f32 %v1899, %v1982
        %v1984 = vpop.f32.mrf.mxu0
        %1985 = vmatprep.mubr.f32.mxu0 0.0
        %v1986 = vand.u32 %v1726, 4294901760
        %v1987 = vsub.f32 %v1726, %v1986
        %1988 = vmatmul.mubr.f32.gmra.mxu0 %v1987
        %v1989 = vpop.f32.mrf.mxu0
        %v1990 = vadd.f32 %v1905, %v1989
        %v1991 = vpop.f32.mrf.mxu0
        %1992 = vdwg.mxu0
        %1993 = vmatprep.subr.mxu0 0.0
        %1994 = vmatpush1.msra.mxu0 0.0
        %1995 = vmatprep.subr.mxu0 0.0
        %1996 = vmatpush1.msra.mxu0 0.0
        %1997 = vmatprep.subr.mxu0 0.0
        %1998 = vmatpush1.msra.mxu0 0.0
        %1999 = vmatprep.subr.mxu0 0.0
        %2000 = vmatpush1.msra.mxu0 0.0
        %2001 = vmatprep.subr.mxu0 0.0
        %2002 = vmatpush1.msra.mxu0 0.0
        %2003 = vmatprep.subr.mxu0 0.0
        %2004 = vmatpush1.msra.mxu0 0.0
        %2005 = vmatprep.subr.mxu0 0.0
        %2006 = vmatpush1.msra.mxu0 0.0
        %2007 = vmatprep.subr.mxu0 0.0
        %2008 = vmatpush1.msra.mxu0 0.0
        %2009 = vmatprep.subr.mxu0 0.0
        %2010 = vmatpush1.msra.mxu0 0.0
        %2011 = vmatprep.subr.mxu0 0.0
        %2012 = vmatpush1.msra.mxu0 0.0
        %2013 = vmatprep.subr.mxu0 0.0
        %2014 = vmatpush1.msra.mxu0 0.0
        %2015 = vmatprep.subr.mxu0 0.0
        %2016 = vmatpush1.msra.mxu0 0.0
        %2017 = vmatprep.subr.mxu0 0.0
        %2018 = vmatpush1.msra.mxu0 0.0
        %2019 = vmatprep.subr.mxu0 0.0
        %v2020 = vand.u32 %v1611, 4294901760
        %2021 = vmatpush1.msra.mxu0 %v2020
        %2022 = vmatprep.subr.mxu0 0.0
        %v2023 = vand.u32 %v1605, 4294901760
        %2024 = vmatpush1.msra.mxu0 %v2023
        %2025 = vmatprep.subr.mxu0 0.0
        %v2026 = vand.u32 %v1599, 4294901760
        %2027 = vmatpush1.msra.mxu0 %v2026
        %2028 = vmatprep.subr.mxu0 0.0
        %2029 = vmatpush2.msra.mxu0 0.0
        %2030 = vmatprep.subr.mxu0 0.0
        %2031 = vmatpush2.msra.mxu0 0.0
        %2032 = vmatprep.subr.mxu0 0.0
        %2033 = vmatpush2.msra.mxu0 0.0
        %2034 = vmatprep.subr.mxu0 0.0
        %2035 = vmatpush2.msra.mxu0 0.0
        %2036 = vmatprep.subr.mxu0 0.0
        %2037 = vmatpush2.msra.mxu0 0.0
        %2038 = vmatprep.subr.mxu0 0.0
        %2039 = vmatpush2.msra.mxu0 0.0
        %2040 = vmatprep.subr.mxu0 0.0
        %2041 = vmatpush2.msra.mxu0 0.0
        %2042 = vmatprep.subr.mxu0 0.0
        %2043 = vmatpush2.msra.mxu0 0.0
        %2044 = vmatprep.subr.mxu0 0.0
        %2045 = vmatpush2.msra.mxu0 0.0
        %2046 = vmatprep.subr.mxu0 0.0
        %2047 = vmatpush2.msra.mxu0 0.0
        %2048 = vmatprep.subr.mxu0 0.0
        %2049 = vmatpush2.msra.mxu0 0.0
        %2050 = vmatprep.subr.mxu0 0.0
        %2051 = vmatpush2.msra.mxu0 0.0
        %2052 = vmatprep.subr.mxu0 0.0
        %2053 = vmatpush2.msra.mxu0 0.0
        %2054 = vmatprep.subr.mxu0 0.0
        %2055 = vmatpush2.msra.mxu0 0.0
        %2056 = vmatprep.subr.mxu0 0.0
        %2057 = vmatpush2.msra.mxu0 0.0
        %2058 = vmatprep.subr.mxu0 0.0
        %2059 = vmatpush2.msra.mxu0 0.0
        %2060 = vmatprep.mubr.f32.mxu0 0.0
        %v2061 = vand.u32 %v1723, 4294901760
        %v2062 = vsub.f32 %v1723, %v2061
        %v2063 = vand.u32 %v2062, 4294901760
        %2064 = vmatmul.mubr.f32.gmra.mxu0 %v2063
        %v2065 = vpop.f32.mrf.mxu0
        %v2066 = vadd.f32 %v1983, %v2065
        %v2067 = vpop.f32.mrf.mxu0
        %2068 = vmatprep.mubr.f32.mxu0 0.0
        %v2069 = vand.u32 %v1726, 4294901760
        %v2070 = vsub.f32 %v1726, %v2069
        %v2071 = vand.u32 %v2070, 4294901760
        %2072 = vmatmul.mubr.f32.gmra.mxu0 %v2071
        %v2073 = vpop.f32.mrf.mxu0
        %v2074 = vadd.f32 %v1990, %v2073
        %v2075 = vpop.f32.mrf.mxu0
        %2076 = vdwg.mxu0
        %2077 = vmatprep.subr.mxu0 0.0
        %2078 = vmatpush1.msra.mxu0 0.0
        %2079 = vmatprep.subr.mxu0 0.0
        %2080 = vmatpush1.msra.mxu0 0.0
        %2081 = vmatprep.subr.mxu0 0.0
        %2082 = vmatpush1.msra.mxu0 0.0
        %2083 = vmatprep.subr.mxu0 0.0
        %2084 = vmatpush1.msra.mxu0 0.0
        %2085 = vmatprep.subr.mxu0 0.0
        %2086 = vmatpush1.msra.mxu0 0.0
        %2087 = vmatprep.subr.mxu0 0.0
        %2088 = vmatpush1.msra.mxu0 0.0
        %2089 = vmatprep.subr.mxu0 0.0
        %2090 = vmatpush1.msra.mxu0 0.0
        %2091 = vmatprep.subr.mxu0 0.0
        %2092 = vmatpush1.msra.mxu0 0.0
        %2093 = vmatprep.subr.mxu0 0.0
        %2094 = vmatpush1.msra.mxu0 0.0
        %2095 = vmatprep.subr.mxu0 0.0
        %2096 = vmatpush1.msra.mxu0 0.0
        %2097 = vmatprep.subr.mxu0 0.0
        %2098 = vmatpush1.msra.mxu0 0.0
        %2099 = vmatprep.subr.mxu0 0.0
        %2100 = vmatpush1.msra.mxu0 0.0
        %2101 = vmatprep.subr.mxu0 0.0
        %2102 = vmatpush1.msra.mxu0 0.0
        %2103 = vmatprep.subr.mxu0 0.0
        %v2104 = vand.u32 %v1611, 4294901760
        %v2105 = vsub.f32 %v1611, %v2104
        %v2106 = vand.u32 %v2105, 4294901760
        %2107 = vmatpush1.msra.mxu0 %v2106
        %2108 = vmatprep.subr.mxu0 0.0
        %v2109 = vand.u32 %v1605, 4294901760
        %v2110 = vsub.f32 %v1605, %v2109
        %v2111 = vand.u32 %v2110, 4294901760
        %2112 = vmatpush1.msra.mxu0 %v2111
        %2113 = vmatprep.subr.mxu0 0.0
        %v2114 = vand.u32 %v1599, 4294901760
        %v2115 = vsub.f32 %v1599, %v2114
        %v2116 = vand.u32 %v2115, 4294901760
        %2117 = vmatpush1.msra.mxu0 %v2116
        %2118 = vmatprep.subr.mxu0 0.0
        %2119 = vmatpush2.msra.mxu0 0.0
        %2120 = vmatprep.subr.mxu0 0.0
        %2121 = vmatpush2.msra.mxu0 0.0
        %2122 = vmatprep.subr.mxu0 0.0
        %2123 = vmatpush2.msra.mxu0 0.0
        %2124 = vmatprep.subr.mxu0 0.0
        %2125 = vmatpush2.msra.mxu0 0.0
        %2126 = vmatprep.subr.mxu0 0.0
        %2127 = vmatpush2.msra.mxu0 0.0
        %2128 = vmatprep.subr.mxu0 0.0
        %2129 = vmatpush2.msra.mxu0 0.0
        %2130 = vmatprep.subr.mxu0 0.0
        %2131 = vmatpush2.msra.mxu0 0.0
        %2132 = vmatprep.subr.mxu0 0.0
        %2133 = vmatpush2.msra.mxu0 0.0
        %2134 = vmatprep.subr.mxu0 0.0
        %2135 = vmatpush2.msra.mxu0 0.0
        %2136 = vmatprep.subr.mxu0 0.0
        %2137 = vmatpush2.msra.mxu0 0.0
        %2138 = vmatprep.subr.mxu0 0.0
        %2139 = vmatpush2.msra.mxu0 0.0
        %2140 = vmatprep.subr.mxu0 0.0
        %2141 = vmatpush2.msra.mxu0 0.0
        %2142 = vmatprep.subr.mxu0 0.0
        %2143 = vmatpush2.msra.mxu0 0.0
        %2144 = vmatprep.subr.mxu0 0.0
        %2145 = vmatpush2.msra.mxu0 0.0
        %2146 = vmatprep.subr.mxu0 0.0
        %2147 = vmatpush2.msra.mxu0 0.0
        %2148 = vmatprep.subr.mxu0 0.0
        %2149 = vmatpush2.msra.mxu0 0.0
        %2150 = vmatprep.mubr.f32.mxu0 0.0
        %v2151 = vand.u32 %v1723, 4294901760
        %2152 = vmatmul.mubr.f32.gmra.mxu0 %v2151
        %v2153 = vpop.f32.mrf.mxu0
        %v2154 = vadd.f32 %v2066, %v2153
        %v2155 = vpop.f32.mrf.mxu0
        %2156 = vmatprep.mubr.f32.mxu0 0.0
        %v2157 = vand.u32 %v1726, 4294901760
        %2158 = vmatmul.mubr.f32.gmra.mxu0 %v2157
        %v2159 = vpop.f32.mrf.mxu0
        %v2160 = vadd.f32 %v2074, %v2159
        %v2161 = vpop.f32.mrf.mxu0
        %2162 = vdwg.mxu0
        %2163 = vmatprep.subr.mxu0 0.0
        %2164 = vmatpush1.msra.mxu0 0.0
        %2165 = vmatprep.subr.mxu0 0.0
        %2166 = vmatpush1.msra.mxu0 0.0
        %2167 = vmatprep.subr.mxu0 0.0
        %2168 = vmatpush1.msra.mxu0 0.0
        %2169 = vmatprep.subr.mxu0 0.0
        %2170 = vmatpush1.msra.mxu0 0.0
        %2171 = vmatprep.subr.mxu0 0.0
        %2172 = vmatpush1.msra.mxu0 0.0
        %2173 = vmatprep.subr.mxu0 0.0
        %2174 = vmatpush1.msra.mxu0 0.0
        %2175 = vmatprep.subr.mxu0 0.0
        %2176 = vmatpush1.msra.mxu0 0.0
        %2177 = vmatprep.subr.mxu0 0.0
        %2178 = vmatpush1.msra.mxu0 0.0
        %2179 = vmatprep.subr.mxu0 0.0
        %2180 = vmatpush1.msra.mxu0 0.0
        %2181 = vmatprep.subr.mxu0 0.0
        %2182 = vmatpush1.msra.mxu0 0.0
        %2183 = vmatprep.subr.mxu0 0.0
        %2184 = vmatpush1.msra.mxu0 0.0
        %2185 = vmatprep.subr.mxu0 0.0
        %2186 = vmatpush1.msra.mxu0 0.0
        %2187 = vmatprep.subr.mxu0 0.0
        %2188 = vmatpush1.msra.mxu0 0.0
        %2189 = vmatprep.subr.mxu0 0.0
        %v2190 = vand.u32 %v1611, 4294901760
        %2191 = vmatpush1.msra.mxu0 %v2190
        %2192 = vmatprep.subr.mxu0 0.0
        %v2193 = vand.u32 %v1605, 4294901760
        %2194 = vmatpush1.msra.mxu0 %v2193
        %2195 = vmatprep.subr.mxu0 0.0
        %v2196 = vand.u32 %v1599, 4294901760
        %2197 = vmatpush1.msra.mxu0 %v2196
        %2198 = vmatprep.subr.mxu0 0.0
        %2199 = vmatpush2.msra.mxu0 0.0
        %2200 = vmatprep.subr.mxu0 0.0
        %2201 = vmatpush2.msra.mxu0 0.0
        %2202 = vmatprep.subr.mxu0 0.0
        %2203 = vmatpush2.msra.mxu0 0.0
        %2204 = vmatprep.subr.mxu0 0.0
        %2205 = vmatpush2.msra.mxu0 0.0
        %2206 = vmatprep.subr.mxu0 0.0
        %2207 = vmatpush2.msra.mxu0 0.0
        %2208 = vmatprep.subr.mxu0 0.0
        %2209 = vmatpush2.msra.mxu0 0.0
        %2210 = vmatprep.subr.mxu0 0.0
        %2211 = vmatpush2.msra.mxu0 0.0
        %2212 = vmatprep.subr.mxu0 0.0
        %2213 = vmatpush2.msra.mxu0 0.0
        %2214 = vmatprep.subr.mxu0 0.0
        %2215 = vmatpush2.msra.mxu0 0.0
        %2216 = vmatprep.subr.mxu0 0.0
        %2217 = vmatpush2.msra.mxu0 0.0
        %2218 = vmatprep.subr.mxu0 0.0
        %2219 = vmatpush2.msra.mxu0 0.0
        %2220 = vmatprep.subr.mxu0 0.0
        %2221 = vmatpush2.msra.mxu0 0.0
        %2222 = vmatprep.subr.mxu0 0.0
        %2223 = vmatpush2.msra.mxu0 0.0
        %2224 = vmatprep.subr.mxu0 0.0
        %2225 = vmatpush2.msra.mxu0 0.0
        %2226 = vmatprep.subr.mxu0 0.0
        %2227 = vmatpush2.msra.mxu0 0.0
        %2228 = vmatprep.subr.mxu0 0.0
        %2229 = vmatpush2.msra.mxu0 0.0
        %2230 = vmatprep.mubr.f32.mxu0 0.0
        %v2231 = vand.u32 %v1723, 4294901760
        %2232 = vmatmul.mubr.f32.gmra.mxu0 %v2231
        %v2233 = vpop.f32.mrf.mxu0
        %v2234 = vadd.f32 %v2154, %v2233
        %v2235 = vpop.f32.mrf.mxu0
        %2236 = vmatprep.mubr.f32.mxu0 0.0
        %v2237 = vand.u32 %v1726, 4294901760
        %2238 = vmatmul.mubr.f32.gmra.mxu0 %v2237
        %v2239 = vpop.f32.mrf.mxu0
        %v2240 = vadd.f32 %v2160, %v2239
        %v2241 = vpop.f32.mrf.mxu0
        %2242 = vdwg.mxu0
        %2243 = vmatprep.subr.mxu0 0.0
        %2244 = vmatpush1.msra.mxu0 0.0
        %2245 = vmatprep.subr.mxu0 0.0
        %2246 = vmatpush1.msra.mxu0 0.0
        %2247 = vmatprep.subr.mxu0 0.0
        %2248 = vmatpush1.msra.mxu0 0.0
        %2249 = vmatprep.subr.mxu0 0.0
        %2250 = vmatpush1.msra.mxu0 0.0
        %2251 = vmatprep.subr.mxu0 0.0
        %2252 = vmatpush1.msra.mxu0 0.0
        %2253 = vmatprep.subr.mxu0 0.0
        %2254 = vmatpush1.msra.mxu0 0.0
        %2255 = vmatprep.subr.mxu0 0.0
        %2256 = vmatpush1.msra.mxu0 0.0
        %2257 = vmatprep.subr.mxu0 0.0
        %2258 = vmatpush1.msra.mxu0 0.0
        %2259 = vmatprep.subr.mxu0 0.0
        %2260 = vmatpush1.msra.mxu0 0.0
        %2261 = vmatprep.subr.mxu0 0.0
        %2262 = vmatpush1.msra.mxu0 0.0
        %2263 = vmatprep.subr.mxu0 0.0
        %2264 = vmatpush1.msra.mxu0 0.0
        %2265 = vmatprep.subr.mxu0 0.0
        %2266 = vmatpush1.msra.mxu0 0.0
        %2267 = vmatprep.subr.mxu0 0.0
        %2268 = vmatpush1.msra.mxu0 0.0
        %2269 = vmatprep.subr.mxu0 0.0
        %v2270 = vand.u32 %v1629, 4294901760
        %2271 = vmatpush1.msra.mxu0 %v2270
        %2272 = vmatprep.subr.mxu0 0.0
        %v2273 = vand.u32 %v1623, 4294901760
        %2274 = vmatpush1.msra.mxu0 %v2273
        %2275 = vmatprep.subr.mxu0 0.0
        %v2276 = vand.u32 %v1617, 4294901760
        %2277 = vmatpush1.msra.mxu0 %v2276
        %2278 = vmatprep.subr.mxu0 0.0
        %2279 = vmatpush2.msra.mxu0 0.0
        %2280 = vmatprep.subr.mxu0 0.0
        %2281 = vmatpush2.msra.mxu0 0.0
        %2282 = vmatprep.subr.mxu0 0.0
        %2283 = vmatpush2.msra.mxu0 0.0
        %2284 = vmatprep.subr.mxu0 0.0
        %2285 = vmatpush2.msra.mxu0 0.0
        %2286 = vmatprep.subr.mxu0 0.0
        %2287 = vmatpush2.msra.mxu0 0.0
        %2288 = vmatprep.subr.mxu0 0.0
        %2289 = vmatpush2.msra.mxu0 0.0
        %2290 = vmatprep.subr.mxu0 0.0
        %2291 = vmatpush2.msra.mxu0 0.0
        %2292 = vmatprep.subr.mxu0 0.0
        %2293 = vmatpush2.msra.mxu0 0.0
        %2294 = vmatprep.subr.mxu0 0.0
        %2295 = vmatpush2.msra.mxu0 0.0
        %2296 = vmatprep.subr.mxu0 0.0
        %2297 = vmatpush2.msra.mxu0 0.0
        %2298 = vmatprep.subr.mxu0 0.0
        %2299 = vmatpush2.msra.mxu0 0.0
        %2300 = vmatprep.subr.mxu0 0.0
        %2301 = vmatpush2.msra.mxu0 0.0
        %2302 = vmatprep.subr.mxu0 0.0
        %2303 = vmatpush2.msra.mxu0 0.0
        %2304 = vmatprep.subr.mxu0 0.0
        %2305 = vmatpush2.msra.mxu0 0.0
        %2306 = vmatprep.subr.mxu0 0.0
        %2307 = vmatpush2.msra.mxu0 0.0
        %2308 = vmatprep.subr.mxu0 0.0
        %2309 = vmatpush2.msra.mxu0 0.0
        %2310 = vmatprep.mubr.f32.mxu0 0.0
        %v2311 = vand.u32 %v1723, 4294901760
        %v2312 = vsub.f32 %v1723, %v2311
        %v2313 = vand.u32 %v2312, 4294901760
        %v2314 = vsub.f32 %v2312, %v2313
        %v2315 = vand.u32 %v2314, 4294901760
        %2316 = vmatmul.mubr.f32.gmra.mxu0 %v2315
        %v2317 = vpop.f32.mrf.mxu0
        %v2318 = vadd.f32 0.0, %v2317
        %v2319 = vpop.f32.mrf.mxu0
        %2320 = vmatprep.mubr.f32.mxu0 0.0
        %v2321 = vand.u32 %v1726, 4294901760
        %v2322 = vsub.f32 %v1726, %v2321
        %v2323 = vand.u32 %v2322, 4294901760
        %v2324 = vsub.f32 %v2322, %v2323
        %v2325 = vand.u32 %v2324, 4294901760
        %2326 = vmatmul.mubr.f32.gmra.mxu0 %v2325
        %v2327 = vpop.f32.mrf.mxu0
        %v2328 = vadd.f32 0.0, %v2327
        %v2329 = vpop.f32.mrf.mxu0
        %2330 = vdwg.mxu0
        %2331 = vmatprep.subr.mxu0 0.0
        %2332 = vmatpush1.msra.mxu0 0.0
        %2333 = vmatprep.subr.mxu0 0.0
        %2334 = vmatpush1.msra.mxu0 0.0
        %2335 = vmatprep.subr.mxu0 0.0
        %2336 = vmatpush1.msra.mxu0 0.0
        %2337 = vmatprep.subr.mxu0 0.0
        %2338 = vmatpush1.msra.mxu0 0.0
        %2339 = vmatprep.subr.mxu0 0.0
        %2340 = vmatpush1.msra.mxu0 0.0
        %2341 = vmatprep.subr.mxu0 0.0
        %2342 = vmatpush1.msra.mxu0 0.0
        %2343 = vmatprep.subr.mxu0 0.0
        %2344 = vmatpush1.msra.mxu0 0.0
        %2345 = vmatprep.subr.mxu0 0.0
        %2346 = vmatpush1.msra.mxu0 0.0
        %2347 = vmatprep.subr.mxu0 0.0
        %2348 = vmatpush1.msra.mxu0 0.0
        %2349 = vmatprep.subr.mxu0 0.0
        %2350 = vmatpush1.msra.mxu0 0.0
        %2351 = vmatprep.subr.mxu0 0.0
        %2352 = vmatpush1.msra.mxu0 0.0
        %2353 = vmatprep.subr.mxu0 0.0
        %2354 = vmatpush1.msra.mxu0 0.0
        %2355 = vmatprep.subr.mxu0 0.0
        %2356 = vmatpush1.msra.mxu0 0.0
        %2357 = vmatprep.subr.mxu0 0.0
        %v2358 = vand.u32 %v1629, 4294901760
        %v2359 = vsub.f32 %v1629, %v2358
        %v2360 = vand.u32 %v2359, 4294901760
        %v2361 = vsub.f32 %v2359, %v2360
        %v2362 = vand.u32 %v2361, 4294901760
        %2363 = vmatpush1.msra.mxu0 %v2362
        %2364 = vmatprep.subr.mxu0 0.0
        %v2365 = vand.u32 %v1623, 4294901760
        %v2366 = vsub.f32 %v1623, %v2365
        %v2367 = vand.u32 %v2366, 4294901760
        %v2368 = vsub.f32 %v2366, %v2367
        %v2369 = vand.u32 %v2368, 4294901760
        %2370 = vmatpush1.msra.mxu0 %v2369
        %2371 = vmatprep.subr.mxu0 0.0
        %v2372 = vand.u32 %v1617, 4294901760
        %v2373 = vsub.f32 %v1617, %v2372
        %v2374 = vand.u32 %v2373, 4294901760
        %v2375 = vsub.f32 %v2373, %v2374
        %v2376 = vand.u32 %v2375, 4294901760
        %2377 = vmatpush1.msra.mxu0 %v2376
        %2378 = vmatprep.subr.mxu0 0.0
        %2379 = vmatpush2.msra.mxu0 0.0
        %2380 = vmatprep.subr.mxu0 0.0
        %2381 = vmatpush2.msra.mxu0 0.0
        %2382 = vmatprep.subr.mxu0 0.0
        %2383 = vmatpush2.msra.mxu0 0.0
        %2384 = vmatprep.subr.mxu0 0.0
        %2385 = vmatpush2.msra.mxu0 0.0
        %2386 = vmatprep.subr.mxu0 0.0
        %2387 = vmatpush2.msra.mxu0 0.0
        %2388 = vmatprep.subr.mxu0 0.0
        %2389 = vmatpush2.msra.mxu0 0.0
        %2390 = vmatprep.subr.mxu0 0.0
        %2391 = vmatpush2.msra.mxu0 0.0
        %2392 = vmatprep.subr.mxu0 0.0
        %2393 = vmatpush2.msra.mxu0 0.0
        %2394 = vmatprep.subr.mxu0 0.0
        %2395 = vmatpush2.msra.mxu0 0.0
        %2396 = vmatprep.subr.mxu0 0.0
        %2397 = vmatpush2.msra.mxu0 0.0
        %2398 = vmatprep.subr.mxu0 0.0
        %2399 = vmatpush2.msra.mxu0 0.0
        %2400 = vmatprep.subr.mxu0 0.0
        %2401 = vmatpush2.msra.mxu0 0.0
        %2402 = vmatprep.subr.mxu0 0.0
        %2403 = vmatpush2.msra.mxu0 0.0
        %2404 = vmatprep.subr.mxu0 0.0
        %2405 = vmatpush2.msra.mxu0 0.0
        %2406 = vmatprep.subr.mxu0 0.0
        %2407 = vmatpush2.msra.mxu0 0.0
        %2408 = vmatprep.subr.mxu0 0.0
        %2409 = vmatpush2.msra.mxu0 0.0
        %2410 = vmatprep.mubr.f32.mxu0 0.0
        %v2411 = vand.u32 %v1723, 4294901760
        %2412 = vmatmul.mubr.f32.gmra.mxu0 %v2411
        %v2413 = vpop.f32.mrf.mxu0
        %v2414 = vadd.f32 %v2318, %v2413
        %v2415 = vpop.f32.mrf.mxu0
        %2416 = vmatprep.mubr.f32.mxu0 0.0
        %v2417 = vand.u32 %v1726, 4294901760
        %2418 = vmatmul.mubr.f32.gmra.mxu0 %v2417
        %v2419 = vpop.f32.mrf.mxu0
        %v2420 = vadd.f32 %v2328, %v2419
        %v2421 = vpop.f32.mrf.mxu0
        %2422 = vdwg.mxu0
        %2423 = vmatprep.subr.mxu0 0.0
        %2424 = vmatpush1.msra.mxu0 0.0
        %2425 = vmatprep.subr.mxu0 0.0
        %2426 = vmatpush1.msra.mxu0 0.0
        %2427 = vmatprep.subr.mxu0 0.0
        %2428 = vmatpush1.msra.mxu0 0.0
        %2429 = vmatprep.subr.mxu0 0.0
        %2430 = vmatpush1.msra.mxu0 0.0
        %2431 = vmatprep.subr.mxu0 0.0
        %2432 = vmatpush1.msra.mxu0 0.0
        %2433 = vmatprep.subr.mxu0 0.0
        %2434 = vmatpush1.msra.mxu0 0.0
        %2435 = vmatprep.subr.mxu0 0.0
        %2436 = vmatpush1.msra.mxu0 0.0
        %2437 = vmatprep.subr.mxu0 0.0
        %2438 = vmatpush1.msra.mxu0 0.0
        %2439 = vmatprep.subr.mxu0 0.0
        %2440 = vmatpush1.msra.mxu0 0.0
        %2441 = vmatprep.subr.mxu0 0.0
        %2442 = vmatpush1.msra.mxu0 0.0
        %2443 = vmatprep.subr.mxu0 0.0
        %2444 = vmatpush1.msra.mxu0 0.0
        %2445 = vmatprep.subr.mxu0 0.0
        %2446 = vmatpush1.msra.mxu0 0.0
        %2447 = vmatprep.subr.mxu0 0.0
        %2448 = vmatpush1.msra.mxu0 0.0
        %2449 = vmatprep.subr.mxu0 0.0
        %v2450 = vand.u32 %v1629, 4294901760
        %v2451 = vsub.f32 %v1629, %v2450
        %2452 = vmatpush1.msra.mxu0 %v2451
        %2453 = vmatprep.subr.mxu0 0.0
        %v2454 = vand.u32 %v1623, 4294901760
        %v2455 = vsub.f32 %v1623, %v2454
        %2456 = vmatpush1.msra.mxu0 %v2455
        %2457 = vmatprep.subr.mxu0 0.0
        %v2458 = vand.u32 %v1617, 4294901760
        %v2459 = vsub.f32 %v1617, %v2458
        %2460 = vmatpush1.msra.mxu0 %v2459
        %2461 = vmatprep.subr.mxu0 0.0
        %2462 = vmatpush2.msra.mxu0 0.0
        %2463 = vmatprep.subr.mxu0 0.0
        %2464 = vmatpush2.msra.mxu0 0.0
        %2465 = vmatprep.subr.mxu0 0.0
        %2466 = vmatpush2.msra.mxu0 0.0
        %2467 = vmatprep.subr.mxu0 0.0
        %2468 = vmatpush2.msra.mxu0 0.0
        %2469 = vmatprep.subr.mxu0 0.0
        %2470 = vmatpush2.msra.mxu0 0.0
        %2471 = vmatprep.subr.mxu0 0.0
        %2472 = vmatpush2.msra.mxu0 0.0
        %2473 = vmatprep.subr.mxu0 0.0
        %2474 = vmatpush2.msra.mxu0 0.0
        %2475 = vmatprep.subr.mxu0 0.0
        %2476 = vmatpush2.msra.mxu0 0.0
        %2477 = vmatprep.subr.mxu0 0.0
        %2478 = vmatpush2.msra.mxu0 0.0
        %2479 = vmatprep.subr.mxu0 0.0
        %2480 = vmatpush2.msra.mxu0 0.0
        %2481 = vmatprep.subr.mxu0 0.0
        %2482 = vmatpush2.msra.mxu0 0.0
        %2483 = vmatprep.subr.mxu0 0.0
        %2484 = vmatpush2.msra.mxu0 0.0
        %2485 = vmatprep.subr.mxu0 0.0
        %2486 = vmatpush2.msra.mxu0 0.0
        %2487 = vmatprep.subr.mxu0 0.0
        %2488 = vmatpush2.msra.mxu0 0.0
        %2489 = vmatprep.subr.mxu0 0.0
        %2490 = vmatpush2.msra.mxu0 0.0
        %2491 = vmatprep.subr.mxu0 0.0
        %2492 = vmatpush2.msra.mxu0 0.0
        %2493 = vmatprep.mubr.f32.mxu0 0.0
        %v2494 = vand.u32 %v1723, 4294901760
        %v2495 = vsub.f32 %v1723, %v2494
        %2496 = vmatmul.mubr.f32.gmra.mxu0 %v2495
        %v2497 = vpop.f32.mrf.mxu0
        %v2498 = vadd.f32 %v2414, %v2497
        %v2499 = vpop.f32.mrf.mxu0
        %2500 = vmatprep.mubr.f32.mxu0 0.0
        %v2501 = vand.u32 %v1726, 4294901760
        %v2502 = vsub.f32 %v1726, %v2501
        %2503 = vmatmul.mubr.f32.gmra.mxu0 %v2502
        %v2504 = vpop.f32.mrf.mxu0
        %v2505 = vadd.f32 %v2420, %v2504
        %v2506 = vpop.f32.mrf.mxu0
        %2507 = vdwg.mxu0
        %2508 = vmatprep.subr.mxu0 0.0
        %2509 = vmatpush1.msra.mxu0 0.0
        %2510 = vmatprep.subr.mxu0 0.0
        %2511 = vmatpush1.msra.mxu0 0.0
        %2512 = vmatprep.subr.mxu0 0.0
        %2513 = vmatpush1.msra.mxu0 0.0
        %2514 = vmatprep.subr.mxu0 0.0
        %2515 = vmatpush1.msra.mxu0 0.0
        %2516 = vmatprep.subr.mxu0 0.0
        %2517 = vmatpush1.msra.mxu0 0.0
        %2518 = vmatprep.subr.mxu0 0.0
        %2519 = vmatpush1.msra.mxu0 0.0
        %2520 = vmatprep.subr.mxu0 0.0
        %2521 = vmatpush1.msra.mxu0 0.0
        %2522 = vmatprep.subr.mxu0 0.0
        %2523 = vmatpush1.msra.mxu0 0.0
        %2524 = vmatprep.subr.mxu0 0.0
        %2525 = vmatpush1.msra.mxu0 0.0
        %2526 = vmatprep.subr.mxu0 0.0
        %2527 = vmatpush1.msra.mxu0 0.0
        %2528 = vmatprep.subr.mxu0 0.0
        %2529 = vmatpush1.msra.mxu0 0.0
        %2530 = vmatprep.subr.mxu0 0.0
        %2531 = vmatpush1.msra.mxu0 0.0
        %2532 = vmatprep.subr.mxu0 0.0
        %2533 = vmatpush1.msra.mxu0 0.0
        %2534 = vmatprep.subr.mxu0 0.0
        %v2535 = vand.u32 %v1629, 4294901760
        %2536 = vmatpush1.msra.mxu0 %v2535
        %2537 = vmatprep.subr.mxu0 0.0
        %v2538 = vand.u32 %v1623, 4294901760
        %2539 = vmatpush1.msra.mxu0 %v2538
        %2540 = vmatprep.subr.mxu0 0.0
        %v2541 = vand.u32 %v1617, 4294901760
        %2542 = vmatpush1.msra.mxu0 %v2541
        %2543 = vmatprep.subr.mxu0 0.0
        %2544 = vmatpush2.msra.mxu0 0.0
        %2545 = vmatprep.subr.mxu0 0.0
        %2546 = vmatpush2.msra.mxu0 0.0
        %2547 = vmatprep.subr.mxu0 0.0
        %2548 = vmatpush2.msra.mxu0 0.0
        %2549 = vmatprep.subr.mxu0 0.0
        %2550 = vmatpush2.msra.mxu0 0.0
        %2551 = vmatprep.subr.mxu0 0.0
        %2552 = vmatpush2.msra.mxu0 0.0
        %2553 = vmatprep.subr.mxu0 0.0
        %2554 = vmatpush2.msra.mxu0 0.0
        %2555 = vmatprep.subr.mxu0 0.0
        %2556 = vmatpush2.msra.mxu0 0.0
        %2557 = vmatprep.subr.mxu0 0.0
        %2558 = vmatpush2.msra.mxu0 0.0
        %2559 = vmatprep.subr.mxu0 0.0
        %2560 = vmatpush2.msra.mxu0 0.0
        %2561 = vmatprep.subr.mxu0 0.0
        %2562 = vmatpush2.msra.mxu0 0.0
        %2563 = vmatprep.subr.mxu0 0.0
        %2564 = vmatpush2.msra.mxu0 0.0
        %2565 = vmatprep.subr.mxu0 0.0
        %2566 = vmatpush2.msra.mxu0 0.0
        %2567 = vmatprep.subr.mxu0 0.0
        %2568 = vmatpush2.msra.mxu0 0.0
        %2569 = vmatprep.subr.mxu0 0.0
        %2570 = vmatpush2.msra.mxu0 0.0
        %2571 = vmatprep.subr.mxu0 0.0
        %2572 = vmatpush2.msra.mxu0 0.0
        %2573 = vmatprep.subr.mxu0 0.0
        %2574 = vmatpush2.msra.mxu0 0.0
        %2575 = vmatprep.mubr.f32.mxu0 0.0
        %v2576 = vand.u32 %v1723, 4294901760
        %v2577 = vsub.f32 %v1723, %v2576
        %v2578 = vand.u32 %v2577, 4294901760
        %2579 = vmatmul.mubr.f32.gmra.mxu0 %v2578
        %v2580 = vpop.f32.mrf.mxu0
        %v2581 = vadd.f32 %v2498, %v2580
        %v2582 = vpop.f32.mrf.mxu0
        %2583 = vmatprep.mubr.f32.mxu0 0.0
        %v2584 = vand.u32 %v1726, 4294901760
        %v2585 = vsub.f32 %v1726, %v2584
        %v2586 = vand.u32 %v2585, 4294901760
        %2587 = vmatmul.mubr.f32.gmra.mxu0 %v2586
        %v2588 = vpop.f32.mrf.mxu0
        %v2589 = vadd.f32 %v2505, %v2588
        %v2590 = vpop.f32.mrf.mxu0
        %2591 = vdwg.mxu0
        %2592 = vmatprep.subr.mxu0 0.0
        %2593 = vmatpush1.msra.mxu0 0.0
        %2594 = vmatprep.subr.mxu0 0.0
        %2595 = vmatpush1.msra.mxu0 0.0
        %2596 = vmatprep.subr.mxu0 0.0
        %2597 = vmatpush1.msra.mxu0 0.0
        %2598 = vmatprep.subr.mxu0 0.0
        %2599 = vmatpush1.msra.mxu0 0.0
        %2600 = vmatprep.subr.mxu0 0.0
        %2601 = vmatpush1.msra.mxu0 0.0
        %2602 = vmatprep.subr.mxu0 0.0
        %2603 = vmatpush1.msra.mxu0 0.0
        %2604 = vmatprep.subr.mxu0 0.0
        %2605 = vmatpush1.msra.mxu0 0.0
        %2606 = vmatprep.subr.mxu0 0.0
        %2607 = vmatpush1.msra.mxu0 0.0
        %2608 = vmatprep.subr.mxu0 0.0
        %2609 = vmatpush1.msra.mxu0 0.0
        %2610 = vmatprep.subr.mxu0 0.0
        %2611 = vmatpush1.msra.mxu0 0.0
        %2612 = vmatprep.subr.mxu0 0.0
        %2613 = vmatpush1.msra.mxu0 0.0
        %2614 = vmatprep.subr.mxu0 0.0
        %2615 = vmatpush1.msra.mxu0 0.0
        %2616 = vmatprep.subr.mxu0 0.0
        %2617 = vmatpush1.msra.mxu0 0.0
        %2618 = vmatprep.subr.mxu0 0.0
        %v2619 = vand.u32 %v1629, 4294901760
        %v2620 = vsub.f32 %v1629, %v2619
        %v2621 = vand.u32 %v2620, 4294901760
        %2622 = vmatpush1.msra.mxu0 %v2621
        %2623 = vmatprep.subr.mxu0 0.0
        %v2624 = vand.u32 %v1623, 4294901760
        %v2625 = vsub.f32 %v1623, %v2624
        %v2626 = vand.u32 %v2625, 4294901760
        %2627 = vmatpush1.msra.mxu0 %v2626
        %2628 = vmatprep.subr.mxu0 0.0
        %v2629 = vand.u32 %v1617, 4294901760
        %v2630 = vsub.f32 %v1617, %v2629
        %v2631 = vand.u32 %v2630, 4294901760
        %2632 = vmatpush1.msra.mxu0 %v2631
        %2633 = vmatprep.subr.mxu0 0.0
        %2634 = vmatpush2.msra.mxu0 0.0
        %2635 = vmatprep.subr.mxu0 0.0
        %2636 = vmatpush2.msra.mxu0 0.0
        %2637 = vmatprep.subr.mxu0 0.0
        %2638 = vmatpush2.msra.mxu0 0.0
        %2639 = vmatprep.subr.mxu0 0.0
        %2640 = vmatpush2.msra.mxu0 0.0
        %2641 = vmatprep.subr.mxu0 0.0
        %2642 = vmatpush2.msra.mxu0 0.0
        %2643 = vmatprep.subr.mxu0 0.0
        %2644 = vmatpush2.msra.mxu0 0.0
        %2645 = vmatprep.subr.mxu0 0.0
        %2646 = vmatpush2.msra.mxu0 0.0
        %2647 = vmatprep.subr.mxu0 0.0
        %2648 = vmatpush2.msra.mxu0 0.0
        %2649 = vmatprep.subr.mxu0 0.0
        %2650 = vmatpush2.msra.mxu0 0.0
        %2651 = vmatprep.subr.mxu0 0.0
        %2652 = vmatpush2.msra.mxu0 0.0
        %2653 = vmatprep.subr.mxu0 0.0
        %2654 = vmatpush2.msra.mxu0 0.0
        %2655 = vmatprep.subr.mxu0 0.0
        %2656 = vmatpush2.msra.mxu0 0.0
        %2657 = vmatprep.subr.mxu0 0.0
        %2658 = vmatpush2.msra.mxu0 0.0
        %2659 = vmatprep.subr.mxu0 0.0
        %2660 = vmatpush2.msra.mxu0 0.0
        %2661 = vmatprep.subr.mxu0 0.0
        %2662 = vmatpush2.msra.mxu0 0.0
        %2663 = vmatprep.subr.mxu0 0.0
        %2664 = vmatpush2.msra.mxu0 0.0
        %2665 = vmatprep.mubr.f32.mxu0 0.0
        %v2666 = vand.u32 %v1723, 4294901760
        %2667 = vmatmul.mubr.f32.gmra.mxu0 %v2666
        %v2668 = vpop.f32.mrf.mxu0
        %v2669 = vadd.f32 %v2581, %v2668
        %v2670 = vpop.f32.mrf.mxu0
        %2671 = vmatprep.mubr.f32.mxu0 0.0
        %v2672 = vand.u32 %v1726, 4294901760
        %2673 = vmatmul.mubr.f32.gmra.mxu0 %v2672
        %v2674 = vpop.f32.mrf.mxu0
        %v2675 = vadd.f32 %v2589, %v2674
        %v2676 = vpop.f32.mrf.mxu0
        %2677 = vdwg.mxu0
        %2678 = vmatprep.subr.mxu0 0.0
        %2679 = vmatpush1.msra.mxu0 0.0
        %2680 = vmatprep.subr.mxu0 0.0
        %2681 = vmatpush1.msra.mxu0 0.0
        %2682 = vmatprep.subr.mxu0 0.0
        %2683 = vmatpush1.msra.mxu0 0.0
        %2684 = vmatprep.subr.mxu0 0.0
        %2685 = vmatpush1.msra.mxu0 0.0
        %2686 = vmatprep.subr.mxu0 0.0
        %2687 = vmatpush1.msra.mxu0 0.0
        %2688 = vmatprep.subr.mxu0 0.0
        %2689 = vmatpush1.msra.mxu0 0.0
        %2690 = vmatprep.subr.mxu0 0.0
        %2691 = vmatpush1.msra.mxu0 0.0
        %2692 = vmatprep.subr.mxu0 0.0
        %2693 = vmatpush1.msra.mxu0 0.0
        %2694 = vmatprep.subr.mxu0 0.0
        %2695 = vmatpush1.msra.mxu0 0.0
        %2696 = vmatprep.subr.mxu0 0.0
        %2697 = vmatpush1.msra.mxu0 0.0
        %2698 = vmatprep.subr.mxu0 0.0
        %2699 = vmatpush1.msra.mxu0 0.0
        %2700 = vmatprep.subr.mxu0 0.0
        %2701 = vmatpush1.msra.mxu0 0.0
        %2702 = vmatprep.subr.mxu0 0.0
        %2703 = vmatpush1.msra.mxu0 0.0
        %2704 = vmatprep.subr.mxu0 0.0
        %v2705 = vand.u32 %v1629, 4294901760
        %2706 = vmatpush1.msra.mxu0 %v2705
        %2707 = vmatprep.subr.mxu0 0.0
        %v2708 = vand.u32 %v1623, 4294901760
        %2709 = vmatpush1.msra.mxu0 %v2708
        %2710 = vmatprep.subr.mxu0 0.0
        %v2711 = vand.u32 %v1617, 4294901760
        %2712 = vmatpush1.msra.mxu0 %v2711
        %2713 = vmatprep.subr.mxu0 0.0
        %2714 = vmatpush2.msra.mxu0 0.0
        %2715 = vmatprep.subr.mxu0 0.0
        %2716 = vmatpush2.msra.mxu0 0.0
        %2717 = vmatprep.subr.mxu0 0.0
        %2718 = vmatpush2.msra.mxu0 0.0
        %2719 = vmatprep.subr.mxu0 0.0
        %2720 = vmatpush2.msra.mxu0 0.0
        %2721 = vmatprep.subr.mxu0 0.0
        %2722 = vmatpush2.msra.mxu0 0.0
        %2723 = vmatprep.subr.mxu0 0.0
        %2724 = vmatpush2.msra.mxu0 0.0
        %2725 = vmatprep.subr.mxu0 0.0
        %2726 = vmatpush2.msra.mxu0 0.0
        %2727 = vmatprep.subr.mxu0 0.0
        %2728 = vmatpush2.msra.mxu0 0.0
        %2729 = vmatprep.subr.mxu0 0.0
        %2730 = vmatpush2.msra.mxu0 0.0
        %2731 = vmatprep.subr.mxu0 0.0
        %2732 = vmatpush2.msra.mxu0 0.0
        %2733 = vmatprep.subr.mxu0 0.0
        %2734 = vmatpush2.msra.mxu0 0.0
        %2735 = vmatprep.subr.mxu0 0.0
        %2736 = vmatpush2.msra.mxu0 0.0
        %2737 = vmatprep.subr.mxu0 0.0
        %2738 = vmatpush2.msra.mxu0 0.0
        %2739 = vmatprep.subr.mxu0 0.0
        %2740 = vmatpush2.msra.mxu0 0.0
        %2741 = vmatprep.subr.mxu0 0.0
        %2742 = vmatpush2.msra.mxu0 0.0
        %2743 = vmatprep.subr.mxu0 0.0
        %2744 = vmatpush2.msra.mxu0 0.0
        %2745 = vmatprep.mubr.f32.mxu0 0.0
        %v2746 = vand.u32 %v1723, 4294901760
        %2747 = vmatmul.mubr.f32.gmra.mxu0 %v2746
        %v2748 = vpop.f32.mrf.mxu0
        %v2749 = vadd.f32 %v2669, %v2748
        %v2750 = vpop.f32.mrf.mxu0
        %2751 = vmatprep.mubr.f32.mxu0 0.0
        %v2752 = vand.u32 %v1726, 4294901760
        %2753 = vmatmul.mubr.f32.gmra.mxu0 %v2752
        %v2754 = vpop.f32.mrf.mxu0
        %v2755 = vadd.f32 %v2675, %v2754
        %v2756 = vpop.f32.mrf.mxu0
        %2757 = vdwg.mxu0
        %2758 = vmatprep.subr.mxu0 0.0
        %2759 = vmatpush1.msra.mxu0 0.0
        %2760 = vmatprep.subr.mxu0 0.0
        %2761 = vmatpush1.msra.mxu0 0.0
        %2762 = vmatprep.subr.mxu0 0.0
        %2763 = vmatpush1.msra.mxu0 0.0
        %2764 = vmatprep.subr.mxu0 0.0
        %2765 = vmatpush1.msra.mxu0 0.0
        %2766 = vmatprep.subr.mxu0 0.0
        %2767 = vmatpush1.msra.mxu0 0.0
        %2768 = vmatprep.subr.mxu0 0.0
        %2769 = vmatpush1.msra.mxu0 0.0
        %2770 = vmatprep.subr.mxu0 0.0
        %2771 = vmatpush1.msra.mxu0 0.0
        %2772 = vmatprep.subr.mxu0 0.0
        %2773 = vmatpush1.msra.mxu0 0.0
        %2774 = vmatprep.subr.mxu0 0.0
        %2775 = vmatpush1.msra.mxu0 0.0
        %2776 = vmatprep.subr.mxu0 0.0
        %2777 = vmatpush1.msra.mxu0 0.0
        %2778 = vmatprep.subr.mxu0 0.0
        %2779 = vmatpush1.msra.mxu0 0.0
        %2780 = vmatprep.subr.mxu0 0.0
        %2781 = vmatpush1.msra.mxu0 0.0
        %2782 = vmatprep.subr.mxu0 0.0
        %2783 = vmatpush1.msra.mxu0 0.0
        %2784 = vmatprep.subr.mxu0 0.0
        %v2785 = vand.u32 %v1647, 4294901760
        %2786 = vmatpush1.msra.mxu0 %v2785
        %2787 = vmatprep.subr.mxu0 0.0
        %v2788 = vand.u32 %v1641, 4294901760
        %2789 = vmatpush1.msra.mxu0 %v2788
        %2790 = vmatprep.subr.mxu0 0.0
        %v2791 = vand.u32 %v1635, 4294901760
        %2792 = vmatpush1.msra.mxu0 %v2791
        %2793 = vmatprep.subr.mxu0 0.0
        %2794 = vmatpush2.msra.mxu0 0.0
        %2795 = vmatprep.subr.mxu0 0.0
        %2796 = vmatpush2.msra.mxu0 0.0
        %2797 = vmatprep.subr.mxu0 0.0
        %2798 = vmatpush2.msra.mxu0 0.0
        %2799 = vmatprep.subr.mxu0 0.0
        %2800 = vmatpush2.msra.mxu0 0.0
        %2801 = vmatprep.subr.mxu0 0.0
        %2802 = vmatpush2.msra.mxu0 0.0
        %2803 = vmatprep.subr.mxu0 0.0
        %2804 = vmatpush2.msra.mxu0 0.0
        %2805 = vmatprep.subr.mxu0 0.0
        %2806 = vmatpush2.msra.mxu0 0.0
        %2807 = vmatprep.subr.mxu0 0.0
        %2808 = vmatpush2.msra.mxu0 0.0
        %2809 = vmatprep.subr.mxu0 0.0
        %2810 = vmatpush2.msra.mxu0 0.0
        %2811 = vmatprep.subr.mxu0 0.0
        %2812 = vmatpush2.msra.mxu0 0.0
        %2813 = vmatprep.subr.mxu0 0.0
        %2814 = vmatpush2.msra.mxu0 0.0
        %2815 = vmatprep.subr.mxu0 0.0
        %2816 = vmatpush2.msra.mxu0 0.0
        %2817 = vmatprep.subr.mxu0 0.0
        %2818 = vmatpush2.msra.mxu0 0.0
        %2819 = vmatprep.subr.mxu0 0.0
        %2820 = vmatpush2.msra.mxu0 0.0
        %2821 = vmatprep.subr.mxu0 0.0
        %2822 = vmatpush2.msra.mxu0 0.0
        %2823 = vmatprep.subr.mxu0 0.0
        %2824 = vmatpush2.msra.mxu0 0.0
        %2825 = vmatprep.mubr.f32.mxu0 0.0
        %v2826 = vand.u32 %v1723, 4294901760
        %v2827 = vsub.f32 %v1723, %v2826
        %v2828 = vand.u32 %v2827, 4294901760
        %v2829 = vsub.f32 %v2827, %v2828
        %v2830 = vand.u32 %v2829, 4294901760
        %2831 = vmatmul.mubr.f32.gmra.mxu0 %v2830
        %v2832 = vpop.f32.mrf.mxu0
        %v2833 = vadd.f32 0.0, %v2832
        %v2834 = vpop.f32.mrf.mxu0
        %2835 = vmatprep.mubr.f32.mxu0 0.0
        %v2836 = vand.u32 %v1726, 4294901760
        %v2837 = vsub.f32 %v1726, %v2836
        %v2838 = vand.u32 %v2837, 4294901760
        %v2839 = vsub.f32 %v2837, %v2838
        %v2840 = vand.u32 %v2839, 4294901760
        %2841 = vmatmul.mubr.f32.gmra.mxu0 %v2840
        %v2842 = vpop.f32.mrf.mxu0
        %v2843 = vadd.f32 0.0, %v2842
        %v2844 = vpop.f32.mrf.mxu0
        %2845 = vdwg.mxu0
        %2846 = vmatprep.subr.mxu0 0.0
        %2847 = vmatpush1.msra.mxu0 0.0
        %2848 = vmatprep.subr.mxu0 0.0
        %2849 = vmatpush1.msra.mxu0 0.0
        %2850 = vmatprep.subr.mxu0 0.0
        %2851 = vmatpush1.msra.mxu0 0.0
        %2852 = vmatprep.subr.mxu0 0.0
        %2853 = vmatpush1.msra.mxu0 0.0
        %2854 = vmatprep.subr.mxu0 0.0
        %2855 = vmatpush1.msra.mxu0 0.0
        %2856 = vmatprep.subr.mxu0 0.0
        %2857 = vmatpush1.msra.mxu0 0.0
        %2858 = vmatprep.subr.mxu0 0.0
        %2859 = vmatpush1.msra.mxu0 0.0
        %2860 = vmatprep.subr.mxu0 0.0
        %2861 = vmatpush1.msra.mxu0 0.0
        %2862 = vmatprep.subr.mxu0 0.0
        %2863 = vmatpush1.msra.mxu0 0.0
        %2864 = vmatprep.subr.mxu0 0.0
        %2865 = vmatpush1.msra.mxu0 0.0
        %2866 = vmatprep.subr.mxu0 0.0
        %2867 = vmatpush1.msra.mxu0 0.0
        %2868 = vmatprep.subr.mxu0 0.0
        %2869 = vmatpush1.msra.mxu0 0.0
        %2870 = vmatprep.subr.mxu0 0.0
        %2871 = vmatpush1.msra.mxu0 0.0
        %2872 = vmatprep.subr.mxu0 0.0
        %v2873 = vand.u32 %v1647, 4294901760
        %v2874 = vsub.f32 %v1647, %v2873
        %v2875 = vand.u32 %v2874, 4294901760
        %v2876 = vsub.f32 %v2874, %v2875
        %v2877 = vand.u32 %v2876, 4294901760
        %2878 = vmatpush1.msra.mxu0 %v2877
        %2879 = vmatprep.subr.mxu0 0.0
        %v2880 = vand.u32 %v1641, 4294901760
        %v2881 = vsub.f32 %v1641, %v2880
        %v2882 = vand.u32 %v2881, 4294901760
        %v2883 = vsub.f32 %v2881, %v2882
        %v2884 = vand.u32 %v2883, 4294901760
        %2885 = vmatpush1.msra.mxu0 %v2884
        %2886 = vmatprep.subr.mxu0 0.0
        %v2887 = vand.u32 %v1635, 4294901760
        %v2888 = vsub.f32 %v1635, %v2887
        %v2889 = vand.u32 %v2888, 4294901760
        %v2890 = vsub.f32 %v2888, %v2889
        %v2891 = vand.u32 %v2890, 4294901760
        %2892 = vmatpush1.msra.mxu0 %v2891
        %2893 = vmatprep.subr.mxu0 0.0
        %2894 = vmatpush2.msra.mxu0 0.0
        %2895 = vmatprep.subr.mxu0 0.0
        %2896 = vmatpush2.msra.mxu0 0.0
        %2897 = vmatprep.subr.mxu0 0.0
        %2898 = vmatpush2.msra.mxu0 0.0
        %2899 = vmatprep.subr.mxu0 0.0
        %2900 = vmatpush2.msra.mxu0 0.0
        %2901 = vmatprep.subr.mxu0 0.0
        %2902 = vmatpush2.msra.mxu0 0.0
        %2903 = vmatprep.subr.mxu0 0.0
        %2904 = vmatpush2.msra.mxu0 0.0
        %2905 = vmatprep.subr.mxu0 0.0
        %2906 = vmatpush2.msra.mxu0 0.0
        %2907 = vmatprep.subr.mxu0 0.0
        %2908 = vmatpush2.msra.mxu0 0.0
        %2909 = vmatprep.subr.mxu0 0.0
        %2910 = vmatpush2.msra.mxu0 0.0
        %2911 = vmatprep.subr.mxu0 0.0
        %2912 = vmatpush2.msra.mxu0 0.0
        %2913 = vmatprep.subr.mxu0 0.0
        %2914 = vmatpush2.msra.mxu0 0.0
        %2915 = vmatprep.subr.mxu0 0.0
        %2916 = vmatpush2.msra.mxu0 0.0
        %2917 = vmatprep.subr.mxu0 0.0
        %2918 = vmatpush2.msra.mxu0 0.0
        %2919 = vmatprep.subr.mxu0 0.0
        %2920 = vmatpush2.msra.mxu0 0.0
        %2921 = vmatprep.subr.mxu0 0.0
        %2922 = vmatpush2.msra.mxu0 0.0
        %2923 = vmatprep.subr.mxu0 0.0
        %2924 = vmatpush2.msra.mxu0 0.0
        %2925 = vmatprep.mubr.f32.mxu0 0.0
        %v2926 = vand.u32 %v1723, 4294901760
        %2927 = vmatmul.mubr.f32.gmra.mxu0 %v2926
        %v2928 = vpop.f32.mrf.mxu0
        %v2929 = vadd.f32 %v2833, %v2928
        %v2930 = vpop.f32.mrf.mxu0
        %2931 = vmatprep.mubr.f32.mxu0 0.0
        %v2932 = vand.u32 %v1726, 4294901760
        %2933 = vmatmul.mubr.f32.gmra.mxu0 %v2932
        %v2934 = vpop.f32.mrf.mxu0
        %v2935 = vadd.f32 %v2843, %v2934
        %v2936 = vpop.f32.mrf.mxu0
        %2937 = vdwg.mxu0
        %2938 = vmatprep.subr.mxu0 0.0
        %2939 = vmatpush1.msra.mxu0 0.0
        %2940 = vmatprep.subr.mxu0 0.0
        %2941 = vmatpush1.msra.mxu0 0.0
        %2942 = vmatprep.subr.mxu0 0.0
        %2943 = vmatpush1.msra.mxu0 0.0
        %2944 = vmatprep.subr.mxu0 0.0
        %2945 = vmatpush1.msra.mxu0 0.0
        %2946 = vmatprep.subr.mxu0 0.0
        %2947 = vmatpush1.msra.mxu0 0.0
        %2948 = vmatprep.subr.mxu0 0.0
        %2949 = vmatpush1.msra.mxu0 0.0
        %2950 = vmatprep.subr.mxu0 0.0
        %2951 = vmatpush1.msra.mxu0 0.0
        %2952 = vmatprep.subr.mxu0 0.0
        %2953 = vmatpush1.msra.mxu0 0.0
        %2954 = vmatprep.subr.mxu0 0.0
        %2955 = vmatpush1.msra.mxu0 0.0
        %2956 = vmatprep.subr.mxu0 0.0
        %2957 = vmatpush1.msra.mxu0 0.0
        %2958 = vmatprep.subr.mxu0 0.0
        %2959 = vmatpush1.msra.mxu0 0.0
        %2960 = vmatprep.subr.mxu0 0.0
        %2961 = vmatpush1.msra.mxu0 0.0
        %2962 = vmatprep.subr.mxu0 0.0
        %2963 = vmatpush1.msra.mxu0 0.0
        %2964 = vmatprep.subr.mxu0 0.0
        %v2965 = vand.u32 %v1647, 4294901760
        %v2966 = vsub.f32 %v1647, %v2965
        %2967 = vmatpush1.msra.mxu0 %v2966
        %2968 = vmatprep.subr.mxu0 0.0
        %v2969 = vand.u32 %v1641, 4294901760
        %v2970 = vsub.f32 %v1641, %v2969
        %2971 = vmatpush1.msra.mxu0 %v2970
        %2972 = vmatprep.subr.mxu0 0.0
        %v2973 = vand.u32 %v1635, 4294901760
        %v2974 = vsub.f32 %v1635, %v2973
        %2975 = vmatpush1.msra.mxu0 %v2974
        %2976 = vmatprep.subr.mxu0 0.0
        %2977 = vmatpush2.msra.mxu0 0.0
        %2978 = vmatprep.subr.mxu0 0.0
        %2979 = vmatpush2.msra.mxu0 0.0
        %2980 = vmatprep.subr.mxu0 0.0
        %2981 = vmatpush2.msra.mxu0 0.0
        %2982 = vmatprep.subr.mxu0 0.0
        %2983 = vmatpush2.msra.mxu0 0.0
        %2984 = vmatprep.subr.mxu0 0.0
        %2985 = vmatpush2.msra.mxu0 0.0
        %2986 = vmatprep.subr.mxu0 0.0
        %2987 = vmatpush2.msra.mxu0 0.0
        %2988 = vmatprep.subr.mxu0 0.0
        %2989 = vmatpush2.msra.mxu0 0.0
        %2990 = vmatprep.subr.mxu0 0.0
        %2991 = vmatpush2.msra.mxu0 0.0
        %2992 = vmatprep.subr.mxu0 0.0
        %2993 = vmatpush2.msra.mxu0 0.0
        %2994 = vmatprep.subr.mxu0 0.0
        %2995 = vmatpush2.msra.mxu0 0.0
        %2996 = vmatprep.subr.mxu0 0.0
        %2997 = vmatpush2.msra.mxu0 0.0
        %2998 = vmatprep.subr.mxu0 0.0
        %2999 = vmatpush2.msra.mxu0 0.0
        %3000 = vmatprep.subr.mxu0 0.0
        %3001 = vmatpush2.msra.mxu0 0.0
        %3002 = vmatprep.subr.mxu0 0.0
        %3003 = vmatpush2.msra.mxu0 0.0
        %3004 = vmatprep.subr.mxu0 0.0
        %3005 = vmatpush2.msra.mxu0 0.0
        %3006 = vmatprep.subr.mxu0 0.0
        %3007 = vmatpush2.msra.mxu0 0.0
        %3008 = vmatprep.mubr.f32.mxu0 0.0
        %v3009 = vand.u32 %v1723, 4294901760
        %v3010 = vsub.f32 %v1723, %v3009
        %3011 = vmatmul.mubr.f32.gmra.mxu0 %v3010
        %v3012 = vpop.f32.mrf.mxu0
        %v3013 = vadd.f32 %v2929, %v3012
        %v3014 = vpop.f32.mrf.mxu0
        %3015 = vmatprep.mubr.f32.mxu0 0.0
        %v3016 = vand.u32 %v1726, 4294901760
        %v3017 = vsub.f32 %v1726, %v3016
        %3018 = vmatmul.mubr.f32.gmra.mxu0 %v3017
        %v3019 = vpop.f32.mrf.mxu0
        %v3020 = vadd.f32 %v2935, %v3019
        %v3021 = vpop.f32.mrf.mxu0
        %3022 = vdwg.mxu0
        %3023 = vmatprep.subr.mxu0 0.0
        %3024 = vmatpush1.msra.mxu0 0.0
        %3025 = vmatprep.subr.mxu0 0.0
        %3026 = vmatpush1.msra.mxu0 0.0
        %3027 = vmatprep.subr.mxu0 0.0
        %3028 = vmatpush1.msra.mxu0 0.0
        %3029 = vmatprep.subr.mxu0 0.0
        %3030 = vmatpush1.msra.mxu0 0.0
        %3031 = vmatprep.subr.mxu0 0.0
        %3032 = vmatpush1.msra.mxu0 0.0
        %3033 = vmatprep.subr.mxu0 0.0
        %3034 = vmatpush1.msra.mxu0 0.0
        %3035 = vmatprep.subr.mxu0 0.0
        %3036 = vmatpush1.msra.mxu0 0.0
        %3037 = vmatprep.subr.mxu0 0.0
        %3038 = vmatpush1.msra.mxu0 0.0
        %3039 = vmatprep.subr.mxu0 0.0
        %3040 = vmatpush1.msra.mxu0 0.0
        %3041 = vmatprep.subr.mxu0 0.0
        %3042 = vmatpush1.msra.mxu0 0.0
        %3043 = vmatprep.subr.mxu0 0.0
        %3044 = vmatpush1.msra.mxu0 0.0
        %3045 = vmatprep.subr.mxu0 0.0
        %3046 = vmatpush1.msra.mxu0 0.0
        %3047 = vmatprep.subr.mxu0 0.0
        %3048 = vmatpush1.msra.mxu0 0.0
        %3049 = vmatprep.subr.mxu0 0.0
        %v3050 = vand.u32 %v1647, 4294901760
        %3051 = vmatpush1.msra.mxu0 %v3050
        %3052 = vmatprep.subr.mxu0 0.0
        %v3053 = vand.u32 %v1641, 4294901760
        %3054 = vmatpush1.msra.mxu0 %v3053
        %3055 = vmatprep.subr.mxu0 0.0
        %v3056 = vand.u32 %v1635, 4294901760
        %3057 = vmatpush1.msra.mxu0 %v3056
        %3058 = vmatprep.subr.mxu0 0.0
        %3059 = vmatpush2.msra.mxu0 0.0
        %3060 = vmatprep.subr.mxu0 0.0
        %3061 = vmatpush2.msra.mxu0 0.0
        %3062 = vmatprep.subr.mxu0 0.0
        %3063 = vmatpush2.msra.mxu0 0.0
        %3064 = vmatprep.subr.mxu0 0.0
        %3065 = vmatpush2.msra.mxu0 0.0
        %3066 = vmatprep.subr.mxu0 0.0
        %3067 = vmatpush2.msra.mxu0 0.0
        %3068 = vmatprep.subr.mxu0 0.0
        %3069 = vmatpush2.msra.mxu0 0.0
        %3070 = vmatprep.subr.mxu0 0.0
        %3071 = vmatpush2.msra.mxu0 0.0
        %3072 = vmatprep.subr.mxu0 0.0
        %3073 = vmatpush2.msra.mxu0 0.0
        %3074 = vmatprep.subr.mxu0 0.0
        %3075 = vmatpush2.msra.mxu0 0.0
        %3076 = vmatprep.subr.mxu0 0.0
        %3077 = vmatpush2.msra.mxu0 0.0
        %3078 = vmatprep.subr.mxu0 0.0
        %3079 = vmatpush2.msra.mxu0 0.0
        %3080 = vmatprep.subr.mxu0 0.0
        %3081 = vmatpush2.msra.mxu0 0.0
        %3082 = vmatprep.subr.mxu0 0.0
        %3083 = vmatpush2.msra.mxu0 0.0
        %3084 = vmatprep.subr.mxu0 0.0
        %3085 = vmatpush2.msra.mxu0 0.0
        %3086 = vmatprep.subr.mxu0 0.0
        %3087 = vmatpush2.msra.mxu0 0.0
        %3088 = vmatprep.subr.mxu0 0.0
        %3089 = vmatpush2.msra.mxu0 0.0
        %3090 = vmatprep.mubr.f32.mxu0 0.0
        %v3091 = vand.u32 %v1723, 4294901760
        %v3092 = vsub.f32 %v1723, %v3091
        %v3093 = vand.u32 %v3092, 4294901760
        %3094 = vmatmul.mubr.f32.gmra.mxu0 %v3093
        %v3095 = vpop.f32.mrf.mxu0
        %v3096 = vadd.f32 %v3013, %v3095
        %v3097 = vpop.f32.mrf.mxu0
        %3098 = vmatprep.mubr.f32.mxu0 0.0
        %v3099 = vand.u32 %v1726, 4294901760
        %v3100 = vsub.f32 %v1726, %v3099
        %v3101 = vand.u32 %v3100, 4294901760
        %3102 = vmatmul.mubr.f32.gmra.mxu0 %v3101
        %v3103 = vpop.f32.mrf.mxu0
        %v3104 = vadd.f32 %v3020, %v3103
        %v3105 = vpop.f32.mrf.mxu0
        %3106 = vdwg.mxu0
        %3107 = vmatprep.subr.mxu0 0.0
        %3108 = vmatpush1.msra.mxu0 0.0
        %3109 = vmatprep.subr.mxu0 0.0
        %3110 = vmatpush1.msra.mxu0 0.0
        %3111 = vmatprep.subr.mxu0 0.0
        %3112 = vmatpush1.msra.mxu0 0.0
        %3113 = vmatprep.subr.mxu0 0.0
        %3114 = vmatpush1.msra.mxu0 0.0
        %3115 = vmatprep.subr.mxu0 0.0
        %3116 = vmatpush1.msra.mxu0 0.0
        %3117 = vmatprep.subr.mxu0 0.0
        %3118 = vmatpush1.msra.mxu0 0.0
        %3119 = vmatprep.subr.mxu0 0.0
        %3120 = vmatpush1.msra.mxu0 0.0
        %3121 = vmatprep.subr.mxu0 0.0
        %3122 = vmatpush1.msra.mxu0 0.0
        %3123 = vmatprep.subr.mxu0 0.0
        %3124 = vmatpush1.msra.mxu0 0.0
        %3125 = vmatprep.subr.mxu0 0.0
        %3126 = vmatpush1.msra.mxu0 0.0
        %3127 = vmatprep.subr.mxu0 0.0
        %3128 = vmatpush1.msra.mxu0 0.0
        %3129 = vmatprep.subr.mxu0 0.0
        %3130 = vmatpush1.msra.mxu0 0.0
        %3131 = vmatprep.subr.mxu0 0.0
        %3132 = vmatpush1.msra.mxu0 0.0
        %3133 = vmatprep.subr.mxu0 0.0
        %v3134 = vand.u32 %v1647, 4294901760
        %v3135 = vsub.f32 %v1647, %v3134
        %v3136 = vand.u32 %v3135, 4294901760
        %3137 = vmatpush1.msra.mxu0 %v3136
        %3138 = vmatprep.subr.mxu0 0.0
        %v3139 = vand.u32 %v1641, 4294901760
        %v3140 = vsub.f32 %v1641, %v3139
        %v3141 = vand.u32 %v3140, 4294901760
        %3142 = vmatpush1.msra.mxu0 %v3141
        %3143 = vmatprep.subr.mxu0 0.0
        %v3144 = vand.u32 %v1635, 4294901760
        %v3145 = vsub.f32 %v1635, %v3144
        %v3146 = vand.u32 %v3145, 4294901760
        %3147 = vmatpush1.msra.mxu0 %v3146
        %3148 = vmatprep.subr.mxu0 0.0
        %3149 = vmatpush2.msra.mxu0 0.0
        %3150 = vmatprep.subr.mxu0 0.0
        %3151 = vmatpush2.msra.mxu0 0.0
        %3152 = vmatprep.subr.mxu0 0.0
        %3153 = vmatpush2.msra.mxu0 0.0
        %3154 = vmatprep.subr.mxu0 0.0
        %3155 = vmatpush2.msra.mxu0 0.0
        %3156 = vmatprep.subr.mxu0 0.0
        %3157 = vmatpush2.msra.mxu0 0.0
        %3158 = vmatprep.subr.mxu0 0.0
        %3159 = vmatpush2.msra.mxu0 0.0
        %3160 = vmatprep.subr.mxu0 0.0
        %3161 = vmatpush2.msra.mxu0 0.0
        %3162 = vmatprep.subr.mxu0 0.0
        %3163 = vmatpush2.msra.mxu0 0.0
        %3164 = vmatprep.subr.mxu0 0.0
        %3165 = vmatpush2.msra.mxu0 0.0
        %3166 = vmatprep.subr.mxu0 0.0
        %3167 = vmatpush2.msra.mxu0 0.0
        %3168 = vmatprep.subr.mxu0 0.0
        %3169 = vmatpush2.msra.mxu0 0.0
        %3170 = vmatprep.subr.mxu0 0.0
        %3171 = vmatpush2.msra.mxu0 0.0
        %3172 = vmatprep.subr.mxu0 0.0
        %3173 = vmatpush2.msra.mxu0 0.0
        %3174 = vmatprep.subr.mxu0 0.0
        %3175 = vmatpush2.msra.mxu0 0.0
        %3176 = vmatprep.subr.mxu0 0.0
        %3177 = vmatpush2.msra.mxu0 0.0
        %3178 = vmatprep.subr.mxu0 0.0
        %3179 = vmatpush2.msra.mxu0 0.0
        %3180 = vmatprep.mubr.f32.mxu0 0.0
        %v3181 = vand.u32 %v1723, 4294901760
        %3182 = vmatmul.mubr.f32.gmra.mxu0 %v3181
        %v3183 = vpop.f32.mrf.mxu0
        %v3184 = vadd.f32 %v3096, %v3183
        %v3185 = vpop.f32.mrf.mxu0
        %3186 = vmatprep.mubr.f32.mxu0 0.0
        %v3187 = vand.u32 %v1726, 4294901760
        %3188 = vmatmul.mubr.f32.gmra.mxu0 %v3187
        %v3189 = vpop.f32.mrf.mxu0
        %v3190 = vadd.f32 %v3104, %v3189
        %v3191 = vpop.f32.mrf.mxu0
        %3192 = vdwg.mxu0
        %3193 = vmatprep.subr.mxu0 0.0
        %3194 = vmatpush1.msra.mxu0 0.0
        %3195 = vmatprep.subr.mxu0 0.0
        %3196 = vmatpush1.msra.mxu0 0.0
        %3197 = vmatprep.subr.mxu0 0.0
        %3198 = vmatpush1.msra.mxu0 0.0
        %3199 = vmatprep.subr.mxu0 0.0
        %3200 = vmatpush1.msra.mxu0 0.0
        %3201 = vmatprep.subr.mxu0 0.0
        %3202 = vmatpush1.msra.mxu0 0.0
        %3203 = vmatprep.subr.mxu0 0.0
        %3204 = vmatpush1.msra.mxu0 0.0
        %3205 = vmatprep.subr.mxu0 0.0
        %3206 = vmatpush1.msra.mxu0 0.0
        %3207 = vmatprep.subr.mxu0 0.0
        %3208 = vmatpush1.msra.mxu0 0.0
        %3209 = vmatprep.subr.mxu0 0.0
        %3210 = vmatpush1.msra.mxu0 0.0
        %3211 = vmatprep.subr.mxu0 0.0
        %3212 = vmatpush1.msra.mxu0 0.0
        %3213 = vmatprep.subr.mxu0 0.0
        %3214 = vmatpush1.msra.mxu0 0.0
        %3215 = vmatprep.subr.mxu0 0.0
        %3216 = vmatpush1.msra.mxu0 0.0
        %3217 = vmatprep.subr.mxu0 0.0
        %3218 = vmatpush1.msra.mxu0 0.0
        %3219 = vmatprep.subr.mxu0 0.0
        %v3220 = vand.u32 %v1647, 4294901760
        %3221 = vmatpush1.msra.mxu0 %v3220
        %3222 = vmatprep.subr.mxu0 0.0
        %v3223 = vand.u32 %v1641, 4294901760
        %3224 = vmatpush1.msra.mxu0 %v3223
        %3225 = vmatprep.subr.mxu0 0.0
        %v3226 = vand.u32 %v1635, 4294901760
        %3227 = vmatpush1.msra.mxu0 %v3226
        %3228 = vmatprep.subr.mxu0 0.0
        %3229 = vmatpush2.msra.mxu0 0.0
        %3230 = vmatprep.subr.mxu0 0.0
        %3231 = vmatpush2.msra.mxu0 0.0
        %3232 = vmatprep.subr.mxu0 0.0
        %3233 = vmatpush2.msra.mxu0 0.0
        %3234 = vmatprep.subr.mxu0 0.0
        %3235 = vmatpush2.msra.mxu0 0.0
        %3236 = vmatprep.subr.mxu0 0.0
        %3237 = vmatpush2.msra.mxu0 0.0
        %3238 = vmatprep.subr.mxu0 0.0
        %3239 = vmatpush2.msra.mxu0 0.0
        %3240 = vmatprep.subr.mxu0 0.0
        %3241 = vmatpush2.msra.mxu0 0.0
        %3242 = vmatprep.subr.mxu0 0.0
        %3243 = vmatpush2.msra.mxu0 0.0
        %3244 = vmatprep.subr.mxu0 0.0
        %3245 = vmatpush2.msra.mxu0 0.0
        %3246 = vmatprep.subr.mxu0 0.0
        %3247 = vmatpush2.msra.mxu0 0.0
        %3248 = vmatprep.subr.mxu0 0.0
        %3249 = vmatpush2.msra.mxu0 0.0
        %3250 = vmatprep.subr.mxu0 0.0
        %3251 = vmatpush2.msra.mxu0 0.0
        %3252 = vmatprep.subr.mxu0 0.0
        %3253 = vmatpush2.msra.mxu0 0.0
        %3254 = vmatprep.subr.mxu0 0.0
        %3255 = vmatpush2.msra.mxu0 0.0
        %3256 = vmatprep.subr.mxu0 0.0
        %3257 = vmatpush2.msra.mxu0 0.0
        %3258 = vmatprep.subr.mxu0 0.0
        %3259 = vmatpush2.msra.mxu0 0.0
        %3260 = vmatprep.mubr.f32.mxu0 0.0
        %v3261 = vand.u32 %v1723, 4294901760
        %3262 = vmatmul.mubr.f32.gmra.mxu0 %v3261
        %v3263 = vpop.f32.mrf.mxu0
        %v3264 = vadd.f32 %v3184, %v3263
        %v3265 = vpop.f32.mrf.mxu0
        %3266 = vmatprep.mubr.f32.mxu0 0.0
        %v3267 = vand.u32 %v1726, 4294901760
        %3268 = vmatmul.mubr.f32.gmra.mxu0 %v3267
        %v3269 = vpop.f32.mrf.mxu0
        %v3270 = vadd.f32 %v3190, %v3269
        %v3271 = vpop.f32.mrf.mxu0
        %3272 = vdwg.mxu0
        %3273 = vmatprep.subr.mxu0 0.0
        %3274 = vmatpush1.msra.mxu0 0.0
        %3275 = vmatprep.subr.mxu0 0.0
        %3276 = vmatpush1.msra.mxu0 0.0
        %3277 = vmatprep.subr.mxu0 0.0
        %3278 = vmatpush1.msra.mxu0 0.0
        %3279 = vmatprep.subr.mxu0 0.0
        %3280 = vmatpush1.msra.mxu0 0.0
        %3281 = vmatprep.subr.mxu0 0.0
        %3282 = vmatpush1.msra.mxu0 0.0
        %3283 = vmatprep.subr.mxu0 0.0
        %3284 = vmatpush1.msra.mxu0 0.0
        %3285 = vmatprep.subr.mxu0 0.0
        %3286 = vmatpush1.msra.mxu0 0.0
        %3287 = vmatprep.subr.mxu0 0.0
        %3288 = vmatpush1.msra.mxu0 0.0
        %3289 = vmatprep.subr.mxu0 0.0
        %3290 = vmatpush1.msra.mxu0 0.0
        %3291 = vmatprep.subr.mxu0 0.0
        %3292 = vmatpush1.msra.mxu0 0.0
        %3293 = vmatprep.subr.mxu0 0.0
        %3294 = vmatpush1.msra.mxu0 0.0
        %3295 = vmatprep.subr.mxu0 0.0
        %3296 = vmatpush1.msra.mxu0 0.0
        %3297 = vmatprep.subr.mxu0 0.0
        %3298 = vmatpush1.msra.mxu0 0.0
        %3299 = vmatprep.subr.mxu0 0.0
        %v3300 = vand.u32 %v1665, 4294901760
        %3301 = vmatpush1.msra.mxu0 %v3300
        %3302 = vmatprep.subr.mxu0 0.0
        %v3303 = vand.u32 %v1659, 4294901760
        %3304 = vmatpush1.msra.mxu0 %v3303
        %3305 = vmatprep.subr.mxu0 0.0
        %v3306 = vand.u32 %v1653, 4294901760
        %3307 = vmatpush1.msra.mxu0 %v3306
        %3308 = vmatprep.subr.mxu0 0.0
        %3309 = vmatpush2.msra.mxu0 0.0
        %3310 = vmatprep.subr.mxu0 0.0
        %3311 = vmatpush2.msra.mxu0 0.0
        %3312 = vmatprep.subr.mxu0 0.0
        %3313 = vmatpush2.msra.mxu0 0.0
        %3314 = vmatprep.subr.mxu0 0.0
        %3315 = vmatpush2.msra.mxu0 0.0
        %3316 = vmatprep.subr.mxu0 0.0
        %3317 = vmatpush2.msra.mxu0 0.0
        %3318 = vmatprep.subr.mxu0 0.0
        %3319 = vmatpush2.msra.mxu0 0.0
        %3320 = vmatprep.subr.mxu0 0.0
        %3321 = vmatpush2.msra.mxu0 0.0
        %3322 = vmatprep.subr.mxu0 0.0
        %3323 = vmatpush2.msra.mxu0 0.0
        %3324 = vmatprep.subr.mxu0 0.0
        %3325 = vmatpush2.msra.mxu0 0.0
        %3326 = vmatprep.subr.mxu0 0.0
        %3327 = vmatpush2.msra.mxu0 0.0
        %3328 = vmatprep.subr.mxu0 0.0
        %3329 = vmatpush2.msra.mxu0 0.0
        %3330 = vmatprep.subr.mxu0 0.0
        %3331 = vmatpush2.msra.mxu0 0.0
        %3332 = vmatprep.subr.mxu0 0.0
        %3333 = vmatpush2.msra.mxu0 0.0
        %3334 = vmatprep.subr.mxu0 0.0
        %3335 = vmatpush2.msra.mxu0 0.0
        %3336 = vmatprep.subr.mxu0 0.0
        %3337 = vmatpush2.msra.mxu0 0.0
        %3338 = vmatprep.subr.mxu0 0.0
        %3339 = vmatpush2.msra.mxu0 0.0
        %3340 = vmatprep.mubr.f32.mxu0 0.0
        %v3341 = vand.u32 %v1723, 4294901760
        %v3342 = vsub.f32 %v1723, %v3341
        %v3343 = vand.u32 %v3342, 4294901760
        %v3344 = vsub.f32 %v3342, %v3343
        %v3345 = vand.u32 %v3344, 4294901760
        %3346 = vmatmul.mubr.f32.gmra.mxu0 %v3345
        %v3347 = vpop.f32.mrf.mxu0
        %v3348 = vadd.f32 0.0, %v3347
        %v3349 = vpop.f32.mrf.mxu0
        %3350 = vmatprep.mubr.f32.mxu0 0.0
        %v3351 = vand.u32 %v1726, 4294901760
        %v3352 = vsub.f32 %v1726, %v3351
        %v3353 = vand.u32 %v3352, 4294901760
        %v3354 = vsub.f32 %v3352, %v3353
        %v3355 = vand.u32 %v3354, 4294901760
        %3356 = vmatmul.mubr.f32.gmra.mxu0 %v3355
        %v3357 = vpop.f32.mrf.mxu0
        %v3358 = vadd.f32 0.0, %v3357
        %v3359 = vpop.f32.mrf.mxu0
        %3360 = vdwg.mxu0
        %3361 = vmatprep.subr.mxu0 0.0
        %3362 = vmatpush1.msra.mxu0 0.0
        %3363 = vmatprep.subr.mxu0 0.0
        %3364 = vmatpush1.msra.mxu0 0.0
        %3365 = vmatprep.subr.mxu0 0.0
        %3366 = vmatpush1.msra.mxu0 0.0
        %3367 = vmatprep.subr.mxu0 0.0
        %3368 = vmatpush1.msra.mxu0 0.0
        %3369 = vmatprep.subr.mxu0 0.0
        %3370 = vmatpush1.msra.mxu0 0.0
        %3371 = vmatprep.subr.mxu0 0.0
        %3372 = vmatpush1.msra.mxu0 0.0
        %3373 = vmatprep.subr.mxu0 0.0
        %3374 = vmatpush1.msra.mxu0 0.0
        %3375 = vmatprep.subr.mxu0 0.0
        %3376 = vmatpush1.msra.mxu0 0.0
        %3377 = vmatprep.subr.mxu0 0.0
        %3378 = vmatpush1.msra.mxu0 0.0
        %3379 = vmatprep.subr.mxu0 0.0
        %3380 = vmatpush1.msra.mxu0 0.0
        %3381 = vmatprep.subr.mxu0 0.0
        %3382 = vmatpush1.msra.mxu0 0.0
        %3383 = vmatprep.subr.mxu0 0.0
        %3384 = vmatpush1.msra.mxu0 0.0
        %3385 = vmatprep.subr.mxu0 0.0
        %3386 = vmatpush1.msra.mxu0 0.0
        %3387 = vmatprep.subr.mxu0 0.0
        %v3388 = vand.u32 %v1665, 4294901760
        %v3389 = vsub.f32 %v1665, %v3388
        %v3390 = vand.u32 %v3389, 4294901760
        %v3391 = vsub.f32 %v3389, %v3390
        %v3392 = vand.u32 %v3391, 4294901760
        %3393 = vmatpush1.msra.mxu0 %v3392
        %3394 = vmatprep.subr.mxu0 0.0
        %v3395 = vand.u32 %v1659, 4294901760
        %v3396 = vsub.f32 %v1659, %v3395
        %v3397 = vand.u32 %v3396, 4294901760
        %v3398 = vsub.f32 %v3396, %v3397
        %v3399 = vand.u32 %v3398, 4294901760
        %3400 = vmatpush1.msra.mxu0 %v3399
        %3401 = vmatprep.subr.mxu0 0.0
        %v3402 = vand.u32 %v1653, 4294901760
        %v3403 = vsub.f32 %v1653, %v3402
        %v3404 = vand.u32 %v3403, 4294901760
        %v3405 = vsub.f32 %v3403, %v3404
        %v3406 = vand.u32 %v3405, 4294901760
        %3407 = vmatpush1.msra.mxu0 %v3406
        %3408 = vmatprep.subr.mxu0 0.0
        %3409 = vmatpush2.msra.mxu0 0.0
        %3410 = vmatprep.subr.mxu0 0.0
        %3411 = vmatpush2.msra.mxu0 0.0
        %3412 = vmatprep.subr.mxu0 0.0
        %3413 = vmatpush2.msra.mxu0 0.0
        %3414 = vmatprep.subr.mxu0 0.0
        %3415 = vmatpush2.msra.mxu0 0.0
        %3416 = vmatprep.subr.mxu0 0.0
        %3417 = vmatpush2.msra.mxu0 0.0
        %3418 = vmatprep.subr.mxu0 0.0
        %3419 = vmatpush2.msra.mxu0 0.0
        %3420 = vmatprep.subr.mxu0 0.0
        %3421 = vmatpush2.msra.mxu0 0.0
        %3422 = vmatprep.subr.mxu0 0.0
        %3423 = vmatpush2.msra.mxu0 0.0
        %3424 = vmatprep.subr.mxu0 0.0
        %3425 = vmatpush2.msra.mxu0 0.0
        %3426 = vmatprep.subr.mxu0 0.0
        %3427 = vmatpush2.msra.mxu0 0.0
        %3428 = vmatprep.subr.mxu0 0.0
        %3429 = vmatpush2.msra.mxu0 0.0
        %3430 = vmatprep.subr.mxu0 0.0
        %3431 = vmatpush2.msra.mxu0 0.0
        %3432 = vmatprep.subr.mxu0 0.0
        %3433 = vmatpush2.msra.mxu0 0.0
        %3434 = vmatprep.subr.mxu0 0.0
        %3435 = vmatpush2.msra.mxu0 0.0
        %3436 = vmatprep.subr.mxu0 0.0
        %3437 = vmatpush2.msra.mxu0 0.0
        %3438 = vmatprep.subr.mxu0 0.0
        %3439 = vmatpush2.msra.mxu0 0.0
        %3440 = vmatprep.mubr.f32.mxu0 0.0
        %v3441 = vand.u32 %v1723, 4294901760
        %3442 = vmatmul.mubr.f32.gmra.mxu0 %v3441
        %v3443 = vpop.f32.mrf.mxu0
        %v3444 = vadd.f32 %v3348, %v3443
        %v3445 = vpop.f32.mrf.mxu0
        %3446 = vmatprep.mubr.f32.mxu0 0.0
        %v3447 = vand.u32 %v1726, 4294901760
        %3448 = vmatmul.mubr.f32.gmra.mxu0 %v3447
        %v3449 = vpop.f32.mrf.mxu0
        %v3450 = vadd.f32 %v3358, %v3449
        %v3451 = vpop.f32.mrf.mxu0
        %3452 = vdwg.mxu0
        %3453 = vmatprep.subr.mxu0 0.0
        %3454 = vmatpush1.msra.mxu0 0.0
        %3455 = vmatprep.subr.mxu0 0.0
        %3456 = vmatpush1.msra.mxu0 0.0
        %3457 = vmatprep.subr.mxu0 0.0
        %3458 = vmatpush1.msra.mxu0 0.0
        %3459 = vmatprep.subr.mxu0 0.0
        %3460 = vmatpush1.msra.mxu0 0.0
        %3461 = vmatprep.subr.mxu0 0.0
        %3462 = vmatpush1.msra.mxu0 0.0
        %3463 = vmatprep.subr.mxu0 0.0
        %3464 = vmatpush1.msra.mxu0 0.0
        %3465 = vmatprep.subr.mxu0 0.0
        %3466 = vmatpush1.msra.mxu0 0.0
        %3467 = vmatprep.subr.mxu0 0.0
        %3468 = vmatpush1.msra.mxu0 0.0
        %3469 = vmatprep.subr.mxu0 0.0
        %3470 = vmatpush1.msra.mxu0 0.0
        %3471 = vmatprep.subr.mxu0 0.0
        %3472 = vmatpush1.msra.mxu0 0.0
        %3473 = vmatprep.subr.mxu0 0.0
        %3474 = vmatpush1.msra.mxu0 0.0
        %3475 = vmatprep.subr.mxu0 0.0
        %3476 = vmatpush1.msra.mxu0 0.0
        %3477 = vmatprep.subr.mxu0 0.0
        %3478 = vmatpush1.msra.mxu0 0.0
        %3479 = vmatprep.subr.mxu0 0.0
        %v3480 = vand.u32 %v1665, 4294901760
        %v3481 = vsub.f32 %v1665, %v3480
        %3482 = vmatpush1.msra.mxu0 %v3481
        %3483 = vmatprep.subr.mxu0 0.0
        %v3484 = vand.u32 %v1659, 4294901760
        %v3485 = vsub.f32 %v1659, %v3484
        %3486 = vmatpush1.msra.mxu0 %v3485
        %3487 = vmatprep.subr.mxu0 0.0
        %v3488 = vand.u32 %v1653, 4294901760
        %v3489 = vsub.f32 %v1653, %v3488
        %3490 = vmatpush1.msra.mxu0 %v3489
        %3491 = vmatprep.subr.mxu0 0.0
        %3492 = vmatpush2.msra.mxu0 0.0
        %3493 = vmatprep.subr.mxu0 0.0
        %3494 = vmatpush2.msra.mxu0 0.0
        %3495 = vmatprep.subr.mxu0 0.0
        %3496 = vmatpush2.msra.mxu0 0.0
        %3497 = vmatprep.subr.mxu0 0.0
        %3498 = vmatpush2.msra.mxu0 0.0
        %3499 = vmatprep.subr.mxu0 0.0
        %3500 = vmatpush2.msra.mxu0 0.0
        %3501 = vmatprep.subr.mxu0 0.0
        %3502 = vmatpush2.msra.mxu0 0.0
        %3503 = vmatprep.subr.mxu0 0.0
        %3504 = vmatpush2.msra.mxu0 0.0
        %3505 = vmatprep.subr.mxu0 0.0
        %3506 = vmatpush2.msra.mxu0 0.0
        %3507 = vmatprep.subr.mxu0 0.0
        %3508 = vmatpush2.msra.mxu0 0.0
        %3509 = vmatprep.subr.mxu0 0.0
        %3510 = vmatpush2.msra.mxu0 0.0
        %3511 = vmatprep.subr.mxu0 0.0
        %3512 = vmatpush2.msra.mxu0 0.0
        %3513 = vmatprep.subr.mxu0 0.0
        %3514 = vmatpush2.msra.mxu0 0.0
        %3515 = vmatprep.subr.mxu0 0.0
        %3516 = vmatpush2.msra.mxu0 0.0
        %3517 = vmatprep.subr.mxu0 0.0
        %3518 = vmatpush2.msra.mxu0 0.0
        %3519 = vmatprep.subr.mxu0 0.0
        %3520 = vmatpush2.msra.mxu0 0.0
        %3521 = vmatprep.subr.mxu0 0.0
        %3522 = vmatpush2.msra.mxu0 0.0
        %3523 = vmatprep.mubr.f32.mxu0 0.0
        %v3524 = vand.u32 %v1723, 4294901760
        %v3525 = vsub.f32 %v1723, %v3524
        %3526 = vmatmul.mubr.f32.gmra.mxu0 %v3525
        %v3527 = vpop.f32.mrf.mxu0
        %v3528 = vadd.f32 %v3444, %v3527
        %v3529 = vpop.f32.mrf.mxu0
        %3530 = vmatprep.mubr.f32.mxu0 0.0
        %v3531 = vand.u32 %v1726, 4294901760
        %v3532 = vsub.f32 %v1726, %v3531
        %3533 = vmatmul.mubr.f32.gmra.mxu0 %v3532
        %v3534 = vpop.f32.mrf.mxu0
        %v3535 = vadd.f32 %v3450, %v3534
        %v3536 = vpop.f32.mrf.mxu0
        %3537 = vdwg.mxu0
        %3538 = vmatprep.subr.mxu0 0.0
        %3539 = vmatpush1.msra.mxu0 0.0
        %3540 = vmatprep.subr.mxu0 0.0
        %3541 = vmatpush1.msra.mxu0 0.0
        %3542 = vmatprep.subr.mxu0 0.0
        %3543 = vmatpush1.msra.mxu0 0.0
        %3544 = vmatprep.subr.mxu0 0.0
        %3545 = vmatpush1.msra.mxu0 0.0
        %3546 = vmatprep.subr.mxu0 0.0
        %3547 = vmatpush1.msra.mxu0 0.0
        %3548 = vmatprep.subr.mxu0 0.0
        %3549 = vmatpush1.msra.mxu0 0.0
        %3550 = vmatprep.subr.mxu0 0.0
        %3551 = vmatpush1.msra.mxu0 0.0
        %3552 = vmatprep.subr.mxu0 0.0
        %3553 = vmatpush1.msra.mxu0 0.0
        %3554 = vmatprep.subr.mxu0 0.0
        %3555 = vmatpush1.msra.mxu0 0.0
        %3556 = vmatprep.subr.mxu0 0.0
        %3557 = vmatpush1.msra.mxu0 0.0
        %3558 = vmatprep.subr.mxu0 0.0
        %3559 = vmatpush1.msra.mxu0 0.0
        %3560 = vmatprep.subr.mxu0 0.0
        %3561 = vmatpush1.msra.mxu0 0.0
        %3562 = vmatprep.subr.mxu0 0.0
        %3563 = vmatpush1.msra.mxu0 0.0
        %3564 = vmatprep.subr.mxu0 0.0
        %v3565 = vand.u32 %v1665, 4294901760
        %3566 = vmatpush1.msra.mxu0 %v3565
        %3567 = vmatprep.subr.mxu0 0.0
        %v3568 = vand.u32 %v1659, 4294901760
        %3569 = vmatpush1.msra.mxu0 %v3568
        %3570 = vmatprep.subr.mxu0 0.0
        %v3571 = vand.u32 %v1653, 4294901760
        %3572 = vmatpush1.msra.mxu0 %v3571
        %3573 = vmatprep.subr.mxu0 0.0
        %3574 = vmatpush2.msra.mxu0 0.0
        %3575 = vmatprep.subr.mxu0 0.0
        %3576 = vmatpush2.msra.mxu0 0.0
        %3577 = vmatprep.subr.mxu0 0.0
        %3578 = vmatpush2.msra.mxu0 0.0
        %3579 = vmatprep.subr.mxu0 0.0
        %3580 = vmatpush2.msra.mxu0 0.0
        %3581 = vmatprep.subr.mxu0 0.0
        %3582 = vmatpush2.msra.mxu0 0.0
        %3583 = vmatprep.subr.mxu0 0.0
        %3584 = vmatpush2.msra.mxu0 0.0
        %3585 = vmatprep.subr.mxu0 0.0
        %3586 = vmatpush2.msra.mxu0 0.0
        %3587 = vmatprep.subr.mxu0 0.0
        %3588 = vmatpush2.msra.mxu0 0.0
        %3589 = vmatprep.subr.mxu0 0.0
        %3590 = vmatpush2.msra.mxu0 0.0
        %3591 = vmatprep.subr.mxu0 0.0
        %3592 = vmatpush2.msra.mxu0 0.0
        %3593 = vmatprep.subr.mxu0 0.0
        %3594 = vmatpush2.msra.mxu0 0.0
        %3595 = vmatprep.subr.mxu0 0.0
        %3596 = vmatpush2.msra.mxu0 0.0
        %3597 = vmatprep.subr.mxu0 0.0
        %3598 = vmatpush2.msra.mxu0 0.0
        %3599 = vmatprep.subr.mxu0 0.0
        %3600 = vmatpush2.msra.mxu0 0.0
        %3601 = vmatprep.subr.mxu0 0.0
        %3602 = vmatpush2.msra.mxu0 0.0
        %3603 = vmatprep.subr.mxu0 0.0
        %3604 = vmatpush2.msra.mxu0 0.0
        %3605 = vmatprep.mubr.f32.mxu0 0.0
        %v3606 = vand.u32 %v1723, 4294901760
        %v3607 = vsub.f32 %v1723, %v3606
        %v3608 = vand.u32 %v3607, 4294901760
        %3609 = vmatmul.mubr.f32.gmra.mxu0 %v3608
        %v3610 = vpop.f32.mrf.mxu0
        %v3611 = vadd.f32 %v3528, %v3610
        %v3612 = vpop.f32.mrf.mxu0
        %3613 = vmatprep.mubr.f32.mxu0 0.0
        %v3614 = vand.u32 %v1726, 4294901760
        %v3615 = vsub.f32 %v1726, %v3614
        %v3616 = vand.u32 %v3615, 4294901760
        %3617 = vmatmul.mubr.f32.gmra.mxu0 %v3616
        %v3618 = vpop.f32.mrf.mxu0
        %v3619 = vadd.f32 %v3535, %v3618
        %v3620 = vpop.f32.mrf.mxu0
        %3621 = vdwg.mxu0
        %3622 = vmatprep.subr.mxu0 0.0
        %3623 = vmatpush1.msra.mxu0 0.0
        %3624 = vmatprep.subr.mxu0 0.0
        %3625 = vmatpush1.msra.mxu0 0.0
        %3626 = vmatprep.subr.mxu0 0.0
        %3627 = vmatpush1.msra.mxu0 0.0
        %3628 = vmatprep.subr.mxu0 0.0
        %3629 = vmatpush1.msra.mxu0 0.0
        %3630 = vmatprep.subr.mxu0 0.0
        %3631 = vmatpush1.msra.mxu0 0.0
        %3632 = vmatprep.subr.mxu0 0.0
        %3633 = vmatpush1.msra.mxu0 0.0
        %3634 = vmatprep.subr.mxu0 0.0
        %3635 = vmatpush1.msra.mxu0 0.0
        %3636 = vmatprep.subr.mxu0 0.0
        %3637 = vmatpush1.msra.mxu0 0.0
        %3638 = vmatprep.subr.mxu0 0.0
        %3639 = vmatpush1.msra.mxu0 0.0
        %3640 = vmatprep.subr.mxu0 0.0
        %3641 = vmatpush1.msra.mxu0 0.0
        %3642 = vmatprep.subr.mxu0 0.0
        %3643 = vmatpush1.msra.mxu0 0.0
        %3644 = vmatprep.subr.mxu0 0.0
        %3645 = vmatpush1.msra.mxu0 0.0
        %3646 = vmatprep.subr.mxu0 0.0
        %3647 = vmatpush1.msra.mxu0 0.0
        %3648 = vmatprep.subr.mxu0 0.0
        %v3649 = vand.u32 %v1665, 4294901760
        %v3650 = vsub.f32 %v1665, %v3649
        %v3651 = vand.u32 %v3650, 4294901760
        %3652 = vmatpush1.msra.mxu0 %v3651
        %3653 = vmatprep.subr.mxu0 0.0
        %v3654 = vand.u32 %v1659, 4294901760
        %v3655 = vsub.f32 %v1659, %v3654
        %v3656 = vand.u32 %v3655, 4294901760
        %3657 = vmatpush1.msra.mxu0 %v3656
        %3658 = vmatprep.subr.mxu0 0.0
        %v3659 = vand.u32 %v1653, 4294901760
        %v3660 = vsub.f32 %v1653, %v3659
        %v3661 = vand.u32 %v3660, 4294901760
        %3662 = vmatpush1.msra.mxu0 %v3661
        %3663 = vmatprep.subr.mxu0 0.0
        %3664 = vmatpush2.msra.mxu0 0.0
        %3665 = vmatprep.subr.mxu0 0.0
        %3666 = vmatpush2.msra.mxu0 0.0
        %3667 = vmatprep.subr.mxu0 0.0
        %3668 = vmatpush2.msra.mxu0 0.0
        %3669 = vmatprep.subr.mxu0 0.0
        %3670 = vmatpush2.msra.mxu0 0.0
        %3671 = vmatprep.subr.mxu0 0.0
        %3672 = vmatpush2.msra.mxu0 0.0
        %3673 = vmatprep.subr.mxu0 0.0
        %3674 = vmatpush2.msra.mxu0 0.0
        %3675 = vmatprep.subr.mxu0 0.0
        %3676 = vmatpush2.msra.mxu0 0.0
        %3677 = vmatprep.subr.mxu0 0.0
        %3678 = vmatpush2.msra.mxu0 0.0
        %3679 = vmatprep.subr.mxu0 0.0
        %3680 = vmatpush2.msra.mxu0 0.0
        %3681 = vmatprep.subr.mxu0 0.0
        %3682 = vmatpush2.msra.mxu0 0.0
        %3683 = vmatprep.subr.mxu0 0.0
        %3684 = vmatpush2.msra.mxu0 0.0
        %3685 = vmatprep.subr.mxu0 0.0
        %3686 = vmatpush2.msra.mxu0 0.0
        %3687 = vmatprep.subr.mxu0 0.0
        %3688 = vmatpush2.msra.mxu0 0.0
        %3689 = vmatprep.subr.mxu0 0.0
        %3690 = vmatpush2.msra.mxu0 0.0
        %3691 = vmatprep.subr.mxu0 0.0
        %3692 = vmatpush2.msra.mxu0 0.0
        %3693 = vmatprep.subr.mxu0 0.0
        %3694 = vmatpush2.msra.mxu0 0.0
        %3695 = vmatprep.mubr.f32.mxu0 0.0
        %v3696 = vand.u32 %v1723, 4294901760
        %3697 = vmatmul.mubr.f32.gmra.mxu0 %v3696
        %v3698 = vpop.f32.mrf.mxu0
        %v3699 = vadd.f32 %v3611, %v3698
        %v3700 = vpop.f32.mrf.mxu0
        %3701 = vmatprep.mubr.f32.mxu0 0.0
        %v3702 = vand.u32 %v1726, 4294901760
        %3703 = vmatmul.mubr.f32.gmra.mxu0 %v3702
        %v3704 = vpop.f32.mrf.mxu0
        %v3705 = vadd.f32 %v3619, %v3704
        %v3706 = vpop.f32.mrf.mxu0
        %3707 = vdwg.mxu0
        %3708 = vmatprep.subr.mxu0 0.0
        %3709 = vmatpush1.msra.mxu0 0.0
        %3710 = vmatprep.subr.mxu0 0.0
        %3711 = vmatpush1.msra.mxu0 0.0
        %3712 = vmatprep.subr.mxu0 0.0
        %3713 = vmatpush1.msra.mxu0 0.0
        %3714 = vmatprep.subr.mxu0 0.0
        %3715 = vmatpush1.msra.mxu0 0.0
        %3716 = vmatprep.subr.mxu0 0.0
        %3717 = vmatpush1.msra.mxu0 0.0
        %3718 = vmatprep.subr.mxu0 0.0
        %3719 = vmatpush1.msra.mxu0 0.0
        %3720 = vmatprep.subr.mxu0 0.0
        %3721 = vmatpush1.msra.mxu0 0.0
        %3722 = vmatprep.subr.mxu0 0.0
        %3723 = vmatpush1.msra.mxu0 0.0
        %3724 = vmatprep.subr.mxu0 0.0
        %3725 = vmatpush1.msra.mxu0 0.0
        %3726 = vmatprep.subr.mxu0 0.0
        %3727 = vmatpush1.msra.mxu0 0.0
        %3728 = vmatprep.subr.mxu0 0.0
        %3729 = vmatpush1.msra.mxu0 0.0
        %3730 = vmatprep.subr.mxu0 0.0
        %3731 = vmatpush1.msra.mxu0 0.0
        %3732 = vmatprep.subr.mxu0 0.0
        %3733 = vmatpush1.msra.mxu0 0.0
        %3734 = vmatprep.subr.mxu0 0.0
        %v3735 = vand.u32 %v1665, 4294901760
        %3736 = vmatpush1.msra.mxu0 %v3735
        %3737 = vmatprep.subr.mxu0 0.0
        %v3738 = vand.u32 %v1659, 4294901760
        %3739 = vmatpush1.msra.mxu0 %v3738
        %3740 = vmatprep.subr.mxu0 0.0
        %v3741 = vand.u32 %v1653, 4294901760
        %3742 = vmatpush1.msra.mxu0 %v3741
        %3743 = vmatprep.subr.mxu0 0.0
        %3744 = vmatpush2.msra.mxu0 0.0
        %3745 = vmatprep.subr.mxu0 0.0
        %3746 = vmatpush2.msra.mxu0 0.0
        %3747 = vmatprep.subr.mxu0 0.0
        %3748 = vmatpush2.msra.mxu0 0.0
        %3749 = vmatprep.subr.mxu0 0.0
        %3750 = vmatpush2.msra.mxu0 0.0
        %3751 = vmatprep.subr.mxu0 0.0
        %3752 = vmatpush2.msra.mxu0 0.0
        %3753 = vmatprep.subr.mxu0 0.0
        %3754 = vmatpush2.msra.mxu0 0.0
        %3755 = vmatprep.subr.mxu0 0.0
        %3756 = vmatpush2.msra.mxu0 0.0
        %3757 = vmatprep.subr.mxu0 0.0
        %3758 = vmatpush2.msra.mxu0 0.0
        %3759 = vmatprep.subr.mxu0 0.0
        %3760 = vmatpush2.msra.mxu0 0.0
        %3761 = vmatprep.subr.mxu0 0.0
        %3762 = vmatpush2.msra.mxu0 0.0
        %3763 = vmatprep.subr.mxu0 0.0
        %3764 = vmatpush2.msra.mxu0 0.0
        %3765 = vmatprep.subr.mxu0 0.0
        %3766 = vmatpush2.msra.mxu0 0.0
        %3767 = vmatprep.subr.mxu0 0.0
        %3768 = vmatpush2.msra.mxu0 0.0
        %3769 = vmatprep.subr.mxu0 0.0
        %3770 = vmatpush2.msra.mxu0 0.0
        %3771 = vmatprep.subr.mxu0 0.0
        %3772 = vmatpush2.msra.mxu0 0.0
        %3773 = vmatprep.subr.mxu0 0.0
        %3774 = vmatpush2.msra.mxu0 0.0
        %3775 = vmatprep.mubr.f32.mxu0 0.0
        %v3776 = vand.u32 %v1723, 4294901760
        %3777 = vmatmul.mubr.f32.gmra.mxu0 %v3776
        %v3778 = vpop.f32.mrf.mxu0
        %v3779 = vadd.f32 %v3699, %v3778
        %v3780 = vpop.f32.mrf.mxu0
        %3781 = vmatprep.mubr.f32.mxu0 0.0
        %v3782 = vand.u32 %v1726, 4294901760
        %3783 = vmatmul.mubr.f32.gmra.mxu0 %v3782
        %v3784 = vpop.f32.mrf.mxu0
        %v3785 = vadd.f32 %v3705, %v3784
        %v3786 = vpop.f32.mrf.mxu0
        %3787 = vdwg.mxu0
        %3788 = vmatprep.subr.mxu0 0.0
        %3789 = vmatpush1.msra.mxu0 0.0
        %3790 = vmatprep.subr.mxu0 0.0
        %3791 = vmatpush1.msra.mxu0 0.0
        %3792 = vmatprep.subr.mxu0 0.0
        %3793 = vmatpush1.msra.mxu0 0.0
        %3794 = vmatprep.subr.mxu0 0.0
        %3795 = vmatpush1.msra.mxu0 0.0
        %3796 = vmatprep.subr.mxu0 0.0
        %3797 = vmatpush1.msra.mxu0 0.0
        %3798 = vmatprep.subr.mxu0 0.0
        %3799 = vmatpush1.msra.mxu0 0.0
        %3800 = vmatprep.subr.mxu0 0.0
        %3801 = vmatpush1.msra.mxu0 0.0
        %3802 = vmatprep.subr.mxu0 0.0
        %3803 = vmatpush1.msra.mxu0 0.0
        %3804 = vmatprep.subr.mxu0 0.0
        %3805 = vmatpush1.msra.mxu0 0.0
        %3806 = vmatprep.subr.mxu0 0.0
        %3807 = vmatpush1.msra.mxu0 0.0
        %3808 = vmatprep.subr.mxu0 0.0
        %3809 = vmatpush1.msra.mxu0 0.0
        %3810 = vmatprep.subr.mxu0 0.0
        %3811 = vmatpush1.msra.mxu0 0.0
        %3812 = vmatprep.subr.mxu0 0.0
        %3813 = vmatpush1.msra.mxu0 0.0
        %3814 = vmatprep.subr.mxu0 0.0
        %v3815 = vand.u32 %v1683, 4294901760
        %3816 = vmatpush1.msra.mxu0 %v3815
        %3817 = vmatprep.subr.mxu0 0.0
        %v3818 = vand.u32 %v1677, 4294901760
        %3819 = vmatpush1.msra.mxu0 %v3818
        %3820 = vmatprep.subr.mxu0 0.0
        %v3821 = vand.u32 %v1671, 4294901760
        %3822 = vmatpush1.msra.mxu0 %v3821
        %3823 = vmatprep.subr.mxu0 0.0
        %3824 = vmatpush2.msra.mxu0 0.0
        %3825 = vmatprep.subr.mxu0 0.0
        %3826 = vmatpush2.msra.mxu0 0.0
        %3827 = vmatprep.subr.mxu0 0.0
        %3828 = vmatpush2.msra.mxu0 0.0
        %3829 = vmatprep.subr.mxu0 0.0
        %3830 = vmatpush2.msra.mxu0 0.0
        %3831 = vmatprep.subr.mxu0 0.0
        %3832 = vmatpush2.msra.mxu0 0.0
        %3833 = vmatprep.subr.mxu0 0.0
        %3834 = vmatpush2.msra.mxu0 0.0
        %3835 = vmatprep.subr.mxu0 0.0
        %3836 = vmatpush2.msra.mxu0 0.0
        %3837 = vmatprep.subr.mxu0 0.0
        %3838 = vmatpush2.msra.mxu0 0.0
        %3839 = vmatprep.subr.mxu0 0.0
        %3840 = vmatpush2.msra.mxu0 0.0
        %3841 = vmatprep.subr.mxu0 0.0
        %3842 = vmatpush2.msra.mxu0 0.0
        %3843 = vmatprep.subr.mxu0 0.0
        %3844 = vmatpush2.msra.mxu0 0.0
        %3845 = vmatprep.subr.mxu0 0.0
        %3846 = vmatpush2.msra.mxu0 0.0
        %3847 = vmatprep.subr.mxu0 0.0
        %3848 = vmatpush2.msra.mxu0 0.0
        %3849 = vmatprep.subr.mxu0 0.0
        %3850 = vmatpush2.msra.mxu0 0.0
        %3851 = vmatprep.subr.mxu0 0.0
        %3852 = vmatpush2.msra.mxu0 0.0
        %3853 = vmatprep.subr.mxu0 0.0
        %3854 = vmatpush2.msra.mxu0 0.0
        %3855 = vmatprep.mubr.f32.mxu0 0.0
        %v3856 = vand.u32 %v1723, 4294901760
        %v3857 = vsub.f32 %v1723, %v3856
        %v3858 = vand.u32 %v3857, 4294901760
        %v3859 = vsub.f32 %v3857, %v3858
        %v3860 = vand.u32 %v3859, 4294901760
        %3861 = vmatmul.mubr.f32.gmra.mxu0 %v3860
        %v3862 = vpop.f32.mrf.mxu0
        %v3863 = vadd.f32 0.0, %v3862
        %v3864 = vpop.f32.mrf.mxu0
        %3865 = vmatprep.mubr.f32.mxu0 0.0
        %v3866 = vand.u32 %v1726, 4294901760
        %v3867 = vsub.f32 %v1726, %v3866
        %v3868 = vand.u32 %v3867, 4294901760
        %v3869 = vsub.f32 %v3867, %v3868
        %v3870 = vand.u32 %v3869, 4294901760
        %3871 = vmatmul.mubr.f32.gmra.mxu0 %v3870
        %v3872 = vpop.f32.mrf.mxu0
        %v3873 = vadd.f32 0.0, %v3872
        %v3874 = vpop.f32.mrf.mxu0
        %3875 = vdwg.mxu0
        %3876 = vmatprep.subr.mxu0 0.0
        %3877 = vmatpush1.msra.mxu0 0.0
        %3878 = vmatprep.subr.mxu0 0.0
        %3879 = vmatpush1.msra.mxu0 0.0
        %3880 = vmatprep.subr.mxu0 0.0
        %3881 = vmatpush1.msra.mxu0 0.0
        %3882 = vmatprep.subr.mxu0 0.0
        %3883 = vmatpush1.msra.mxu0 0.0
        %3884 = vmatprep.subr.mxu0 0.0
        %3885 = vmatpush1.msra.mxu0 0.0
        %3886 = vmatprep.subr.mxu0 0.0
        %3887 = vmatpush1.msra.mxu0 0.0
        %3888 = vmatprep.subr.mxu0 0.0
        %3889 = vmatpush1.msra.mxu0 0.0
        %3890 = vmatprep.subr.mxu0 0.0
        %3891 = vmatpush1.msra.mxu0 0.0
        %3892 = vmatprep.subr.mxu0 0.0
        %3893 = vmatpush1.msra.mxu0 0.0
        %3894 = vmatprep.subr.mxu0 0.0
        %3895 = vmatpush1.msra.mxu0 0.0
        %3896 = vmatprep.subr.mxu0 0.0
        %3897 = vmatpush1.msra.mxu0 0.0
        %3898 = vmatprep.subr.mxu0 0.0
        %3899 = vmatpush1.msra.mxu0 0.0
        %3900 = vmatprep.subr.mxu0 0.0
        %3901 = vmatpush1.msra.mxu0 0.0
        %3902 = vmatprep.subr.mxu0 0.0
        %v3903 = vand.u32 %v1683, 4294901760
        %v3904 = vsub.f32 %v1683, %v3903
        %v3905 = vand.u32 %v3904, 4294901760
        %v3906 = vsub.f32 %v3904, %v3905
        %v3907 = vand.u32 %v3906, 4294901760
        %3908 = vmatpush1.msra.mxu0 %v3907
        %3909 = vmatprep.subr.mxu0 0.0
        %v3910 = vand.u32 %v1677, 4294901760
        %v3911 = vsub.f32 %v1677, %v3910
        %v3912 = vand.u32 %v3911, 4294901760
        %v3913 = vsub.f32 %v3911, %v3912
        %v3914 = vand.u32 %v3913, 4294901760
        %3915 = vmatpush1.msra.mxu0 %v3914
        %3916 = vmatprep.subr.mxu0 0.0
        %v3917 = vand.u32 %v1671, 4294901760
        %v3918 = vsub.f32 %v1671, %v3917
        %v3919 = vand.u32 %v3918, 4294901760
        %v3920 = vsub.f32 %v3918, %v3919
        %v3921 = vand.u32 %v3920, 4294901760
        %3922 = vmatpush1.msra.mxu0 %v3921
        %3923 = vmatprep.subr.mxu0 0.0
        %3924 = vmatpush2.msra.mxu0 0.0
        %3925 = vmatprep.subr.mxu0 0.0
        %3926 = vmatpush2.msra.mxu0 0.0
        %3927 = vmatprep.subr.mxu0 0.0
        %3928 = vmatpush2.msra.mxu0 0.0
        %3929 = vmatprep.subr.mxu0 0.0
        %3930 = vmatpush2.msra.mxu0 0.0
        %3931 = vmatprep.subr.mxu0 0.0
        %3932 = vmatpush2.msra.mxu0 0.0
        %3933 = vmatprep.subr.mxu0 0.0
        %3934 = vmatpush2.msra.mxu0 0.0
        %3935 = vmatprep.subr.mxu0 0.0
        %3936 = vmatpush2.msra.mxu0 0.0
        %3937 = vmatprep.subr.mxu0 0.0
        %3938 = vmatpush2.msra.mxu0 0.0
        %3939 = vmatprep.subr.mxu0 0.0
        %3940 = vmatpush2.msra.mxu0 0.0
        %3941 = vmatprep.subr.mxu0 0.0
        %3942 = vmatpush2.msra.mxu0 0.0
        %3943 = vmatprep.subr.mxu0 0.0
        %3944 = vmatpush2.msra.mxu0 0.0
        %3945 = vmatprep.subr.mxu0 0.0
        %3946 = vmatpush2.msra.mxu0 0.0
        %3947 = vmatprep.subr.mxu0 0.0
        %3948 = vmatpush2.msra.mxu0 0.0
        %3949 = vmatprep.subr.mxu0 0.0
        %3950 = vmatpush2.msra.mxu0 0.0
        %3951 = vmatprep.subr.mxu0 0.0
        %3952 = vmatpush2.msra.mxu0 0.0
        %3953 = vmatprep.subr.mxu0 0.0
        %3954 = vmatpush2.msra.mxu0 0.0
        %3955 = vmatprep.mubr.f32.mxu0 0.0
        %v3956 = vand.u32 %v1723, 4294901760
        %3957 = vmatmul.mubr.f32.gmra.mxu0 %v3956
        %v3958 = vpop.f32.mrf.mxu0
        %v3959 = vadd.f32 %v3863, %v3958
        %v3960 = vpop.f32.mrf.mxu0
        %3961 = vmatprep.mubr.f32.mxu0 0.0
        %v3962 = vand.u32 %v1726, 4294901760
        %3963 = vmatmul.mubr.f32.gmra.mxu0 %v3962
        %v3964 = vpop.f32.mrf.mxu0
        %v3965 = vadd.f32 %v3873, %v3964
        %v3966 = vpop.f32.mrf.mxu0
        %3967 = vdwg.mxu0
        %3968 = vmatprep.subr.mxu0 0.0
        %3969 = vmatpush1.msra.mxu0 0.0
        %3970 = vmatprep.subr.mxu0 0.0
        %3971 = vmatpush1.msra.mxu0 0.0
        %3972 = vmatprep.subr.mxu0 0.0
        %3973 = vmatpush1.msra.mxu0 0.0
        %3974 = vmatprep.subr.mxu0 0.0
        %3975 = vmatpush1.msra.mxu0 0.0
        %3976 = vmatprep.subr.mxu0 0.0
        %3977 = vmatpush1.msra.mxu0 0.0
        %3978 = vmatprep.subr.mxu0 0.0
        %3979 = vmatpush1.msra.mxu0 0.0
        %3980 = vmatprep.subr.mxu0 0.0
        %3981 = vmatpush1.msra.mxu0 0.0
        %3982 = vmatprep.subr.mxu0 0.0
        %3983 = vmatpush1.msra.mxu0 0.0
        %3984 = vmatprep.subr.mxu0 0.0
        %3985 = vmatpush1.msra.mxu0 0.0
        %3986 = vmatprep.subr.mxu0 0.0
        %3987 = vmatpush1.msra.mxu0 0.0
        %3988 = vmatprep.subr.mxu0 0.0
        %3989 = vmatpush1.msra.mxu0 0.0
        %3990 = vmatprep.subr.mxu0 0.0
        %3991 = vmatpush1.msra.mxu0 0.0
        %3992 = vmatprep.subr.mxu0 0.0
        %3993 = vmatpush1.msra.mxu0 0.0
        %3994 = vmatprep.subr.mxu0 0.0
        %v3995 = vand.u32 %v1683, 4294901760
        %v3996 = vsub.f32 %v1683, %v3995
        %3997 = vmatpush1.msra.mxu0 %v3996
        %3998 = vmatprep.subr.mxu0 0.0
        %v3999 = vand.u32 %v1677, 4294901760
        %v4000 = vsub.f32 %v1677, %v3999
        %4001 = vmatpush1.msra.mxu0 %v4000
        %4002 = vmatprep.subr.mxu0 0.0
        %v4003 = vand.u32 %v1671, 4294901760
        %v4004 = vsub.f32 %v1671, %v4003
        %4005 = vmatpush1.msra.mxu0 %v4004
        %4006 = vmatprep.subr.mxu0 0.0
        %4007 = vmatpush2.msra.mxu0 0.0
        %4008 = vmatprep.subr.mxu0 0.0
        %4009 = vmatpush2.msra.mxu0 0.0
        %4010 = vmatprep.subr.mxu0 0.0
        %4011 = vmatpush2.msra.mxu0 0.0
        %4012 = vmatprep.subr.mxu0 0.0
        %4013 = vmatpush2.msra.mxu0 0.0
        %4014 = vmatprep.subr.mxu0 0.0
        %4015 = vmatpush2.msra.mxu0 0.0
        %4016 = vmatprep.subr.mxu0 0.0
        %4017 = vmatpush2.msra.mxu0 0.0
        %4018 = vmatprep.subr.mxu0 0.0
        %4019 = vmatpush2.msra.mxu0 0.0
        %4020 = vmatprep.subr.mxu0 0.0
        %4021 = vmatpush2.msra.mxu0 0.0
        %4022 = vmatprep.subr.mxu0 0.0
        %4023 = vmatpush2.msra.mxu0 0.0
        %4024 = vmatprep.subr.mxu0 0.0
        %4025 = vmatpush2.msra.mxu0 0.0
        %4026 = vmatprep.subr.mxu0 0.0
        %4027 = vmatpush2.msra.mxu0 0.0
        %4028 = vmatprep.subr.mxu0 0.0
        %4029 = vmatpush2.msra.mxu0 0.0
        %4030 = vmatprep.subr.mxu0 0.0
        %4031 = vmatpush2.msra.mxu0 0.0
        %4032 = vmatprep.subr.mxu0 0.0
        %4033 = vmatpush2.msra.mxu0 0.0
        %4034 = vmatprep.subr.mxu0 0.0
        %4035 = vmatpush2.msra.mxu0 0.0
        %4036 = vmatprep.subr.mxu0 0.0
        %4037 = vmatpush2.msra.mxu0 0.0
        %4038 = vmatprep.mubr.f32.mxu0 0.0
        %v4039 = vand.u32 %v1723, 4294901760
        %v4040 = vsub.f32 %v1723, %v4039
        %4041 = vmatmul.mubr.f32.gmra.mxu0 %v4040
        %v4042 = vpop.f32.mrf.mxu0
        %v4043 = vadd.f32 %v3959, %v4042
        %v4044 = vpop.f32.mrf.mxu0
        %4045 = vmatprep.mubr.f32.mxu0 0.0
        %v4046 = vand.u32 %v1726, 4294901760
        %v4047 = vsub.f32 %v1726, %v4046
        %4048 = vmatmul.mubr.f32.gmra.mxu0 %v4047
        %v4049 = vpop.f32.mrf.mxu0
        %v4050 = vadd.f32 %v3965, %v4049
        %v4051 = vpop.f32.mrf.mxu0
        %4052 = vdwg.mxu0
        %4053 = vmatprep.subr.mxu0 0.0
        %4054 = vmatpush1.msra.mxu0 0.0
        %4055 = vmatprep.subr.mxu0 0.0
        %4056 = vmatpush1.msra.mxu0 0.0
        %4057 = vmatprep.subr.mxu0 0.0
        %4058 = vmatpush1.msra.mxu0 0.0
        %4059 = vmatprep.subr.mxu0 0.0
        %4060 = vmatpush1.msra.mxu0 0.0
        %4061 = vmatprep.subr.mxu0 0.0
        %4062 = vmatpush1.msra.mxu0 0.0
        %4063 = vmatprep.subr.mxu0 0.0
        %4064 = vmatpush1.msra.mxu0 0.0
        %4065 = vmatprep.subr.mxu0 0.0
        %4066 = vmatpush1.msra.mxu0 0.0
        %4067 = vmatprep.subr.mxu0 0.0
        %4068 = vmatpush1.msra.mxu0 0.0
        %4069 = vmatprep.subr.mxu0 0.0
        %4070 = vmatpush1.msra.mxu0 0.0
        %4071 = vmatprep.subr.mxu0 0.0
        %4072 = vmatpush1.msra.mxu0 0.0
        %4073 = vmatprep.subr.mxu0 0.0
        %4074 = vmatpush1.msra.mxu0 0.0
        %4075 = vmatprep.subr.mxu0 0.0
        %4076 = vmatpush1.msra.mxu0 0.0
        %4077 = vmatprep.subr.mxu0 0.0
        %4078 = vmatpush1.msra.mxu0 0.0
        %4079 = vmatprep.subr.mxu0 0.0
        %v4080 = vand.u32 %v1683, 4294901760
        %4081 = vmatpush1.msra.mxu0 %v4080
        %4082 = vmatprep.subr.mxu0 0.0
        %v4083 = vand.u32 %v1677, 4294901760
        %4084 = vmatpush1.msra.mxu0 %v4083
        %4085 = vmatprep.subr.mxu0 0.0
        %v4086 = vand.u32 %v1671, 4294901760
        %4087 = vmatpush1.msra.mxu0 %v4086
        %4088 = vmatprep.subr.mxu0 0.0
        %4089 = vmatpush2.msra.mxu0 0.0
        %4090 = vmatprep.subr.mxu0 0.0
        %4091 = vmatpush2.msra.mxu0 0.0
        %4092 = vmatprep.subr.mxu0 0.0
        %4093 = vmatpush2.msra.mxu0 0.0
        %4094 = vmatprep.subr.mxu0 0.0
        %4095 = vmatpush2.msra.mxu0 0.0
        %4096 = vmatprep.subr.mxu0 0.0
        %4097 = vmatpush2.msra.mxu0 0.0
        %4098 = vmatprep.subr.mxu0 0.0
        %4099 = vmatpush2.msra.mxu0 0.0
        %4100 = vmatprep.subr.mxu0 0.0
        %4101 = vmatpush2.msra.mxu0 0.0
        %4102 = vmatprep.subr.mxu0 0.0
        %4103 = vmatpush2.msra.mxu0 0.0
        %4104 = vmatprep.subr.mxu0 0.0
        %4105 = vmatpush2.msra.mxu0 0.0
        %4106 = vmatprep.subr.mxu0 0.0
        %4107 = vmatpush2.msra.mxu0 0.0
        %4108 = vmatprep.subr.mxu0 0.0
        %4109 = vmatpush2.msra.mxu0 0.0
        %4110 = vmatprep.subr.mxu0 0.0
        %4111 = vmatpush2.msra.mxu0 0.0
        %4112 = vmatprep.subr.mxu0 0.0
        %4113 = vmatpush2.msra.mxu0 0.0
        %4114 = vmatprep.subr.mxu0 0.0
        %4115 = vmatpush2.msra.mxu0 0.0
        %4116 = vmatprep.subr.mxu0 0.0
        %4117 = vmatpush2.msra.mxu0 0.0
        %4118 = vmatprep.subr.mxu0 0.0
        %4119 = vmatpush2.msra.mxu0 0.0
        %4120 = vmatprep.mubr.f32.mxu0 0.0
        %v4121 = vand.u32 %v1723, 4294901760
        %v4122 = vsub.f32 %v1723, %v4121
        %v4123 = vand.u32 %v4122, 4294901760
        %4124 = vmatmul.mubr.f32.gmra.mxu0 %v4123
        %v4125 = vpop.f32.mrf.mxu0
        %v4126 = vadd.f32 %v4043, %v4125
        %v4127 = vpop.f32.mrf.mxu0
        %4128 = vmatprep.mubr.f32.mxu0 0.0
        %v4129 = vand.u32 %v1726, 4294901760
        %v4130 = vsub.f32 %v1726, %v4129
        %v4131 = vand.u32 %v4130, 4294901760
        %4132 = vmatmul.mubr.f32.gmra.mxu0 %v4131
        %v4133 = vpop.f32.mrf.mxu0
        %v4134 = vadd.f32 %v4050, %v4133
        %v4135 = vpop.f32.mrf.mxu0
        %4136 = vdwg.mxu0
        %4137 = vmatprep.subr.mxu0 0.0
        %4138 = vmatpush1.msra.mxu0 0.0
        %4139 = vmatprep.subr.mxu0 0.0
        %4140 = vmatpush1.msra.mxu0 0.0
        %4141 = vmatprep.subr.mxu0 0.0
        %4142 = vmatpush1.msra.mxu0 0.0
        %4143 = vmatprep.subr.mxu0 0.0
        %4144 = vmatpush1.msra.mxu0 0.0
        %4145 = vmatprep.subr.mxu0 0.0
        %4146 = vmatpush1.msra.mxu0 0.0
        %4147 = vmatprep.subr.mxu0 0.0
        %4148 = vmatpush1.msra.mxu0 0.0
        %4149 = vmatprep.subr.mxu0 0.0
        %4150 = vmatpush1.msra.mxu0 0.0
        %4151 = vmatprep.subr.mxu0 0.0
        %4152 = vmatpush1.msra.mxu0 0.0
        %4153 = vmatprep.subr.mxu0 0.0
        %4154 = vmatpush1.msra.mxu0 0.0
        %4155 = vmatprep.subr.mxu0 0.0
        %4156 = vmatpush1.msra.mxu0 0.0
        %4157 = vmatprep.subr.mxu0 0.0
        %4158 = vmatpush1.msra.mxu0 0.0
        %4159 = vmatprep.subr.mxu0 0.0
        %4160 = vmatpush1.msra.mxu0 0.0
        %4161 = vmatprep.subr.mxu0 0.0
        %4162 = vmatpush1.msra.mxu0 0.0
        %4163 = vmatprep.subr.mxu0 0.0
        %v4164 = vand.u32 %v1683, 4294901760
        %v4165 = vsub.f32 %v1683, %v4164
        %v4166 = vand.u32 %v4165, 4294901760
        %4167 = vmatpush1.msra.mxu0 %v4166
        %4168 = vmatprep.subr.mxu0 0.0
        %v4169 = vand.u32 %v1677, 4294901760
        %v4170 = vsub.f32 %v1677, %v4169
        %v4171 = vand.u32 %v4170, 4294901760
        %4172 = vmatpush1.msra.mxu0 %v4171
        %4173 = vmatprep.subr.mxu0 0.0
        %v4174 = vand.u32 %v1671, 4294901760
        %v4175 = vsub.f32 %v1671, %v4174
        %v4176 = vand.u32 %v4175, 4294901760
        %4177 = vmatpush1.msra.mxu0 %v4176
        %4178 = vmatprep.subr.mxu0 0.0
        %4179 = vmatpush2.msra.mxu0 0.0
        %4180 = vmatprep.subr.mxu0 0.0
        %4181 = vmatpush2.msra.mxu0 0.0
        %4182 = vmatprep.subr.mxu0 0.0
        %4183 = vmatpush2.msra.mxu0 0.0
        %4184 = vmatprep.subr.mxu0 0.0
        %4185 = vmatpush2.msra.mxu0 0.0
        %4186 = vmatprep.subr.mxu0 0.0
        %4187 = vmatpush2.msra.mxu0 0.0
        %4188 = vmatprep.subr.mxu0 0.0
        %4189 = vmatpush2.msra.mxu0 0.0
        %4190 = vmatprep.subr.mxu0 0.0
        %4191 = vmatpush2.msra.mxu0 0.0
        %4192 = vmatprep.subr.mxu0 0.0
        %4193 = vmatpush2.msra.mxu0 0.0
        %4194 = vmatprep.subr.mxu0 0.0
        %4195 = vmatpush2.msra.mxu0 0.0
        %4196 = vmatprep.subr.mxu0 0.0
        %4197 = vmatpush2.msra.mxu0 0.0
        %4198 = vmatprep.subr.mxu0 0.0
        %4199 = vmatpush2.msra.mxu0 0.0
        %4200 = vmatprep.subr.mxu0 0.0
        %4201 = vmatpush2.msra.mxu0 0.0
        %4202 = vmatprep.subr.mxu0 0.0
        %4203 = vmatpush2.msra.mxu0 0.0
        %4204 = vmatprep.subr.mxu0 0.0
        %4205 = vmatpush2.msra.mxu0 0.0
        %4206 = vmatprep.subr.mxu0 0.0
        %4207 = vmatpush2.msra.mxu0 0.0
        %4208 = vmatprep.subr.mxu0 0.0
        %4209 = vmatpush2.msra.mxu0 0.0
        %4210 = vmatprep.mubr.f32.mxu0 0.0
        %v4211 = vand.u32 %v1723, 4294901760
        %4212 = vmatmul.mubr.f32.gmra.mxu0 %v4211
        %v4213 = vpop.f32.mrf.mxu0
        %v4214 = vadd.f32 %v4126, %v4213
        %v4215 = vpop.f32.mrf.mxu0
        %4216 = vmatprep.mubr.f32.mxu0 0.0
        %v4217 = vand.u32 %v1726, 4294901760
        %4218 = vmatmul.mubr.f32.gmra.mxu0 %v4217
        %v4219 = vpop.f32.mrf.mxu0
        %v4220 = vadd.f32 %v4134, %v4219
        %v4221 = vpop.f32.mrf.mxu0
        %4222 = vdwg.mxu0
        %4223 = vmatprep.subr.mxu0 0.0
        %4224 = vmatpush1.msra.mxu0 0.0
        %4225 = vmatprep.subr.mxu0 0.0
        %4226 = vmatpush1.msra.mxu0 0.0
        %4227 = vmatprep.subr.mxu0 0.0
        %4228 = vmatpush1.msra.mxu0 0.0
        %4229 = vmatprep.subr.mxu0 0.0
        %4230 = vmatpush1.msra.mxu0 0.0
        %4231 = vmatprep.subr.mxu0 0.0
        %4232 = vmatpush1.msra.mxu0 0.0
        %4233 = vmatprep.subr.mxu0 0.0
        %4234 = vmatpush1.msra.mxu0 0.0
        %4235 = vmatprep.subr.mxu0 0.0
        %4236 = vmatpush1.msra.mxu0 0.0
        %4237 = vmatprep.subr.mxu0 0.0
        %4238 = vmatpush1.msra.mxu0 0.0
        %4239 = vmatprep.subr.mxu0 0.0
        %4240 = vmatpush1.msra.mxu0 0.0
        %4241 = vmatprep.subr.mxu0 0.0
        %4242 = vmatpush1.msra.mxu0 0.0
        %4243 = vmatprep.subr.mxu0 0.0
        %4244 = vmatpush1.msra.mxu0 0.0
        %4245 = vmatprep.subr.mxu0 0.0
        %4246 = vmatpush1.msra.mxu0 0.0
        %4247 = vmatprep.subr.mxu0 0.0
        %4248 = vmatpush1.msra.mxu0 0.0
        %4249 = vmatprep.subr.mxu0 0.0
        %v4250 = vand.u32 %v1683, 4294901760
        %4251 = vmatpush1.msra.mxu0 %v4250
        %4252 = vmatprep.subr.mxu0 0.0
        %v4253 = vand.u32 %v1677, 4294901760
        %4254 = vmatpush1.msra.mxu0 %v4253
        %4255 = vmatprep.subr.mxu0 0.0
        %v4256 = vand.u32 %v1671, 4294901760
        %4257 = vmatpush1.msra.mxu0 %v4256
        %4258 = vmatprep.subr.mxu0 0.0
        %4259 = vmatpush2.msra.mxu0 0.0
        %4260 = vmatprep.subr.mxu0 0.0
        %4261 = vmatpush2.msra.mxu0 0.0
        %4262 = vmatprep.subr.mxu0 0.0
        %4263 = vmatpush2.msra.mxu0 0.0
        %4264 = vmatprep.subr.mxu0 0.0
        %4265 = vmatpush2.msra.mxu0 0.0
        %4266 = vmatprep.subr.mxu0 0.0
        %4267 = vmatpush2.msra.mxu0 0.0
        %4268 = vmatprep.subr.mxu0 0.0
        %4269 = vmatpush2.msra.mxu0 0.0
        %4270 = vmatprep.subr.mxu0 0.0
        %4271 = vmatpush2.msra.mxu0 0.0
        %4272 = vmatprep.subr.mxu0 0.0
        %4273 = vmatpush2.msra.mxu0 0.0
        %4274 = vmatprep.subr.mxu0 0.0
        %4275 = vmatpush2.msra.mxu0 0.0
        %4276 = vmatprep.subr.mxu0 0.0
        %4277 = vmatpush2.msra.mxu0 0.0
        %4278 = vmatprep.subr.mxu0 0.0
        %4279 = vmatpush2.msra.mxu0 0.0
        %4280 = vmatprep.subr.mxu0 0.0
        %4281 = vmatpush2.msra.mxu0 0.0
        %4282 = vmatprep.subr.mxu0 0.0
        %4283 = vmatpush2.msra.mxu0 0.0
        %4284 = vmatprep.subr.mxu0 0.0
        %4285 = vmatpush2.msra.mxu0 0.0
        %4286 = vmatprep.subr.mxu0 0.0
        %4287 = vmatpush2.msra.mxu0 0.0
        %4288 = vmatprep.subr.mxu0 0.0
        %4289 = vmatpush2.msra.mxu0 0.0
        %4290 = vmatprep.mubr.f32.mxu0 0.0
        %v4291 = vand.u32 %v1723, 4294901760
        %4292 = vmatmul.mubr.f32.gmra.mxu0 %v4291
        %v4293 = vpop.f32.mrf.mxu0
        %v4294 = vadd.f32 %v4214, %v4293
        %v4295 = vpop.f32.mrf.mxu0
        %4296 = vmatprep.mubr.f32.mxu0 0.0
        %v4297 = vand.u32 %v1726, 4294901760
        %4298 = vmatmul.mubr.f32.gmra.mxu0 %v4297
        %v4299 = vpop.f32.mrf.mxu0
        %v4300 = vadd.f32 %v4220, %v4299
        %v4301 = vpop.f32.mrf.mxu0
        %4302 = vdwg.mxu0
        %4303 = vmatprep.subr.mxu0 0.0
        %4304 = vmatpush1.msra.mxu0 0.0
        %4305 = vmatprep.subr.mxu0 0.0
        %4306 = vmatpush1.msra.mxu0 0.0
        %4307 = vmatprep.subr.mxu0 0.0
        %4308 = vmatpush1.msra.mxu0 0.0
        %4309 = vmatprep.subr.mxu0 0.0
        %4310 = vmatpush1.msra.mxu0 0.0
        %4311 = vmatprep.subr.mxu0 0.0
        %4312 = vmatpush1.msra.mxu0 0.0
        %4313 = vmatprep.subr.mxu0 0.0
        %4314 = vmatpush1.msra.mxu0 0.0
        %4315 = vmatprep.subr.mxu0 0.0
        %4316 = vmatpush1.msra.mxu0 0.0
        %4317 = vmatprep.subr.mxu0 0.0
        %4318 = vmatpush1.msra.mxu0 0.0
        %4319 = vmatprep.subr.mxu0 0.0
        %4320 = vmatpush1.msra.mxu0 0.0
        %4321 = vmatprep.subr.mxu0 0.0
        %4322 = vmatpush1.msra.mxu0 0.0
        %4323 = vmatprep.subr.mxu0 0.0
        %4324 = vmatpush1.msra.mxu0 0.0
        %4325 = vmatprep.subr.mxu0 0.0
        %4326 = vmatpush1.msra.mxu0 0.0
        %4327 = vmatprep.subr.mxu0 0.0
        %4328 = vmatpush1.msra.mxu0 0.0
        %4329 = vmatprep.subr.mxu0 0.0
        %v4330 = vand.u32 %v1701, 4294901760
        %4331 = vmatpush1.msra.mxu0 %v4330
        %4332 = vmatprep.subr.mxu0 0.0
        %v4333 = vand.u32 %v1695, 4294901760
        %4334 = vmatpush1.msra.mxu0 %v4333
        %4335 = vmatprep.subr.mxu0 0.0
        %v4336 = vand.u32 %v1689, 4294901760
        %4337 = vmatpush1.msra.mxu0 %v4336
        %4338 = vmatprep.subr.mxu0 0.0
        %4339 = vmatpush2.msra.mxu0 0.0
        %4340 = vmatprep.subr.mxu0 0.0
        %4341 = vmatpush2.msra.mxu0 0.0
        %4342 = vmatprep.subr.mxu0 0.0
        %4343 = vmatpush2.msra.mxu0 0.0
        %4344 = vmatprep.subr.mxu0 0.0
        %4345 = vmatpush2.msra.mxu0 0.0
        %4346 = vmatprep.subr.mxu0 0.0
        %4347 = vmatpush2.msra.mxu0 0.0
        %4348 = vmatprep.subr.mxu0 0.0
        %4349 = vmatpush2.msra.mxu0 0.0
        %4350 = vmatprep.subr.mxu0 0.0
        %4351 = vmatpush2.msra.mxu0 0.0
        %4352 = vmatprep.subr.mxu0 0.0
        %4353 = vmatpush2.msra.mxu0 0.0
        %4354 = vmatprep.subr.mxu0 0.0
        %4355 = vmatpush2.msra.mxu0 0.0
        %4356 = vmatprep.subr.mxu0 0.0
        %4357 = vmatpush2.msra.mxu0 0.0
        %4358 = vmatprep.subr.mxu0 0.0
        %4359 = vmatpush2.msra.mxu0 0.0
        %4360 = vmatprep.subr.mxu0 0.0
        %4361 = vmatpush2.msra.mxu0 0.0
        %4362 = vmatprep.subr.mxu0 0.0
        %4363 = vmatpush2.msra.mxu0 0.0
        %4364 = vmatprep.subr.mxu0 0.0
        %4365 = vmatpush2.msra.mxu0 0.0
        %4366 = vmatprep.subr.mxu0 0.0
        %4367 = vmatpush2.msra.mxu0 0.0
        %4368 = vmatprep.subr.mxu0 0.0
        %4369 = vmatpush2.msra.mxu0 0.0
        %4370 = vmatprep.mubr.f32.mxu0 0.0
        %v4371 = vand.u32 %v1723, 4294901760
        %v4372 = vsub.f32 %v1723, %v4371
        %v4373 = vand.u32 %v4372, 4294901760
        %v4374 = vsub.f32 %v4372, %v4373
        %v4375 = vand.u32 %v4374, 4294901760
        %4376 = vmatmul.mubr.f32.gmra.mxu0 %v4375
        %v4377 = vpop.f32.mrf.mxu0
        %v4378 = vadd.f32 0.0, %v4377
        %v4379 = vpop.f32.mrf.mxu0
        %4380 = vmatprep.mubr.f32.mxu0 0.0
        %v4381 = vand.u32 %v1726, 4294901760
        %v4382 = vsub.f32 %v1726, %v4381
        %v4383 = vand.u32 %v4382, 4294901760
        %v4384 = vsub.f32 %v4382, %v4383
        %v4385 = vand.u32 %v4384, 4294901760
        %4386 = vmatmul.mubr.f32.gmra.mxu0 %v4385
        %v4387 = vpop.f32.mrf.mxu0
        %v4388 = vadd.f32 0.0, %v4387
        %v4389 = vpop.f32.mrf.mxu0
        %4390 = vdwg.mxu0
        %4391 = vmatprep.subr.mxu0 0.0
        %4392 = vmatpush1.msra.mxu0 0.0
        %4393 = vmatprep.subr.mxu0 0.0
        %4394 = vmatpush1.msra.mxu0 0.0
        %4395 = vmatprep.subr.mxu0 0.0
        %4396 = vmatpush1.msra.mxu0 0.0
        %4397 = vmatprep.subr.mxu0 0.0
        %4398 = vmatpush1.msra.mxu0 0.0
        %4399 = vmatprep.subr.mxu0 0.0
        %4400 = vmatpush1.msra.mxu0 0.0
        %4401 = vmatprep.subr.mxu0 0.0
        %4402 = vmatpush1.msra.mxu0 0.0
        %4403 = vmatprep.subr.mxu0 0.0
        %4404 = vmatpush1.msra.mxu0 0.0
        %4405 = vmatprep.subr.mxu0 0.0
        %4406 = vmatpush1.msra.mxu0 0.0
        %4407 = vmatprep.subr.mxu0 0.0
        %4408 = vmatpush1.msra.mxu0 0.0
        %4409 = vmatprep.subr.mxu0 0.0
        %4410 = vmatpush1.msra.mxu0 0.0
        %4411 = vmatprep.subr.mxu0 0.0
        %4412 = vmatpush1.msra.mxu0 0.0
        %4413 = vmatprep.subr.mxu0 0.0
        %4414 = vmatpush1.msra.mxu0 0.0
        %4415 = vmatprep.subr.mxu0 0.0
        %4416 = vmatpush1.msra.mxu0 0.0
        %4417 = vmatprep.subr.mxu0 0.0
        %v4418 = vand.u32 %v1701, 4294901760
        %v4419 = vsub.f32 %v1701, %v4418
        %v4420 = vand.u32 %v4419, 4294901760
        %v4421 = vsub.f32 %v4419, %v4420
        %v4422 = vand.u32 %v4421, 4294901760
        %4423 = vmatpush1.msra.mxu0 %v4422
        %4424 = vmatprep.subr.mxu0 0.0
        %v4425 = vand.u32 %v1695, 4294901760
        %v4426 = vsub.f32 %v1695, %v4425
        %v4427 = vand.u32 %v4426, 4294901760
        %v4428 = vsub.f32 %v4426, %v4427
        %v4429 = vand.u32 %v4428, 4294901760
        %4430 = vmatpush1.msra.mxu0 %v4429
        %4431 = vmatprep.subr.mxu0 0.0
        %v4432 = vand.u32 %v1689, 4294901760
        %v4433 = vsub.f32 %v1689, %v4432
        %v4434 = vand.u32 %v4433, 4294901760
        %v4435 = vsub.f32 %v4433, %v4434
        %v4436 = vand.u32 %v4435, 4294901760
        %4437 = vmatpush1.msra.mxu0 %v4436
        %4438 = vmatprep.subr.mxu0 0.0
        %4439 = vmatpush2.msra.mxu0 0.0
        %4440 = vmatprep.subr.mxu0 0.0
        %4441 = vmatpush2.msra.mxu0 0.0
        %4442 = vmatprep.subr.mxu0 0.0
        %4443 = vmatpush2.msra.mxu0 0.0
        %4444 = vmatprep.subr.mxu0 0.0
        %4445 = vmatpush2.msra.mxu0 0.0
        %4446 = vmatprep.subr.mxu0 0.0
        %4447 = vmatpush2.msra.mxu0 0.0
        %4448 = vmatprep.subr.mxu0 0.0
        %4449 = vmatpush2.msra.mxu0 0.0
        %4450 = vmatprep.subr.mxu0 0.0
        %4451 = vmatpush2.msra.mxu0 0.0
        %4452 = vmatprep.subr.mxu0 0.0
        %4453 = vmatpush2.msra.mxu0 0.0
        %4454 = vmatprep.subr.mxu0 0.0
        %4455 = vmatpush2.msra.mxu0 0.0
        %4456 = vmatprep.subr.mxu0 0.0
        %4457 = vmatpush2.msra.mxu0 0.0
        %4458 = vmatprep.subr.mxu0 0.0
        %4459 = vmatpush2.msra.mxu0 0.0
        %4460 = vmatprep.subr.mxu0 0.0
        %4461 = vmatpush2.msra.mxu0 0.0
        %4462 = vmatprep.subr.mxu0 0.0
        %4463 = vmatpush2.msra.mxu0 0.0
        %4464 = vmatprep.subr.mxu0 0.0
        %4465 = vmatpush2.msra.mxu0 0.0
        %4466 = vmatprep.subr.mxu0 0.0
        %4467 = vmatpush2.msra.mxu0 0.0
        %4468 = vmatprep.subr.mxu0 0.0
        %4469 = vmatpush2.msra.mxu0 0.0
        %4470 = vmatprep.mubr.f32.mxu0 0.0
        %v4471 = vand.u32 %v1723, 4294901760
        %4472 = vmatmul.mubr.f32.gmra.mxu0 %v4471
        %v4473 = vpop.f32.mrf.mxu0
        %v4474 = vadd.f32 %v4378, %v4473
        %v4475 = vpop.f32.mrf.mxu0
        %4476 = vmatprep.mubr.f32.mxu0 0.0
        %v4477 = vand.u32 %v1726, 4294901760
        %4478 = vmatmul.mubr.f32.gmra.mxu0 %v4477
        %v4479 = vpop.f32.mrf.mxu0
        %v4480 = vadd.f32 %v4388, %v4479
        %v4481 = vpop.f32.mrf.mxu0
        %4482 = vdwg.mxu0
        %4483 = vmatprep.subr.mxu0 0.0
        %4484 = vmatpush1.msra.mxu0 0.0
        %4485 = vmatprep.subr.mxu0 0.0
        %4486 = vmatpush1.msra.mxu0 0.0
        %4487 = vmatprep.subr.mxu0 0.0
        %4488 = vmatpush1.msra.mxu0 0.0
        %4489 = vmatprep.subr.mxu0 0.0
        %4490 = vmatpush1.msra.mxu0 0.0
        %4491 = vmatprep.subr.mxu0 0.0
        %4492 = vmatpush1.msra.mxu0 0.0
        %4493 = vmatprep.subr.mxu0 0.0
        %4494 = vmatpush1.msra.mxu0 0.0
        %4495 = vmatprep.subr.mxu0 0.0
        %4496 = vmatpush1.msra.mxu0 0.0
        %4497 = vmatprep.subr.mxu0 0.0
        %4498 = vmatpush1.msra.mxu0 0.0
        %4499 = vmatprep.subr.mxu0 0.0
        %4500 = vmatpush1.msra.mxu0 0.0
        %4501 = vmatprep.subr.mxu0 0.0
        %4502 = vmatpush1.msra.mxu0 0.0
        %4503 = vmatprep.subr.mxu0 0.0
        %4504 = vmatpush1.msra.mxu0 0.0
        %4505 = vmatprep.subr.mxu0 0.0
        %4506 = vmatpush1.msra.mxu0 0.0
        %4507 = vmatprep.subr.mxu0 0.0
        %4508 = vmatpush1.msra.mxu0 0.0
        %4509 = vmatprep.subr.mxu0 0.0
        %v4510 = vand.u32 %v1701, 4294901760
        %v4511 = vsub.f32 %v1701, %v4510
        %4512 = vmatpush1.msra.mxu0 %v4511
        %4513 = vmatprep.subr.mxu0 0.0
        %v4514 = vand.u32 %v1695, 4294901760
        %v4515 = vsub.f32 %v1695, %v4514
        %4516 = vmatpush1.msra.mxu0 %v4515
        %4517 = vmatprep.subr.mxu0 0.0
        %v4518 = vand.u32 %v1689, 4294901760
        %v4519 = vsub.f32 %v1689, %v4518
        %4520 = vmatpush1.msra.mxu0 %v4519
        %4521 = vmatprep.subr.mxu0 0.0
        %4522 = vmatpush2.msra.mxu0 0.0
        %4523 = vmatprep.subr.mxu0 0.0
        %4524 = vmatpush2.msra.mxu0 0.0
        %4525 = vmatprep.subr.mxu0 0.0
        %4526 = vmatpush2.msra.mxu0 0.0
        %4527 = vmatprep.subr.mxu0 0.0
        %4528 = vmatpush2.msra.mxu0 0.0
        %4529 = vmatprep.subr.mxu0 0.0
        %4530 = vmatpush2.msra.mxu0 0.0
        %4531 = vmatprep.subr.mxu0 0.0
        %4532 = vmatpush2.msra.mxu0 0.0
        %4533 = vmatprep.subr.mxu0 0.0
        %4534 = vmatpush2.msra.mxu0 0.0
        %4535 = vmatprep.subr.mxu0 0.0
        %4536 = vmatpush2.msra.mxu0 0.0
        %4537 = vmatprep.subr.mxu0 0.0
        %4538 = vmatpush2.msra.mxu0 0.0
        %4539 = vmatprep.subr.mxu0 0.0
        %4540 = vmatpush2.msra.mxu0 0.0
        %4541 = vmatprep.subr.mxu0 0.0
        %4542 = vmatpush2.msra.mxu0 0.0
        %4543 = vmatprep.subr.mxu0 0.0
        %4544 = vmatpush2.msra.mxu0 0.0
        %4545 = vmatprep.subr.mxu0 0.0
        %4546 = vmatpush2.msra.mxu0 0.0
        %4547 = vmatprep.subr.mxu0 0.0
        %4548 = vmatpush2.msra.mxu0 0.0
        %4549 = vmatprep.subr.mxu0 0.0
        %4550 = vmatpush2.msra.mxu0 0.0
        %4551 = vmatprep.subr.mxu0 0.0
        %4552 = vmatpush2.msra.mxu0 0.0
        %4553 = vmatprep.mubr.f32.mxu0 0.0
        %v4554 = vand.u32 %v1723, 4294901760
        %v4555 = vsub.f32 %v1723, %v4554
        %4556 = vmatmul.mubr.f32.gmra.mxu0 %v4555
        %v4557 = vpop.f32.mrf.mxu0
        %v4558 = vadd.f32 %v4474, %v4557
        %v4559 = vpop.f32.mrf.mxu0
        %4560 = vmatprep.mubr.f32.mxu0 0.0
        %v4561 = vand.u32 %v1726, 4294901760
        %v4562 = vsub.f32 %v1726, %v4561
        %4563 = vmatmul.mubr.f32.gmra.mxu0 %v4562
        %v4564 = vpop.f32.mrf.mxu0
        %v4565 = vadd.f32 %v4480, %v4564
        %v4566 = vpop.f32.mrf.mxu0
        %4567 = vdwg.mxu0
        %4568 = vmatprep.subr.mxu0 0.0
        %4569 = vmatpush1.msra.mxu0 0.0
        %4570 = vmatprep.subr.mxu0 0.0
        %4571 = vmatpush1.msra.mxu0 0.0
        %4572 = vmatprep.subr.mxu0 0.0
        %4573 = vmatpush1.msra.mxu0 0.0
        %4574 = vmatprep.subr.mxu0 0.0
        %4575 = vmatpush1.msra.mxu0 0.0
        %4576 = vmatprep.subr.mxu0 0.0
        %4577 = vmatpush1.msra.mxu0 0.0
        %4578 = vmatprep.subr.mxu0 0.0
        %4579 = vmatpush1.msra.mxu0 0.0
        %4580 = vmatprep.subr.mxu0 0.0
        %4581 = vmatpush1.msra.mxu0 0.0
        %4582 = vmatprep.subr.mxu0 0.0
        %4583 = vmatpush1.msra.mxu0 0.0
        %4584 = vmatprep.subr.mxu0 0.0
        %4585 = vmatpush1.msra.mxu0 0.0
        %4586 = vmatprep.subr.mxu0 0.0
        %4587 = vmatpush1.msra.mxu0 0.0
        %4588 = vmatprep.subr.mxu0 0.0
        %4589 = vmatpush1.msra.mxu0 0.0
        %4590 = vmatprep.subr.mxu0 0.0
        %4591 = vmatpush1.msra.mxu0 0.0
        %4592 = vmatprep.subr.mxu0 0.0
        %4593 = vmatpush1.msra.mxu0 0.0
        %4594 = vmatprep.subr.mxu0 0.0
        %v4595 = vand.u32 %v1701, 4294901760
        %4596 = vmatpush1.msra.mxu0 %v4595
        %4597 = vmatprep.subr.mxu0 0.0
        %v4598 = vand.u32 %v1695, 4294901760
        %4599 = vmatpush1.msra.mxu0 %v4598
        %4600 = vmatprep.subr.mxu0 0.0
        %v4601 = vand.u32 %v1689, 4294901760
        %4602 = vmatpush1.msra.mxu0 %v4601
        %4603 = vmatprep.subr.mxu0 0.0
        %4604 = vmatpush2.msra.mxu0 0.0
        %4605 = vmatprep.subr.mxu0 0.0
        %4606 = vmatpush2.msra.mxu0 0.0
        %4607 = vmatprep.subr.mxu0 0.0
        %4608 = vmatpush2.msra.mxu0 0.0
        %4609 = vmatprep.subr.mxu0 0.0
        %4610 = vmatpush2.msra.mxu0 0.0
        %4611 = vmatprep.subr.mxu0 0.0
        %4612 = vmatpush2.msra.mxu0 0.0
        %4613 = vmatprep.subr.mxu0 0.0
        %4614 = vmatpush2.msra.mxu0 0.0
        %4615 = vmatprep.subr.mxu0 0.0
        %4616 = vmatpush2.msra.mxu0 0.0
        %4617 = vmatprep.subr.mxu0 0.0
        %4618 = vmatpush2.msra.mxu0 0.0
        %4619 = vmatprep.subr.mxu0 0.0
        %4620 = vmatpush2.msra.mxu0 0.0
        %4621 = vmatprep.subr.mxu0 0.0
        %4622 = vmatpush2.msra.mxu0 0.0
        %4623 = vmatprep.subr.mxu0 0.0
        %4624 = vmatpush2.msra.mxu0 0.0
        %4625 = vmatprep.subr.mxu0 0.0
        %4626 = vmatpush2.msra.mxu0 0.0
        %4627 = vmatprep.subr.mxu0 0.0
        %4628 = vmatpush2.msra.mxu0 0.0
        %4629 = vmatprep.subr.mxu0 0.0
        %4630 = vmatpush2.msra.mxu0 0.0
        %4631 = vmatprep.subr.mxu0 0.0
        %4632 = vmatpush2.msra.mxu0 0.0
        %4633 = vmatprep.subr.mxu0 0.0
        %4634 = vmatpush2.msra.mxu0 0.0
        %4635 = vmatprep.mubr.f32.mxu0 0.0
        %v4636 = vand.u32 %v1723, 4294901760
        %v4637 = vsub.f32 %v1723, %v4636
        %v4638 = vand.u32 %v4637, 4294901760
        %4639 = vmatmul.mubr.f32.gmra.mxu0 %v4638
        %v4640 = vpop.f32.mrf.mxu0
        %v4641 = vadd.f32 %v4558, %v4640
        %v4642 = vpop.f32.mrf.mxu0
        %4643 = vmatprep.mubr.f32.mxu0 0.0
        %v4644 = vand.u32 %v1726, 4294901760
        %v4645 = vsub.f32 %v1726, %v4644
        %v4646 = vand.u32 %v4645, 4294901760
        %4647 = vmatmul.mubr.f32.gmra.mxu0 %v4646
        %v4648 = vpop.f32.mrf.mxu0
        %v4649 = vadd.f32 %v4565, %v4648
        %v4650 = vpop.f32.mrf.mxu0
        %4651 = vdwg.mxu0
        %4652 = vmatprep.subr.mxu0 0.0
        %4653 = vmatpush1.msra.mxu0 0.0
        %4654 = vmatprep.subr.mxu0 0.0
        %4655 = vmatpush1.msra.mxu0 0.0
        %4656 = vmatprep.subr.mxu0 0.0
        %4657 = vmatpush1.msra.mxu0 0.0
        %4658 = vmatprep.subr.mxu0 0.0
        %4659 = vmatpush1.msra.mxu0 0.0
        %4660 = vmatprep.subr.mxu0 0.0
        %4661 = vmatpush1.msra.mxu0 0.0
        %4662 = vmatprep.subr.mxu0 0.0
        %4663 = vmatpush1.msra.mxu0 0.0
        %4664 = vmatprep.subr.mxu0 0.0
        %4665 = vmatpush1.msra.mxu0 0.0
        %4666 = vmatprep.subr.mxu0 0.0
        %4667 = vmatpush1.msra.mxu0 0.0
        %4668 = vmatprep.subr.mxu0 0.0
        %4669 = vmatpush1.msra.mxu0 0.0
        %4670 = vmatprep.subr.mxu0 0.0
        %4671 = vmatpush1.msra.mxu0 0.0
        %4672 = vmatprep.subr.mxu0 0.0
        %4673 = vmatpush1.msra.mxu0 0.0
        %4674 = vmatprep.subr.mxu0 0.0
        %4675 = vmatpush1.msra.mxu0 0.0
        %4676 = vmatprep.subr.mxu0 0.0
        %4677 = vmatpush1.msra.mxu0 0.0
        %4678 = vmatprep.subr.mxu0 0.0
        %v4679 = vand.u32 %v1701, 4294901760
        %v4680 = vsub.f32 %v1701, %v4679
        %v4681 = vand.u32 %v4680, 4294901760
        %4682 = vmatpush1.msra.mxu0 %v4681
        %4683 = vmatprep.subr.mxu0 0.0
        %v4684 = vand.u32 %v1695, 4294901760
        %v4685 = vsub.f32 %v1695, %v4684
        %v4686 = vand.u32 %v4685, 4294901760
        %4687 = vmatpush1.msra.mxu0 %v4686
        %4688 = vmatprep.subr.mxu0 0.0
        %v4689 = vand.u32 %v1689, 4294901760
        %v4690 = vsub.f32 %v1689, %v4689
        %v4691 = vand.u32 %v4690, 4294901760
        %4692 = vmatpush1.msra.mxu0 %v4691
        %4693 = vmatprep.subr.mxu0 0.0
        %4694 = vmatpush2.msra.mxu0 0.0
        %4695 = vmatprep.subr.mxu0 0.0
        %4696 = vmatpush2.msra.mxu0 0.0
        %4697 = vmatprep.subr.mxu0 0.0
        %4698 = vmatpush2.msra.mxu0 0.0
        %4699 = vmatprep.subr.mxu0 0.0
        %4700 = vmatpush2.msra.mxu0 0.0
        %4701 = vmatprep.subr.mxu0 0.0
        %4702 = vmatpush2.msra.mxu0 0.0
        %4703 = vmatprep.subr.mxu0 0.0
        %4704 = vmatpush2.msra.mxu0 0.0
        %4705 = vmatprep.subr.mxu0 0.0
        %4706 = vmatpush2.msra.mxu0 0.0
        %4707 = vmatprep.subr.mxu0 0.0
        %4708 = vmatpush2.msra.mxu0 0.0
        %4709 = vmatprep.subr.mxu0 0.0
        %4710 = vmatpush2.msra.mxu0 0.0
        %4711 = vmatprep.subr.mxu0 0.0
        %4712 = vmatpush2.msra.mxu0 0.0
        %4713 = vmatprep.subr.mxu0 0.0
        %4714 = vmatpush2.msra.mxu0 0.0
        %4715 = vmatprep.subr.mxu0 0.0
        %4716 = vmatpush2.msra.mxu0 0.0
        %4717 = vmatprep.subr.mxu0 0.0
        %4718 = vmatpush2.msra.mxu0 0.0
        %4719 = vmatprep.subr.mxu0 0.0
        %4720 = vmatpush2.msra.mxu0 0.0
        %4721 = vmatprep.subr.mxu0 0.0
        %4722 = vmatpush2.msra.mxu0 0.0
        %4723 = vmatprep.subr.mxu0 0.0
        %4724 = vmatpush2.msra.mxu0 0.0
        %4725 = vmatprep.mubr.f32.mxu0 0.0
        %v4726 = vand.u32 %v1723, 4294901760
        %4727 = vmatmul.mubr.f32.gmra.mxu0 %v4726
        %v4728 = vpop.f32.mrf.mxu0
        %v4729 = vadd.f32 %v4641, %v4728
        %v4730 = vpop.f32.mrf.mxu0
        %4731 = vmatprep.mubr.f32.mxu0 0.0
        %v4732 = vand.u32 %v1726, 4294901760
        %4733 = vmatmul.mubr.f32.gmra.mxu0 %v4732
        %v4734 = vpop.f32.mrf.mxu0
        %v4735 = vadd.f32 %v4649, %v4734
        %v4736 = vpop.f32.mrf.mxu0
        %4737 = vdwg.mxu0
        %4738 = vmatprep.subr.mxu0 0.0
        %4739 = vmatpush1.msra.mxu0 0.0
        %4740 = vmatprep.subr.mxu0 0.0
        %4741 = vmatpush1.msra.mxu0 0.0
        %4742 = vmatprep.subr.mxu0 0.0
        %4743 = vmatpush1.msra.mxu0 0.0
        %4744 = vmatprep.subr.mxu0 0.0
        %4745 = vmatpush1.msra.mxu0 0.0
        %4746 = vmatprep.subr.mxu0 0.0
        %4747 = vmatpush1.msra.mxu0 0.0
        %4748 = vmatprep.subr.mxu0 0.0
        %4749 = vmatpush1.msra.mxu0 0.0
        %4750 = vmatprep.subr.mxu0 0.0
        %4751 = vmatpush1.msra.mxu0 0.0
        %4752 = vmatprep.subr.mxu0 0.0
        %4753 = vmatpush1.msra.mxu0 0.0
        %4754 = vmatprep.subr.mxu0 0.0
        %4755 = vmatpush1.msra.mxu0 0.0
        %4756 = vmatprep.subr.mxu0 0.0
        %4757 = vmatpush1.msra.mxu0 0.0
        %4758 = vmatprep.subr.mxu0 0.0
        %4759 = vmatpush1.msra.mxu0 0.0
        %4760 = vmatprep.subr.mxu0 0.0
        %4761 = vmatpush1.msra.mxu0 0.0
        %4762 = vmatprep.subr.mxu0 0.0
        %4763 = vmatpush1.msra.mxu0 0.0
        %4764 = vmatprep.subr.mxu0 0.0
        %v4765 = vand.u32 %v1701, 4294901760
        %4766 = vmatpush1.msra.mxu0 %v4765
        %4767 = vmatprep.subr.mxu0 0.0
        %v4768 = vand.u32 %v1695, 4294901760
        %4769 = vmatpush1.msra.mxu0 %v4768
        %4770 = vmatprep.subr.mxu0 0.0
        %v4771 = vand.u32 %v1689, 4294901760
        %4772 = vmatpush1.msra.mxu0 %v4771
        %4773 = vmatprep.subr.mxu0 0.0
        %4774 = vmatpush2.msra.mxu0 0.0
        %4775 = vmatprep.subr.mxu0 0.0
        %4776 = vmatpush2.msra.mxu0 0.0
        %4777 = vmatprep.subr.mxu0 0.0
        %4778 = vmatpush2.msra.mxu0 0.0
        %4779 = vmatprep.subr.mxu0 0.0
        %4780 = vmatpush2.msra.mxu0 0.0
        %4781 = vmatprep.subr.mxu0 0.0
        %4782 = vmatpush2.msra.mxu0 0.0
        %4783 = vmatprep.subr.mxu0 0.0
        %4784 = vmatpush2.msra.mxu0 0.0
        %4785 = vmatprep.subr.mxu0 0.0
        %4786 = vmatpush2.msra.mxu0 0.0
        %4787 = vmatprep.subr.mxu0 0.0
        %4788 = vmatpush2.msra.mxu0 0.0
        %4789 = vmatprep.subr.mxu0 0.0
        %4790 = vmatpush2.msra.mxu0 0.0
        %4791 = vmatprep.subr.mxu0 0.0
        %4792 = vmatpush2.msra.mxu0 0.0
        %4793 = vmatprep.subr.mxu0 0.0
        %4794 = vmatpush2.msra.mxu0 0.0
        %4795 = vmatprep.subr.mxu0 0.0
        %4796 = vmatpush2.msra.mxu0 0.0
        %4797 = vmatprep.subr.mxu0 0.0
        %4798 = vmatpush2.msra.mxu0 0.0
        %4799 = vmatprep.subr.mxu0 0.0
        %4800 = vmatpush2.msra.mxu0 0.0
        %4801 = vmatprep.subr.mxu0 0.0
        %4802 = vmatpush2.msra.mxu0 0.0
        %4803 = vmatprep.subr.mxu0 0.0
        %4804 = vmatpush2.msra.mxu0 0.0
        %4805 = vmatprep.mubr.f32.mxu0 0.0
        %v4806 = vand.u32 %v1723, 4294901760
        %4807 = vmatmul.mubr.f32.gmra.mxu0 %v4806
        %v4808 = vpop.f32.mrf.mxu0
        %v4809 = vadd.f32 %v4729, %v4808
        %v4810 = vpop.f32.mrf.mxu0
        %4811 = vmatprep.mubr.f32.mxu0 0.0
        %v4812 = vand.u32 %v1726, 4294901760
        %4813 = vmatmul.mubr.f32.gmra.mxu0 %v4812
        %v4814 = vpop.f32.mrf.mxu0
        %v4815 = vadd.f32 %v4735, %v4814
        %v4816 = vpop.f32.mrf.mxu0
        %4817 = vdwg.mxu0
        %4818 = vmatprep.subr.mxu0 0.0
        %4819 = vmatpush1.msra.mxu0 0.0
        %4820 = vmatprep.subr.mxu0 0.0
        %4821 = vmatpush1.msra.mxu0 0.0
        %4822 = vmatprep.subr.mxu0 0.0
        %4823 = vmatpush1.msra.mxu0 0.0
        %4824 = vmatprep.subr.mxu0 0.0
        %4825 = vmatpush1.msra.mxu0 0.0
        %4826 = vmatprep.subr.mxu0 0.0
        %4827 = vmatpush1.msra.mxu0 0.0
        %4828 = vmatprep.subr.mxu0 0.0
        %4829 = vmatpush1.msra.mxu0 0.0
        %4830 = vmatprep.subr.mxu0 0.0
        %4831 = vmatpush1.msra.mxu0 0.0
        %4832 = vmatprep.subr.mxu0 0.0
        %4833 = vmatpush1.msra.mxu0 0.0
        %4834 = vmatprep.subr.mxu0 0.0
        %4835 = vmatpush1.msra.mxu0 0.0
        %4836 = vmatprep.subr.mxu0 0.0
        %4837 = vmatpush1.msra.mxu0 0.0
        %4838 = vmatprep.subr.mxu0 0.0
        %4839 = vmatpush1.msra.mxu0 0.0
        %4840 = vmatprep.subr.mxu0 0.0
        %4841 = vmatpush1.msra.mxu0 0.0
        %4842 = vmatprep.subr.mxu0 0.0
        %4843 = vmatpush1.msra.mxu0 0.0
        %4844 = vmatprep.subr.mxu0 0.0
        %v4845 = vand.u32 %v1719, 4294901760
        %4846 = vmatpush1.msra.mxu0 %v4845
        %4847 = vmatprep.subr.mxu0 0.0
        %v4848 = vand.u32 %v1713, 4294901760
        %4849 = vmatpush1.msra.mxu0 %v4848
        %4850 = vmatprep.subr.mxu0 0.0
        %v4851 = vand.u32 %v1707, 4294901760
        %4852 = vmatpush1.msra.mxu0 %v4851
        %4853 = vmatprep.subr.mxu0 0.0
        %4854 = vmatpush2.msra.mxu0 0.0
        %4855 = vmatprep.subr.mxu0 0.0
        %4856 = vmatpush2.msra.mxu0 0.0
        %4857 = vmatprep.subr.mxu0 0.0
        %4858 = vmatpush2.msra.mxu0 0.0
        %4859 = vmatprep.subr.mxu0 0.0
        %4860 = vmatpush2.msra.mxu0 0.0
        %4861 = vmatprep.subr.mxu0 0.0
        %4862 = vmatpush2.msra.mxu0 0.0
        %4863 = vmatprep.subr.mxu0 0.0
        %4864 = vmatpush2.msra.mxu0 0.0
        %4865 = vmatprep.subr.mxu0 0.0
        %4866 = vmatpush2.msra.mxu0 0.0
        %4867 = vmatprep.subr.mxu0 0.0
        %4868 = vmatpush2.msra.mxu0 0.0
        %4869 = vmatprep.subr.mxu0 0.0
        %4870 = vmatpush2.msra.mxu0 0.0
        %4871 = vmatprep.subr.mxu0 0.0
        %4872 = vmatpush2.msra.mxu0 0.0
        %4873 = vmatprep.subr.mxu0 0.0
        %4874 = vmatpush2.msra.mxu0 0.0
        %4875 = vmatprep.subr.mxu0 0.0
        %4876 = vmatpush2.msra.mxu0 0.0
        %4877 = vmatprep.subr.mxu0 0.0
        %4878 = vmatpush2.msra.mxu0 0.0
        %4879 = vmatprep.subr.mxu0 0.0
        %4880 = vmatpush2.msra.mxu0 0.0
        %4881 = vmatprep.subr.mxu0 0.0
        %4882 = vmatpush2.msra.mxu0 0.0
        %4883 = vmatprep.subr.mxu0 0.0
        %4884 = vmatpush2.msra.mxu0 0.0
        %4885 = vmatprep.mubr.f32.mxu0 0.0
        %v4886 = vand.u32 %v1723, 4294901760
        %v4887 = vsub.f32 %v1723, %v4886
        %v4888 = vand.u32 %v4887, 4294901760
        %v4889 = vsub.f32 %v4887, %v4888
        %v4890 = vand.u32 %v4889, 4294901760
        %4891 = vmatmul.mubr.f32.gmra.mxu0 %v4890
        %v4892 = vpop.f32.mrf.mxu0
        %v4893 = vadd.f32 0.0, %v4892
        %v4894 = vpop.f32.mrf.mxu0
        %4895 = vmatprep.mubr.f32.mxu0 0.0
        %v4896 = vand.u32 %v1726, 4294901760
        %v4897 = vsub.f32 %v1726, %v4896
        %v4898 = vand.u32 %v4897, 4294901760
        %v4899 = vsub.f32 %v4897, %v4898
        %v4900 = vand.u32 %v4899, 4294901760
        %4901 = vmatmul.mubr.f32.gmra.mxu0 %v4900
        %v4902 = vpop.f32.mrf.mxu0
        %v4903 = vadd.f32 0.0, %v4902
        %v4904 = vpop.f32.mrf.mxu0
        %4905 = vdwg.mxu0
        %4906 = vmatprep.subr.mxu0 0.0
        %4907 = vmatpush1.msra.mxu0 0.0
        %4908 = vmatprep.subr.mxu0 0.0
        %4909 = vmatpush1.msra.mxu0 0.0
        %4910 = vmatprep.subr.mxu0 0.0
        %4911 = vmatpush1.msra.mxu0 0.0
        %4912 = vmatprep.subr.mxu0 0.0
        %4913 = vmatpush1.msra.mxu0 0.0
        %4914 = vmatprep.subr.mxu0 0.0
        %4915 = vmatpush1.msra.mxu0 0.0
        %4916 = vmatprep.subr.mxu0 0.0
        %4917 = vmatpush1.msra.mxu0 0.0
        %4918 = vmatprep.subr.mxu0 0.0
        %4919 = vmatpush1.msra.mxu0 0.0
        %4920 = vmatprep.subr.mxu0 0.0
        %4921 = vmatpush1.msra.mxu0 0.0
        %4922 = vmatprep.subr.mxu0 0.0
        %4923 = vmatpush1.msra.mxu0 0.0
        %4924 = vmatprep.subr.mxu0 0.0
        %4925 = vmatpush1.msra.mxu0 0.0
        %4926 = vmatprep.subr.mxu0 0.0
        %4927 = vmatpush1.msra.mxu0 0.0
        %4928 = vmatprep.subr.mxu0 0.0
        %4929 = vmatpush1.msra.mxu0 0.0
        %4930 = vmatprep.subr.mxu0 0.0
        %4931 = vmatpush1.msra.mxu0 0.0
        %4932 = vmatprep.subr.mxu0 0.0
        %v4933 = vand.u32 %v1719, 4294901760
        %v4934 = vsub.f32 %v1719, %v4933
        %v4935 = vand.u32 %v4934, 4294901760
        %v4936 = vsub.f32 %v4934, %v4935
        %v4937 = vand.u32 %v4936, 4294901760
        %4938 = vmatpush1.msra.mxu0 %v4937
        %4939 = vmatprep.subr.mxu0 0.0
        %v4940 = vand.u32 %v1713, 4294901760
        %v4941 = vsub.f32 %v1713, %v4940
        %v4942 = vand.u32 %v4941, 4294901760
        %v4943 = vsub.f32 %v4941, %v4942
        %v4944 = vand.u32 %v4943, 4294901760
        %4945 = vmatpush1.msra.mxu0 %v4944
        %4946 = vmatprep.subr.mxu0 0.0
        %v4947 = vand.u32 %v1707, 4294901760
        %v4948 = vsub.f32 %v1707, %v4947
        %v4949 = vand.u32 %v4948, 4294901760
        %v4950 = vsub.f32 %v4948, %v4949
        %v4951 = vand.u32 %v4950, 4294901760
        %4952 = vmatpush1.msra.mxu0 %v4951
        %4953 = vmatprep.subr.mxu0 0.0
        %4954 = vmatpush2.msra.mxu0 0.0
        %4955 = vmatprep.subr.mxu0 0.0
        %4956 = vmatpush2.msra.mxu0 0.0
        %4957 = vmatprep.subr.mxu0 0.0
        %4958 = vmatpush2.msra.mxu0 0.0
        %4959 = vmatprep.subr.mxu0 0.0
        %4960 = vmatpush2.msra.mxu0 0.0
        %4961 = vmatprep.subr.mxu0 0.0
        %4962 = vmatpush2.msra.mxu0 0.0
        %4963 = vmatprep.subr.mxu0 0.0
        %4964 = vmatpush2.msra.mxu0 0.0
        %4965 = vmatprep.subr.mxu0 0.0
        %4966 = vmatpush2.msra.mxu0 0.0
        %4967 = vmatprep.subr.mxu0 0.0
        %4968 = vmatpush2.msra.mxu0 0.0
        %4969 = vmatprep.subr.mxu0 0.0
        %4970 = vmatpush2.msra.mxu0 0.0
        %4971 = vmatprep.subr.mxu0 0.0
        %4972 = vmatpush2.msra.mxu0 0.0
        %4973 = vmatprep.subr.mxu0 0.0
        %4974 = vmatpush2.msra.mxu0 0.0
        %4975 = vmatprep.subr.mxu0 0.0
        %4976 = vmatpush2.msra.mxu0 0.0
        %4977 = vmatprep.subr.mxu0 0.0
        %4978 = vmatpush2.msra.mxu0 0.0
        %4979 = vmatprep.subr.mxu0 0.0
        %4980 = vmatpush2.msra.mxu0 0.0
        %4981 = vmatprep.subr.mxu0 0.0
        %4982 = vmatpush2.msra.mxu0 0.0
        %4983 = vmatprep.subr.mxu0 0.0
        %4984 = vmatpush2.msra.mxu0 0.0
        %4985 = vmatprep.mubr.f32.mxu0 0.0
        %v4986 = vand.u32 %v1723, 4294901760
        %4987 = vmatmul.mubr.f32.gmra.mxu0 %v4986
        %v4988 = vpop.f32.mrf.mxu0
        %v4989 = vadd.f32 %v4893, %v4988
        %v4990 = vpop.f32.mrf.mxu0
        %4991 = vmatprep.mubr.f32.mxu0 0.0
        %v4992 = vand.u32 %v1726, 4294901760
        %4993 = vmatmul.mubr.f32.gmra.mxu0 %v4992
        %v4994 = vpop.f32.mrf.mxu0
        %v4995 = vadd.f32 %v4903, %v4994
        %v4996 = vpop.f32.mrf.mxu0
        %4997 = vdwg.mxu0
        %4998 = vmatprep.subr.mxu0 0.0
        %4999 = vmatpush1.msra.mxu0 0.0
        %5000 = vmatprep.subr.mxu0 0.0
        %5001 = vmatpush1.msra.mxu0 0.0
        %5002 = vmatprep.subr.mxu0 0.0
        %5003 = vmatpush1.msra.mxu0 0.0
        %5004 = vmatprep.subr.mxu0 0.0
        %5005 = vmatpush1.msra.mxu0 0.0
        %5006 = vmatprep.subr.mxu0 0.0
        %5007 = vmatpush1.msra.mxu0 0.0
        %5008 = vmatprep.subr.mxu0 0.0
        %5009 = vmatpush1.msra.mxu0 0.0
        %5010 = vmatprep.subr.mxu0 0.0
        %5011 = vmatpush1.msra.mxu0 0.0
        %5012 = vmatprep.subr.mxu0 0.0
        %5013 = vmatpush1.msra.mxu0 0.0
        %5014 = vmatprep.subr.mxu0 0.0
        %5015 = vmatpush1.msra.mxu0 0.0
        %5016 = vmatprep.subr.mxu0 0.0
        %5017 = vmatpush1.msra.mxu0 0.0
        %5018 = vmatprep.subr.mxu0 0.0
        %5019 = vmatpush1.msra.mxu0 0.0
        %5020 = vmatprep.subr.mxu0 0.0
        %5021 = vmatpush1.msra.mxu0 0.0
        %5022 = vmatprep.subr.mxu0 0.0
        %5023 = vmatpush1.msra.mxu0 0.0
        %5024 = vmatprep.subr.mxu0 0.0
        %v5025 = vand.u32 %v1719, 4294901760
        %v5026 = vsub.f32 %v1719, %v5025
        %5027 = vmatpush1.msra.mxu0 %v5026
        %5028 = vmatprep.subr.mxu0 0.0
        %v5029 = vand.u32 %v1713, 4294901760
        %v5030 = vsub.f32 %v1713, %v5029
        %5031 = vmatpush1.msra.mxu0 %v5030
        %5032 = vmatprep.subr.mxu0 0.0
        %v5033 = vand.u32 %v1707, 4294901760
        %v5034 = vsub.f32 %v1707, %v5033
        %5035 = vmatpush1.msra.mxu0 %v5034
        %5036 = vmatprep.subr.mxu0 0.0
        %5037 = vmatpush2.msra.mxu0 0.0
        %5038 = vmatprep.subr.mxu0 0.0
        %5039 = vmatpush2.msra.mxu0 0.0
        %5040 = vmatprep.subr.mxu0 0.0
        %5041 = vmatpush2.msra.mxu0 0.0
        %5042 = vmatprep.subr.mxu0 0.0
        %5043 = vmatpush2.msra.mxu0 0.0
        %5044 = vmatprep.subr.mxu0 0.0
        %5045 = vmatpush2.msra.mxu0 0.0
        %5046 = vmatprep.subr.mxu0 0.0
        %5047 = vmatpush2.msra.mxu0 0.0
        %5048 = vmatprep.subr.mxu0 0.0
        %5049 = vmatpush2.msra.mxu0 0.0
        %5050 = vmatprep.subr.mxu0 0.0
        %5051 = vmatpush2.msra.mxu0 0.0
        %5052 = vmatprep.subr.mxu0 0.0
        %5053 = vmatpush2.msra.mxu0 0.0
        %5054 = vmatprep.subr.mxu0 0.0
        %5055 = vmatpush2.msra.mxu0 0.0
        %5056 = vmatprep.subr.mxu0 0.0
        %5057 = vmatpush2.msra.mxu0 0.0
        %5058 = vmatprep.subr.mxu0 0.0
        %5059 = vmatpush2.msra.mxu0 0.0
        %5060 = vmatprep.subr.mxu0 0.0
        %5061 = vmatpush2.msra.mxu0 0.0
        %5062 = vmatprep.subr.mxu0 0.0
        %5063 = vmatpush2.msra.mxu0 0.0
        %5064 = vmatprep.subr.mxu0 0.0
        %5065 = vmatpush2.msra.mxu0 0.0
        %5066 = vmatprep.subr.mxu0 0.0
        %5067 = vmatpush2.msra.mxu0 0.0
        %5068 = vmatprep.mubr.f32.mxu0 0.0
        %v5069 = vand.u32 %v1723, 4294901760
        %v5070 = vsub.f32 %v1723, %v5069
        %5071 = vmatmul.mubr.f32.gmra.mxu0 %v5070
        %v5072 = vpop.f32.mrf.mxu0
        %v5073 = vadd.f32 %v4989, %v5072
        %v5074 = vpop.f32.mrf.mxu0
        %5075 = vmatprep.mubr.f32.mxu0 0.0
        %v5076 = vand.u32 %v1726, 4294901760
        %v5077 = vsub.f32 %v1726, %v5076
        %5078 = vmatmul.mubr.f32.gmra.mxu0 %v5077
        %v5079 = vpop.f32.mrf.mxu0
        %v5080 = vadd.f32 %v4995, %v5079
        %v5081 = vpop.f32.mrf.mxu0
        %5082 = vdwg.mxu0
        %5083 = vmatprep.subr.mxu0 0.0
        %5084 = vmatpush1.msra.mxu0 0.0
        %5085 = vmatprep.subr.mxu0 0.0
        %5086 = vmatpush1.msra.mxu0 0.0
        %5087 = vmatprep.subr.mxu0 0.0
        %5088 = vmatpush1.msra.mxu0 0.0
        %5089 = vmatprep.subr.mxu0 0.0
        %5090 = vmatpush1.msra.mxu0 0.0
        %5091 = vmatprep.subr.mxu0 0.0
        %5092 = vmatpush1.msra.mxu0 0.0
        %5093 = vmatprep.subr.mxu0 0.0
        %5094 = vmatpush1.msra.mxu0 0.0
        %5095 = vmatprep.subr.mxu0 0.0
        %5096 = vmatpush1.msra.mxu0 0.0
        %5097 = vmatprep.subr.mxu0 0.0
        %5098 = vmatpush1.msra.mxu0 0.0
        %5099 = vmatprep.subr.mxu0 0.0
        %5100 = vmatpush1.msra.mxu0 0.0
        %5101 = vmatprep.subr.mxu0 0.0
        %5102 = vmatpush1.msra.mxu0 0.0
        %5103 = vmatprep.subr.mxu0 0.0
        %5104 = vmatpush1.msra.mxu0 0.0
        %5105 = vmatprep.subr.mxu0 0.0
        %5106 = vmatpush1.msra.mxu0 0.0
        %5107 = vmatprep.subr.mxu0 0.0
        %5108 = vmatpush1.msra.mxu0 0.0
        %5109 = vmatprep.subr.mxu0 0.0
        %v5110 = vand.u32 %v1719, 4294901760
        %5111 = vmatpush1.msra.mxu0 %v5110
        %5112 = vmatprep.subr.mxu0 0.0
        %v5113 = vand.u32 %v1713, 4294901760
        %5114 = vmatpush1.msra.mxu0 %v5113
        %5115 = vmatprep.subr.mxu0 0.0
        %v5116 = vand.u32 %v1707, 4294901760
        %5117 = vmatpush1.msra.mxu0 %v5116
        %5118 = vmatprep.subr.mxu0 0.0
        %5119 = vmatpush2.msra.mxu0 0.0
        %5120 = vmatprep.subr.mxu0 0.0
        %5121 = vmatpush2.msra.mxu0 0.0
        %5122 = vmatprep.subr.mxu0 0.0
        %5123 = vmatpush2.msra.mxu0 0.0
        %5124 = vmatprep.subr.mxu0 0.0
        %5125 = vmatpush2.msra.mxu0 0.0
        %5126 = vmatprep.subr.mxu0 0.0
        %5127 = vmatpush2.msra.mxu0 0.0
        %5128 = vmatprep.subr.mxu0 0.0
        %5129 = vmatpush2.msra.mxu0 0.0
        %5130 = vmatprep.subr.mxu0 0.0
        %5131 = vmatpush2.msra.mxu0 0.0
        %5132 = vmatprep.subr.mxu0 0.0
        %5133 = vmatpush2.msra.mxu0 0.0
        %5134 = vmatprep.subr.mxu0 0.0
        %5135 = vmatpush2.msra.mxu0 0.0
        %5136 = vmatprep.subr.mxu0 0.0
        %5137 = vmatpush2.msra.mxu0 0.0
        %5138 = vmatprep.subr.mxu0 0.0
        %5139 = vmatpush2.msra.mxu0 0.0
        %5140 = vmatprep.subr.mxu0 0.0
        %5141 = vmatpush2.msra.mxu0 0.0
        %5142 = vmatprep.subr.mxu0 0.0
        %5143 = vmatpush2.msra.mxu0 0.0
        %5144 = vmatprep.subr.mxu0 0.0
        %5145 = vmatpush2.msra.mxu0 0.0
        %5146 = vmatprep.subr.mxu0 0.0
        %5147 = vmatpush2.msra.mxu0 0.0
        %5148 = vmatprep.subr.mxu0 0.0
        %5149 = vmatpush2.msra.mxu0 0.0
        %5150 = vmatprep.mubr.f32.mxu0 0.0
        %v5151 = vand.u32 %v1723, 4294901760
        %v5152 = vsub.f32 %v1723, %v5151
        %v5153 = vand.u32 %v5152, 4294901760
        %5154 = vmatmul.mubr.f32.gmra.mxu0 %v5153
        %v5155 = vpop.f32.mrf.mxu0
        %v5156 = vadd.f32 %v5073, %v5155
        %v5157 = vpop.f32.mrf.mxu0
        %5158 = vmatprep.mubr.f32.mxu0 0.0
        %v5159 = vand.u32 %v1726, 4294901760
        %v5160 = vsub.f32 %v1726, %v5159
        %v5161 = vand.u32 %v5160, 4294901760
        %5162 = vmatmul.mubr.f32.gmra.mxu0 %v5161
        %v5163 = vpop.f32.mrf.mxu0
        %v5164 = vadd.f32 %v5080, %v5163
        %v5165 = vpop.f32.mrf.mxu0
        %5166 = vdwg.mxu0
        %5167 = vmatprep.subr.mxu0 0.0
        %5168 = vmatpush1.msra.mxu0 0.0
        %5169 = vmatprep.subr.mxu0 0.0
        %5170 = vmatpush1.msra.mxu0 0.0
        %5171 = vmatprep.subr.mxu0 0.0
        %5172 = vmatpush1.msra.mxu0 0.0
        %5173 = vmatprep.subr.mxu0 0.0
        %5174 = vmatpush1.msra.mxu0 0.0
        %5175 = vmatprep.subr.mxu0 0.0
        %5176 = vmatpush1.msra.mxu0 0.0
        %5177 = vmatprep.subr.mxu0 0.0
        %5178 = vmatpush1.msra.mxu0 0.0
        %5179 = vmatprep.subr.mxu0 0.0
        %5180 = vmatpush1.msra.mxu0 0.0
        %5181 = vmatprep.subr.mxu0 0.0
        %5182 = vmatpush1.msra.mxu0 0.0
        %5183 = vmatprep.subr.mxu0 0.0
        %5184 = vmatpush1.msra.mxu0 0.0
        %5185 = vmatprep.subr.mxu0 0.0
        %5186 = vmatpush1.msra.mxu0 0.0
        %5187 = vmatprep.subr.mxu0 0.0
        %5188 = vmatpush1.msra.mxu0 0.0
        %5189 = vmatprep.subr.mxu0 0.0
        %5190 = vmatpush1.msra.mxu0 0.0
        %5191 = vmatprep.subr.mxu0 0.0
        %5192 = vmatpush1.msra.mxu0 0.0
        %5193 = vmatprep.subr.mxu0 0.0
        %v5194 = vand.u32 %v1719, 4294901760
        %v5195 = vsub.f32 %v1719, %v5194
        %v5196 = vand.u32 %v5195, 4294901760
        %5197 = vmatpush1.msra.mxu0 %v5196
        %5198 = vmatprep.subr.mxu0 0.0
        %v5199 = vand.u32 %v1713, 4294901760
        %v5200 = vsub.f32 %v1713, %v5199
        %v5201 = vand.u32 %v5200, 4294901760
        %5202 = vmatpush1.msra.mxu0 %v5201
        %5203 = vmatprep.subr.mxu0 0.0
        %v5204 = vand.u32 %v1707, 4294901760
        %v5205 = vsub.f32 %v1707, %v5204
        %v5206 = vand.u32 %v5205, 4294901760
        %5207 = vmatpush1.msra.mxu0 %v5206
        %5208 = vmatprep.subr.mxu0 0.0
        %5209 = vmatpush2.msra.mxu0 0.0
        %5210 = vmatprep.subr.mxu0 0.0
        %5211 = vmatpush2.msra.mxu0 0.0
        %5212 = vmatprep.subr.mxu0 0.0
        %5213 = vmatpush2.msra.mxu0 0.0
        %5214 = vmatprep.subr.mxu0 0.0
        %5215 = vmatpush2.msra.mxu0 0.0
        %5216 = vmatprep.subr.mxu0 0.0
        %5217 = vmatpush2.msra.mxu0 0.0
        %5218 = vmatprep.subr.mxu0 0.0
        %5219 = vmatpush2.msra.mxu0 0.0
        %5220 = vmatprep.subr.mxu0 0.0
        %5221 = vmatpush2.msra.mxu0 0.0
        %5222 = vmatprep.subr.mxu0 0.0
        %5223 = vmatpush2.msra.mxu0 0.0
        %5224 = vmatprep.subr.mxu0 0.0
        %5225 = vmatpush2.msra.mxu0 0.0
        %5226 = vmatprep.subr.mxu0 0.0
        %5227 = vmatpush2.msra.mxu0 0.0
        %5228 = vmatprep.subr.mxu0 0.0
        %5229 = vmatpush2.msra.mxu0 0.0
        %5230 = vmatprep.subr.mxu0 0.0
        %5231 = vmatpush2.msra.mxu0 0.0
        %5232 = vmatprep.subr.mxu0 0.0
        %5233 = vmatpush2.msra.mxu0 0.0
        %5234 = vmatprep.subr.mxu0 0.0
        %5235 = vmatpush2.msra.mxu0 0.0
        %5236 = vmatprep.subr.mxu0 0.0
        %5237 = vmatpush2.msra.mxu0 0.0
        %5238 = vmatprep.subr.mxu0 0.0
        %5239 = vmatpush2.msra.mxu0 0.0
        %5240 = vmatprep.mubr.f32.mxu0 0.0
        %v5241 = vand.u32 %v1723, 4294901760
        %5242 = vmatmul.mubr.f32.gmra.mxu0 %v5241
        %v5243 = vpop.f32.mrf.mxu0
        %v5244 = vadd.f32 %v5156, %v5243
        %v5245 = vpop.f32.mrf.mxu0
        %5246 = vmatprep.mubr.f32.mxu0 0.0
        %v5247 = vand.u32 %v1726, 4294901760
        %5248 = vmatmul.mubr.f32.gmra.mxu0 %v5247
        %v5249 = vpop.f32.mrf.mxu0
        %v5250 = vadd.f32 %v5164, %v5249
        %v5251 = vpop.f32.mrf.mxu0
        %5252 = vdwg.mxu0
        %5253 = vmatprep.subr.mxu0 0.0
        %5254 = vmatpush1.msra.mxu0 0.0
        %5255 = vmatprep.subr.mxu0 0.0
        %5256 = vmatpush1.msra.mxu0 0.0
        %5257 = vmatprep.subr.mxu0 0.0
        %5258 = vmatpush1.msra.mxu0 0.0
        %5259 = vmatprep.subr.mxu0 0.0
        %5260 = vmatpush1.msra.mxu0 0.0
        %5261 = vmatprep.subr.mxu0 0.0
        %5262 = vmatpush1.msra.mxu0 0.0
        %5263 = vmatprep.subr.mxu0 0.0
        %5264 = vmatpush1.msra.mxu0 0.0
        %5265 = vmatprep.subr.mxu0 0.0
        %5266 = vmatpush1.msra.mxu0 0.0
        %5267 = vmatprep.subr.mxu0 0.0
        %5268 = vmatpush1.msra.mxu0 0.0
        %5269 = vmatprep.subr.mxu0 0.0
        %5270 = vmatpush1.msra.mxu0 0.0
        %5271 = vmatprep.subr.mxu0 0.0
        %5272 = vmatpush1.msra.mxu0 0.0
        %5273 = vmatprep.subr.mxu0 0.0
        %5274 = vmatpush1.msra.mxu0 0.0
        %5275 = vmatprep.subr.mxu0 0.0
        %5276 = vmatpush1.msra.mxu0 0.0
        %5277 = vmatprep.subr.mxu0 0.0
        %5278 = vmatpush1.msra.mxu0 0.0
        %5279 = vmatprep.subr.mxu0 0.0
        %v5280 = vand.u32 %v1719, 4294901760
        %5281 = vmatpush1.msra.mxu0 %v5280
        %5282 = vmatprep.subr.mxu0 0.0
        %v5283 = vand.u32 %v1713, 4294901760
        %5284 = vmatpush1.msra.mxu0 %v5283
        %5285 = vmatprep.subr.mxu0 0.0
        %v5286 = vand.u32 %v1707, 4294901760
        %5287 = vmatpush1.msra.mxu0 %v5286
        %5288 = vmatprep.subr.mxu0 0.0
        %5289 = vmatpush2.msra.mxu0 0.0
        %5290 = vmatprep.subr.mxu0 0.0
        %5291 = vmatpush2.msra.mxu0 0.0
        %5292 = vmatprep.subr.mxu0 0.0
        %5293 = vmatpush2.msra.mxu0 0.0
        %5294 = vmatprep.subr.mxu0 0.0
        %5295 = vmatpush2.msra.mxu0 0.0
        %5296 = vmatprep.subr.mxu0 0.0
        %5297 = vmatpush2.msra.mxu0 0.0
        %5298 = vmatprep.subr.mxu0 0.0
        %5299 = vmatpush2.msra.mxu0 0.0
        %5300 = vmatprep.subr.mxu0 0.0
        %5301 = vmatpush2.msra.mxu0 0.0
        %5302 = vmatprep.subr.mxu0 0.0
        %5303 = vmatpush2.msra.mxu0 0.0
        %5304 = vmatprep.subr.mxu0 0.0
        %5305 = vmatpush2.msra.mxu0 0.0
        %5306 = vmatprep.subr.mxu0 0.0
        %5307 = vmatpush2.msra.mxu0 0.0
        %5308 = vmatprep.subr.mxu0 0.0
        %5309 = vmatpush2.msra.mxu0 0.0
        %5310 = vmatprep.subr.mxu0 0.0
        %5311 = vmatpush2.msra.mxu0 0.0
        %5312 = vmatprep.subr.mxu0 0.0
        %5313 = vmatpush2.msra.mxu0 0.0
        %5314 = vmatprep.subr.mxu0 0.0
        %5315 = vmatpush2.msra.mxu0 0.0
        %5316 = vmatprep.subr.mxu0 0.0
        %5317 = vmatpush2.msra.mxu0 0.0
        %5318 = vmatprep.subr.mxu0 0.0
        %5319 = vmatpush2.msra.mxu0 0.0
        %5320 = vmatprep.mubr.f32.mxu0 0.0
        %v5321 = vand.u32 %v1723, 4294901760
        %5322 = vmatmul.mubr.f32.gmra.mxu0 %v5321
        %v5323 = vpop.f32.mrf.mxu0
        %v5324 = vadd.f32 %v5244, %v5323
        %v5325 = vpop.f32.mrf.mxu0
        %5326 = vmatprep.mubr.f32.mxu0 0.0
        %v5327 = vand.u32 %v1726, 4294901760
        %5328 = vmatmul.mubr.f32.gmra.mxu0 %v5327
        %v5329 = vpop.f32.mrf.mxu0
        %v5330 = vadd.f32 %v5250, %v5329
        %v5331 = vpop.f32.mrf.mxu0
        %5332 = vdwg.mxu0
        %v5333 = vadd.s32 %v293, 4
        %v5334 = vadd.s32 %v294, 4
        %vm5335 = vcmp.lt.s32.totalorder %v5333, 15
        %v5336 = vsel %vm5335, %v5333, 15
        %vm5337 = vcmp.lt.s32.totalorder %v5334, 15
        %v5338 = vsel %vm5337, %v5334, 15
        %v5339 = vsub.s32 %v293, 4
        %v5340 = vsub.s32 %v294, 4
        %vm5341 = vcmp.gt.s32.totalorder %v5339, 0
        %v5342 = vsel %vm5341, %v5339, 0
        %vm5343 = vcmp.gt.s32.totalorder %v5340, 0
        %v5344 = vsel %vm5343, %v5340, 0
        %v5345 = vsub.s32 %v5336, %v5342
        %v5346 = vsub.s32 %v5338, %v5344
        %v5347 = vadd.s32 %v5345, 1
        %v5348 = vadd.s32 %v5346, 1
        %v5349 = vadd.s32 %v297, 4
        %vm5350 = vcmp.lt.s32.totalorder %v5349, 15
        %v5351 = vsel %vm5350, %v5349, 15
        %v5352 = vsub.s32 %v297, 4
        %vm5353 = vcmp.gt.s32.totalorder %v5352, 0
        %v5354 = vsel %vm5353, %v5352, 0
        %v5355 = vsub.s32 %v5351, %v5354
        %v5356 = vadd.s32 %v5355, 1
        %v5357 = vmul.u32 %v5347, %v5356
        %v5358 = vmul.u32 %v5348, %v5356
        %v5359 = vcvt.s32.f32 %v5357
        %v5360 = vcvt.s32.f32 %v5358
        %v5361 = vadd.f32 %v5359, 81.0
        %v5362 = vadd.f32 %v5360, 81.0
        %vm5365 = vcmask 1043456
        %v5366 = vrot.slane %v5361, 4
        %v5367 = vrot.slane %v5362, 4
        %v5368 = vsel %vm5365, %v5366, %v5367
        %5369 = vrot.lane.b32.xlu0 %v5366, 4
        %v5370 = vpop.permute.xlu0 %5369
        %5371 = vrot.lane.b32.xlu0 %v5368, 4
        %v5372 = vpop.permute.xlu0 %5371
        %5373 = vrot.lane.b32.xlu0 %v5367, 4
        %v5374 = vpop.permute.xlu0 %5373
        %v5378 = vmul.f32 %v271, %v5370
        %v5379 = vmul.f32 %v272, %v5372
        %v5380 = vmul.f32 %v273, %v5374
        %v5381 = vmul.f32 %v274, %v5370
        %v5382 = vmul.f32 %v275, %v5372
        %v5383 = vmul.f32 %v276, %v5374
        %v5384 = vmul.f32 %v277, %v5370
        %v5385 = vmul.f32 %v278, %v5372
        %v5386 = vmul.f32 %v279, %v5374
        %v5387 = vmul.f32 %v280, %v5370
        %v5388 = vmul.f32 %v281, %v5372
        %v5389 = vmul.f32 %v282, %v5374
        %v5390 = vmul.f32 %v283, %v5370
        %v5391 = vmul.f32 %v284, %v5372
        %v5392 = vmul.f32 %v285, %v5374
        %v5393 = vmul.f32 %v286, %v5370
        %v5394 = vmul.f32 %v287, %v5372
        %v5395 = vmul.f32 %v288, %v5374
        %v5396 = vmul.f32 %v289, %v5370
        %v5397 = vmul.f32 %v290, %v5372
        %v5398 = vmul.f32 %v291, %v5374
        %v5399 = vmul.f32 %v2234, 2.0
        %v5400 = vmul.f32 %v2240, 2.0
        %v5401 = vmul.f32 %v2749, 2.0
        %v5402 = vmul.f32 %v2755, 2.0
        %v5403 = vmul.f32 %v3264, 2.0
        %v5404 = vmul.f32 %v3270, 2.0
        %v5405 = vmul.f32 %v3779, 2.0
        %v5406 = vmul.f32 %v3785, 2.0
        %v5407 = vmul.f32 %v4294, 2.0
        %v5408 = vmul.f32 %v4300, 2.0
        %v5409 = vmul.f32 %v4809, 2.0
        %v5410 = vmul.f32 %v4815, 2.0
        %v5411 = vmul.f32 %v5324, 2.0
        %v5412 = vmul.f32 %v5330, 2.0
        %v5427 = vrot.slane %v5399, 4
        %v5428 = vrot.slane %v5400, 4
        %v5429 = vsel %vm5365, %v5427, %v5428
        %v5430 = vrot.slane %v5401, 4
        %v5431 = vrot.slane %v5402, 4
        %v5432 = vsel %vm5365, %v5430, %v5431
        %v5433 = vrot.slane %v5403, 4
        %v5434 = vrot.slane %v5404, 4
        %v5435 = vsel %vm5365, %v5433, %v5434
        %v5436 = vrot.slane %v5405, 4
        %v5437 = vrot.slane %v5406, 4
        %v5438 = vsel %vm5365, %v5436, %v5437
        %v5439 = vrot.slane %v5407, 4
        %v5440 = vrot.slane %v5408, 4
        %v5441 = vsel %vm5365, %v5439, %v5440
        %v5442 = vrot.slane %v5409, 4
        %v5443 = vrot.slane %v5410, 4
        %v5444 = vsel %vm5365, %v5442, %v5443
        %v5445 = vrot.slane %v5411, 4
        %v5446 = vrot.slane %v5412, 4
        %v5447 = vsel %vm5365, %v5445, %v5446
        %5448 = vrot.lane.b32.xlu0 %v5427, 4
        %v5449 = vpop.permute.xlu0 %5448
        %5450 = vrot.lane.b32.xlu0 %v5429, 4
        %v5451 = vpop.permute.xlu0 %5450
        %5452 = vrot.lane.b32.xlu0 %v5428, 4
        %v5453 = vpop.permute.xlu0 %5452
        %5454 = vrot.lane.b32.xlu0 %v5430, 4
        %v5455 = vpop.permute.xlu0 %5454
        %5456 = vrot.lane.b32.xlu0 %v5432, 4
        %v5457 = vpop.permute.xlu0 %5456
        %5458 = vrot.lane.b32.xlu0 %v5431, 4
        %v5459 = vpop.permute.xlu0 %5458
        %5460 = vrot.lane.b32.xlu0 %v5433, 4
        %v5461 = vpop.permute.xlu0 %5460
        %5462 = vrot.lane.b32.xlu0 %v5435, 4
        %v5463 = vpop.permute.xlu0 %5462
        %5464 = vrot.lane.b32.xlu0 %v5434, 4
        %v5465 = vpop.permute.xlu0 %5464
        %5466 = vrot.lane.b32.xlu0 %v5436, 4
        %v5467 = vpop.permute.xlu0 %5466
        %5468 = vrot.lane.b32.xlu0 %v5438, 4
        %v5469 = vpop.permute.xlu0 %5468
        %5470 = vrot.lane.b32.xlu0 %v5437, 4
        %v5471 = vpop.permute.xlu0 %5470
        %5472 = vrot.lane.b32.xlu0 %v5439, 4
        %v5473 = vpop.permute.xlu0 %5472
        %5474 = vrot.lane.b32.xlu0 %v5441, 4
        %v5475 = vpop.permute.xlu0 %5474
        %5476 = vrot.lane.b32.xlu0 %v5440, 4
        %v5477 = vpop.permute.xlu0 %5476
        %5478 = vrot.lane.b32.xlu0 %v5442, 4
        %v5479 = vpop.permute.xlu0 %5478
        %5480 = vrot.lane.b32.xlu0 %v5444, 4
        %v5481 = vpop.permute.xlu0 %5480
        %5482 = vrot.lane.b32.xlu0 %v5443, 4
        %v5483 = vpop.permute.xlu0 %5482
        %5484 = vrot.lane.b32.xlu0 %v5445, 4
        %v5485 = vpop.permute.xlu0 %5484
        %5486 = vrot.lane.b32.xlu0 %v5447, 4
        %v5487 = vpop.permute.xlu0 %5486
        %5488 = vrot.lane.b32.xlu0 %v5446, 4
        %v5489 = vpop.permute.xlu0 %5488
        %v5511 = vsub.f32 %v5378, %v5449
        %v5512 = vsub.f32 %v5379, %v5451
        %v5513 = vsub.f32 %v5380, %v5453
        %v5514 = vsub.f32 %v5381, %v5455
        %v5515 = vsub.f32 %v5382, %v5457
        %v5516 = vsub.f32 %v5383, %v5459
        %v5517 = vsub.f32 %v5384, %v5461
        %v5518 = vsub.f32 %v5385, %v5463
        %v5519 = vsub.f32 %v5386, %v5465
        %v5520 = vsub.f32 %v5387, %v5467
        %v5521 = vsub.f32 %v5388, %v5469
        %v5522 = vsub.f32 %v5389, %v5471
        %v5523 = vsub.f32 %v5390, %v5473
        %v5524 = vsub.f32 %v5391, %v5475
        %v5525 = vsub.f32 %v5392, %v5477
        %v5526 = vsub.f32 %v5393, %v5479
        %v5527 = vsub.f32 %v5394, %v5481
        %v5528 = vsub.f32 %v5395, %v5483
        %v5529 = vsub.f32 %v5396, %v5485
        %v5530 = vsub.f32 %v5397, %v5487
        %v5531 = vsub.f32 %v5398, %v5489
        %v5532 = vmul.f32 %v271, %v5511
        %v5533 = vmul.f32 %v272, %v5512
        %v5534 = vmul.f32 %v273, %v5513
        %v5535 = vmul.f32 %v274, %v5514
        %v5536 = vmul.f32 %v275, %v5515
        %v5537 = vmul.f32 %v276, %v5516
        %v5538 = vmul.f32 %v277, %v5517
        %v5539 = vmul.f32 %v278, %v5518
        %v5540 = vmul.f32 %v279, %v5519
        %v5541 = vmul.f32 %v280, %v5520
        %v5542 = vmul.f32 %v281, %v5521
        %v5543 = vmul.f32 %v282, %v5522
        %v5544 = vmul.f32 %v283, %v5523
        %v5545 = vmul.f32 %v284, %v5524
        %v5546 = vmul.f32 %v285, %v5525
        %v5547 = vmul.f32 %v286, %v5526
        %v5548 = vmul.f32 %v287, %v5527
        %v5549 = vmul.f32 %v288, %v5528
        %v5550 = vmul.f32 %v289, %v5529
        %v5551 = vmul.f32 %v290, %v5530
        %v5552 = vmul.f32 %v291, %v5531
        %v5574 = vrot.slane %v5532, 4
        %v5575 = vrot.slane %v5533, 4
        %v5576 = vsel %vm5365, %v5574, %v5575
        %v5577 = vrot.slane %v5534, 4
        %v5578 = vsel %vm5365, %v5575, %v5577
        %v5579 = vrot.slane %v5535, 4
        %v5580 = vrot.slane %v5536, 4
        %v5581 = vsel %vm5365, %v5579, %v5580
        %v5582 = vrot.slane %v5537, 4
        %v5583 = vsel %vm5365, %v5580, %v5582
        %v5584 = vrot.slane %v5538, 4
        %v5585 = vrot.slane %v5539, 4
        %v5586 = vsel %vm5365, %v5584, %v5585
        %v5587 = vrot.slane %v5540, 4
        %v5588 = vsel %vm5365, %v5585, %v5587
        %v5589 = vrot.slane %v5541, 4
        %v5590 = vrot.slane %v5542, 4
        %v5591 = vsel %vm5365, %v5589, %v5590
        %v5592 = vrot.slane %v5543, 4
        %v5593 = vsel %vm5365, %v5590, %v5592
        %v5594 = vrot.slane %v5544, 4
        %v5595 = vrot.slane %v5545, 4
        %v5596 = vsel %vm5365, %v5594, %v5595
        %v5597 = vrot.slane %v5546, 4
        %v5598 = vsel %vm5365, %v5595, %v5597
        %v5599 = vrot.slane %v5547, 4
        %v5600 = vrot.slane %v5548, 4
        %v5601 = vsel %vm5365, %v5599, %v5600
        %v5602 = vrot.slane %v5549, 4
        %v5603 = vsel %vm5365, %v5600, %v5602
        %v5604 = vrot.slane %v5550, 4
        %v5605 = vrot.slane %v5551, 4
        %v5606 = vsel %vm5365, %v5604, %v5605
        %v5607 = vrot.slane %v5552, 4
        %v5608 = vsel %vm5365, %v5605, %v5607
        %5609 = vrot.lane.b32.xlu0 %v5576, 124
        %v5610 = vpop.permute.xlu0 %5609
        %5611 = vrot.lane.b32.xlu0 %v5578, 124
        %v5612 = vpop.permute.xlu0 %5611
        %5613 = vrot.lane.b32.xlu0 %v5581, 124
        %v5614 = vpop.permute.xlu0 %5613
        %5615 = vrot.lane.b32.xlu0 %v5583, 124
        %v5616 = vpop.permute.xlu0 %5615
        %5617 = vrot.lane.b32.xlu0 %v5586, 124
        %v5618 = vpop.permute.xlu0 %5617
        %5619 = vrot.lane.b32.xlu0 %v5588, 124
        %v5620 = vpop.permute.xlu0 %5619
        %5621 = vrot.lane.b32.xlu0 %v5591, 124
        %v5622 = vpop.permute.xlu0 %5621
        %5623 = vrot.lane.b32.xlu0 %v5593, 124
        %v5624 = vpop.permute.xlu0 %5623
        %5625 = vrot.lane.b32.xlu0 %v5596, 124
        %v5626 = vpop.permute.xlu0 %5625
        %5627 = vrot.lane.b32.xlu0 %v5598, 124
        %v5628 = vpop.permute.xlu0 %5627
        %5629 = vrot.lane.b32.xlu0 %v5601, 124
        %v5630 = vpop.permute.xlu0 %5629
        %5631 = vrot.lane.b32.xlu0 %v5603, 124
        %v5632 = vpop.permute.xlu0 %5631
        %5633 = vrot.lane.b32.xlu0 %v5606, 124
        %v5634 = vpop.permute.xlu0 %5633
        %5635 = vrot.lane.b32.xlu0 %v5608, 124
        %v5636 = vpop.permute.xlu0 %5635
        %vm5651 = vcmask 130048
        %v5652 = vsel %vm5651, %v5610, 0.0
        %v5653 = vsel %vm5651, %v5612, 0.0
        %v5654 = vadd.f32 %v5652, %v5653
        %v5655 = vsel %vm5651, %v5614, 0.0
        %v5656 = vadd.f32 %v5654, %v5655
        %v5657 = vsel %vm5651, %v5616, 0.0
        %v5658 = vadd.f32 %v5656, %v5657
        %v5659 = vsel %vm5651, %v5618, 0.0
        %v5660 = vadd.f32 %v5658, %v5659
        %v5661 = vsel %vm5651, %v5620, 0.0
        %v5662 = vadd.f32 %v5660, %v5661
        %v5663 = vsel %vm5651, %v5622, 0.0
        %v5664 = vadd.f32 %v5662, %v5663
        %v5665 = vsel %vm5651, %v5624, 0.0
        %v5666 = vadd.f32 %v5664, %v5665
        %v5667 = vsel %vm5651, %v5626, 0.0
        %v5668 = vadd.f32 %v5666, %v5667
        %v5669 = vsel %vm5651, %v5628, 0.0
        %v5670 = vadd.f32 %v5668, %v5669
        %v5671 = vsel %vm5651, %v5630, 0.0
        %v5672 = vadd.f32 %v5670, %v5671
        %v5673 = vsel %vm5651, %v5632, 0.0
        %v5674 = vadd.f32 %v5672, %v5673
        %v5675 = vsel %vm5651, %v5634, 0.0
        %v5676 = vadd.f32 %v5674, %v5675
        %v5677 = vsel %vm5651, %v5636, 0.0
        %v5678 = vadd.f32 %v5676, %v5677
        %5679 = vadd.xlane.f32.xlu0 %v5678
        %v5680 = vpop.xlane.xlu0 %5679
        %v5681 = vrot.slane %v5680, 4
        %v5682 = vadd.f32 %v5680, %v5681
        %v5683 = vrot.slane %v5682, 2
        %v5684 = vadd.f32 %v5682, %v5683
        %v5685 = vrot.slane %v5684, 1
        %v5686 = vadd.f32 %v5684, %v5685
        %s5687 = vtos %v5686
        %v5688 = vstv %s5687
        %vm5689 = vcmask 0
        %5690 = vst.msk [vmem:[%s225] sm:$0x1] %vm5689, %v5688
        %p5691 = scmp.lt.s32.totalorder %s23, 3
        %s5692 = scalar_select %p5691, %s23, 3
        %p5693 = scmp.lt.s32.totalorder %s24, 0
        %s5694 = scalar_select %p5693, %s24, 0
        %s5695 = sadd.s32 %s5694, %s5692
        %s5696 = scalar_lea.vmem %s2, %s5695
        // Predicated region
        $region37: #{tpu_custom_call.1} parent=27 // pred_check
          %p5697 = pneg %p105
        $region38: #{tpu_custom_call.1} parent=27 // pred_check_branch
          %5699 = sbr.rel (%p5697) target = $region40
        $region39: #{tpu_custom_call.1} parent=27 // pred_region
          _
        $region40: #{tpu_custom_call.1} parent=27 // pred_fallthru
          _
      $region28: #{tpu_custom_call.1} parent=5 // pred_fallthru
        _
      %p5700 = scmp.le.s32.totalorder 2, %s14
      // Predicated region
      $region41: #{tpu_custom_call.1} parent=5 // pred_check
        %p5701 = pneg %p5700
      $region42: #{tpu_custom_call.1} parent=5 // pred_check_branch
        %5703 = sbr.rel (%p5701) target = $region44
      $region43: #{tpu_custom_call.1} parent=5 // pred_region
        %s5704 = ssub.s32 %s14, 2
        // Predicated region
        $region45: #{tpu_custom_call.1} parent=43 // pred_check
          %p5705 = pneg %p111
        $region46: #{tpu_custom_call.1} parent=43 // pred_check_branch
          %5707 = sbr.rel (%p5705) target = $region48
        $region47: #{tpu_custom_call.1} parent=43 // pred_region
          %p5708 = scmp.lt.s32.totalorder %s25, 3
          %s5709 = scalar_select %p5708, %s25, 3
          %p5710 = scmp.lt.s32.totalorder %s26, 0
          %s5711 = scalar_select %p5710, %s26, 0
          %s5712 = sadd.s32 %s5711, %s5709
          %s5713 = scalar_lea.vmem %s2, %s5712
        $region48: #{tpu_custom_call.1} parent=43 // pred_fallthru
          _
      $region44: #{tpu_custom_call.1} parent=5 // pred_fallthru
        _
    $region6: #{tpu_custom_call.1} parent=1 // loop_footer
      %s18 = sadd.s32 1, %s14
    $region7: #{tpu_custom_call.1} parent=1 // loop_footer_branch
      %13 = sbr.rel target = $region3
    $region8: #{tpu_custom_call.1} parent=1 // loop_exit
      _
    %5714 = vsyncpa [#allocation3], 1
    %s5715 = scalar_lea.sflag [#allocation3], 1
    %5716 = vsyncpa %s5715, 1
    %5717 = vsyncpa [#allocation5], 1
    %s5718 = scalar_lea.sflag [#allocation5], 1
    %5719 = vsyncpa %s5718, 1

</llo_original>
